<compile_context>
chip_gen: v6e
topology: v6e:2x2x1
jax: 0.10.0
libtpu: 0.0.40
codegen_flags: <defaults>
</compile_context>

<pallas_src>
import functools

import jax
import jax.numpy as jnp
from jax.experimental import pallas as pl
from jax.experimental.pallas import tpu as pltpu


def _conv_bn_relu_kernel(x_ref, w_ref, b_ref, o_ref, acc_ref, *,
                         KH, KW, Cin, toh, OW, stride, dilation,
                         apply_bias, apply_relu):
    """One grid step = one band of `toh` output rows of one image.

    x_ref : (1, band_in_rows, Wp, Cin)   bf16 padded NHWC input band
    w_ref : (KH*KW, Cin, O_pad)          bf16 weights (BN scale folded in)
    b_ref : (1, O_pad)                   f32  fused bias
    o_ref : (1, toh*OW, O_pad)           f32  output band
    acc   : (toh*OW, O_pad)              f32  VMEM accumulator scratch
    """
    acc_ref[...] = jnp.zeros_like(acc_ref)
    # Static unrolled loop over the KH*KW taps: each tap is a shifted slice of
    # the resident input band, contracted over Cin on the MXU.
    for kh in range(KH):
        for kw in range(KW):
            h0 = kh * dilation
            w0 = kw * dilation
            if stride == 1:
                xs = x_ref[0, h0:h0 + toh, w0:w0 + OW, :]
            else:
                # Load the contiguous window, then subsample by the stride.
                xs = x_ref[0, h0:h0 + (toh - 1) * stride + 1,
                           w0:w0 + (OW - 1) * stride + 1, :]
                xs = xs[::stride, ::stride, :]
            xs = xs.reshape(toh * OW, Cin)               # (M_band, Cin) bf16
            wt = w_ref[kh * KW + kw]                     # (Cin, O_pad)  bf16
            acc_ref[...] += jnp.dot(xs, wt, preferred_element_type=jnp.float32)

    out = acc_ref[...]
    if apply_bias:
        out = out + b_ref[...]
    if apply_relu:
        out = jnp.maximum(out, 0.0)
    o_ref[0, :, :] = out.astype(o_ref.dtype)


def basic_conv_forward(x_nchw, weight, gamma=None, beta=None,
                       run_mean=None, run_var=None, conv_bias=None, *,
                       stride=1, padding=0, dilation=1, relu=True, bn=True,
                       eps=1e-5, target_rows=512, lane=128):
    """Forward pass of BasicConv (Conv2d[bias optional] -> BN(inference) -> ReLU)."""
    N, Cin, H, W = x_nchw.shape
    O, Cin_w, KH, KW = weight.shape
    assert Cin_w == Cin, "only groups=1 supported"
    # TODO(synk): groups > 1 (grouped/depthwise conv) not implemented;
    #             RFB_Net_mobile's BasicConv uses the default groups=1.

    s, d = stride, dilation
    Hp, Wp = H + 2 * padding, W + 2 * padding
    OH = (Hp - d * (KH - 1) - 1) // s + 1
    OW = (Wp - d * (KW - 1) - 1) // s + 1

    # ---- fold BN (inference form, running stats) + optional conv bias ----
    if bn:
        scale = (gamma / jnp.sqrt(run_var + eps)).astype(jnp.float32)
        bias = beta - run_mean * scale
        if conv_bias is not None:
            bias = bias + scale * conv_bias
    else:
        scale = jnp.ones((O,), jnp.float32)
        bias = conv_bias if conv_bias is not None else jnp.zeros((O,), jnp.float32)
    apply_bias = bn or (conv_bias is not None)
    # TODO(synk): training-mode BatchNorm (batch statistics + running-stat
    #             update) is not implemented; inference-form BN is fused.

    # ---- weights: (O,Cin,KH,KW) -> (KH*KW, Cin, O_pad), scale folded, bf16 ----
    O_pad = ((O + lane - 1) // lane) * lane
    w2 = jnp.transpose(weight.astype(jnp.float32) * scale[:, None, None, None],
                       (2, 3, 1, 0)).reshape(KH * KW, Cin, O)
    w2 = jnp.pad(w2, ((0, 0), (0, 0), (0, O_pad - O))).astype(jnp.bfloat16)
    bias2 = jnp.pad(bias.astype(jnp.float32), (0, O_pad - O)).reshape(1, O_pad)

    # ---- input: NCHW -> NHWC, spatial zero-pad, bf16 stream ----
    x = jnp.transpose(x_nchw, (0, 2, 3, 1)).astype(jnp.bfloat16)
    x = jnp.pad(x, ((0, 0), (padding, padding), (padding, padding), (0, 0)))

    # ---- band the output rows; each band (+ halo rows) is one grid step ----
    toh = max(1, min(OH, -(-target_rows // OW)))

    def band_bytes(t):
        rows_in = (t - 1) * s + d * (KH - 1) + 1
        return (2 * rows_in * Wp * Cin * 2      # double-buffered bf16 input band
                + 2 * t * OW * O_pad * 4        # double-buffered f32 output band
                + t * OW * O_pad * 4            # f32 accumulator scratch
                + w2.size * 2 + O_pad * 4)      # resident weight + bias

    while toh > 1 and band_bytes(toh) > 24 * 1024 * 1024:
        toh = (toh + 1) // 2

    num_bands = -(-OH // toh)
    band_in_rows = (toh - 1) * s + d * (KH - 1) + 1
    needed_H = (num_bands - 1) * toh * s + band_in_rows
    if needed_H > Hp:
        x = jnp.pad(x, ((0, 0), (0, needed_H - Hp), (0, 0), (0, 0)))

    # Gather each band's input rows (tiny halo duplication only, no im2col).
    row_idx = (jnp.arange(num_bands) * toh * s)[:, None] + \
        jnp.arange(band_in_rows)[None, :]
    x_bands = x[:, row_idx]                      # (N, num_bands, rows, Wp, Cin)
    NB = N * num_bands
    x_bands = x_bands.reshape(NB, band_in_rows, Wp, Cin)

    M_band = toh * OW

    kernel = functools.partial(
        _conv_bn_relu_kernel, KH=KH, KW=KW, Cin=Cin, toh=toh, OW=OW,
        stride=s, dilation=d, apply_bias=apply_bias, apply_relu=relu)

    flops = 2 * N * OH * OW * KH * KW * Cin * O
    bytes_accessed = (x_bands.size * 2 + w2.size * 2 + bias2.size * 4
                      + NB * M_band * O_pad * 4)

    out = pl.pallas_call(
        kernel,
        out_shape=jax.ShapeDtypeStruct((NB, M_band, O_pad), jnp.float32),
        grid_spec=pltpu.PrefetchScalarGridSpec(
            num_scalar_prefetch=0,
            grid=(NB,),
            in_specs=[
                # bf16 input band streamed per grid step
                pl.BlockSpec((1, band_in_rows, Wp, Cin), lambda b: (b, 0, 0, 0)),
                # resident folded weights and bias (constant block index)
                pl.BlockSpec((KH * KW, Cin, O_pad), lambda b: (0, 0, 0)),
                pl.BlockSpec((1, O_pad), lambda b: (0, 0)),
            ],
            out_specs=pl.BlockSpec((1, M_band, O_pad), lambda b: (b, 0, 0)),
            scratch_shapes=[pltpu.VMEM((M_band, O_pad), jnp.float32)],
        ),
        compiler_params=pltpu.CompilerParams(
            dimension_semantics=("parallel",),
            vmem_limit_bytes=48 * 1024 * 1024),
        cost_estimate=pl.CostEstimate(flops=flops, transcendentals=0,
                                      bytes_accessed=bytes_accessed),
    )(x_bands, w2, bias2)

    out = out.reshape(N, num_bands * toh, OW, O_pad)[:, :OH, :, :O]
    return jnp.transpose(out, (0, 3, 1, 2))      # back to NCHW


if __name__ == "__main__":
    key = jax.random.PRNGKey(0)
    k_x, k_w, k_g, k_b, k_m, k_v = jax.random.split(key, 6)

    # Small shapes consistent with BasicConv(in_planes=4, out_planes=8,
    # kernel_size=3, stride=1, padding=1).
    N, Cin, H, W = 2, 4, 16, 16
    O, KH, KW = 8, 3, 3
    stride, padding, dilation = 1, 1, 1

    x = jax.random.normal(k_x, (N, Cin, H, W), jnp.float32)
    weight = jax.random.normal(k_w, (O, Cin, KH, KW), jnp.float32) * 0.1
    gamma = 1.0 + 0.1 * jax.random.normal(k_g, (O,), jnp.float32)
    beta = 0.1 * jax.random.normal(k_b, (O,), jnp.float32)
    run_mean = 0.1 * jax.random.normal(k_m, (O,), jnp.float32)
    run_var = jnp.abs(jax.random.normal(k_v, (O,), jnp.float32)) + 0.5

    y = basic_conv_forward(x, weight, gamma, beta, run_mean, run_var,
                           stride=stride, padding=padding, dilation=dilation,
                           relu=True, bn=True)
    y = jax.block_until_ready(y)

    # Reference: fold BN into the weights/bias exactly as the kernel does,
    # cast the streamed operands to bf16 (same quantization), conv in f32.
    scale = gamma / jnp.sqrt(run_var + 1e-5)
    bias = beta - run_mean * scale
    xb = x.astype(jnp.bfloat16).astype(jnp.float32)
    wf = (weight * scale[:, None, None, None]).astype(jnp.bfloat16).astype(jnp.float32)
    ref = jax.lax.conv_general_dilated(
        xb, wf, window_strides=(stride, stride),
        padding=[(padding, padding), (padding, padding)],
        rhs_dilation=(dilation, dilation),
        dimension_numbers=("NCHW", "OIHW", "NCHW"))
    ref = jnp.maximum(ref + bias[None, :, None, None], 0.0)

    assert y.shape == (N, O, H, W)
    assert jnp.allclose(y, ref, atol=2e-3, rtol=2e-3), "mismatch vs reference"

    print("KERNEL_OK")
</pallas_src>

<mosaic_0001>
module attributes {stable_mosaic.version = 11 : i64} {
  func.func @_conv_bn_relu_kernel(%arg0: i32, %arg1: memref<1x18x18x4xbf16, #tpu.memory_space<vmem>>, %arg2: memref<9x4x128xbf16, #tpu.memory_space<vmem>>, %arg3: memref<1x128xf32, #tpu.memory_space<vmem>>, %arg4: memref<1x256x128xf32, #tpu.memory_space<vmem>>, %arg5: memref<256x128xf32, #tpu.memory_space<vmem>>) attributes {dimension_semantics = [#tpu.dimension_semantics<parallel>], iteration_bounds = array<i64: 2>, scalar_prefetch = 0 : i64, scratch_operands = 1 : i64, tpu.core_type = #tpu.core_type<tc>, window_params = [{transform_indices = @transform_0, window_bounds = array<i64: 1, 18, 18, 4>}, {pipeline_mode = #tpu.pipeline_mode<synchronous>, transform_indices = @transform_1, window_bounds = array<i64: 9, 4, 128>}, {pipeline_mode = #tpu.pipeline_mode<synchronous>, transform_indices = @transform_2, window_bounds = array<i64: 1, 128>}, {transform_indices = @transform_3, window_bounds = array<i64: 1, 256, 128>}]} {
    %cst = arith.constant 0.000000e+00 : f32
    %0 = vector.broadcast %cst : f32 to vector<256x128xf32>
    %c0 = arith.constant 0 : index
    %c0_0 = arith.constant 0 : index
    %1 = vector.load %arg5[%c0, %c0_0] : memref<256x128xf32, #tpu.memory_space<vmem>>, vector<256x128xf32>
    tpu.vector_store %arg5[%c0, %c0_0], %0 {strides = array<i32>} : memref<256x128xf32, #tpu.memory_space<vmem>>, vector<256x128xf32>,
    %c0_1 = arith.constant 0 : index
    %c0_2 = arith.constant 0 : index
    %c0_3 = arith.constant 0 : index
    %c0_4 = arith.constant 0 : index
    %2 = vector.load %arg1[%c0_1, %c0_2, %c0_3, %c0_4] : memref<1x18x18x4xbf16, #tpu.memory_space<vmem>>, vector<1x16x16x4xbf16>
    %3 = vector.shape_cast %2 : vector<1x16x16x4xbf16> to vector<16x16x4xbf16>
    %4 = vector.shape_cast %3 : vector<16x16x4xbf16> to vector<256x4xbf16>
    %c0_5 = arith.constant 0 : index
    %c0_6 = arith.constant 0 : index
    %c0_7 = arith.constant 0 : index
    %5 = vector.load %arg2[%c0_5, %c0_6, %c0_7] : memref<9x4x128xbf16, #tpu.memory_space<vmem>>, vector<1x4x128xbf16>
    %6 = vector.shape_cast %5 : vector<1x4x128xbf16> to vector<4x128xbf16>
    %c0_8 = arith.constant 0 : index
    %c0_9 = arith.constant 0 : index
    %7 = vector.load %arg5[%c0_8, %c0_9] : memref<256x128xf32, #tpu.memory_space<vmem>>, vector<256x128xf32>
    %cst_10 = arith.constant dense<0.000000e+00> : vector<256x128xf32>
    %8 = tpu.matmul %4, %6, %cst_10 {dimension_numbers = #tpu.dot_dimension_numbers<[1], [0], [0], [1], [0, 0, 1, 1], [], []>} : vector<256x4xbf16>, vector<4x128xbf16>, vector<256x128xf32> -> vector<256x128xf32>
    %9 = arith.addf %7, %8 : vector<256x128xf32>
    %c0_11 = arith.constant 0 : index
    %c0_12 = arith.constant 0 : index
    %10 = vector.load %arg5[%c0_11, %c0_12] : memref<256x128xf32, #tpu.memory_space<vmem>>, vector<256x128xf32>
    tpu.vector_store %arg5[%c0_11, %c0_12], %9 {strides = array<i32>} : memref<256x128xf32, #tpu.memory_space<vmem>>, vector<256x128xf32>,
    %c0_13 = arith.constant 0 : index
    %c0_14 = arith.constant 0 : index
    %c1 = arith.constant 1 : index
    %c0_15 = arith.constant 0 : index
    %11 = vector.load %arg1[%c0_13, %c0_14, %c1, %c0_15] : memref<1x18x18x4xbf16, #tpu.memory_space<vmem>>, vector<1x16x16x4xbf16>
    %12 = vector.shape_cast %11 : vector<1x16x16x4xbf16> to vector<16x16x4xbf16>
    %13 = vector.shape_cast %12 : vector<16x16x4xbf16> to vector<256x4xbf16>
    %c1_16 = arith.constant 1 : index
    %c0_17 = arith.constant 0 : index
    %c0_18 = arith.constant 0 : index
    %14 = vector.load %arg2[%c1_16, %c0_17, %c0_18] : memref<9x4x128xbf16, #tpu.memory_space<vmem>>, vector<1x4x128xbf16>
    %15 = vector.shape_cast %14 : vector<1x4x128xbf16> to vector<4x128xbf16>
    %c0_19 = arith.constant 0 : index
    %c0_20 = arith.constant 0 : index
    %16 = vector.load %arg5[%c0_19, %c0_20] : memref<256x128xf32, #tpu.memory_space<vmem>>, vector<256x128xf32>
    %cst_21 = arith.constant dense<0.000000e+00> : vector<256x128xf32>
    %17 = tpu.matmul %13, %15, %cst_21 {dimension_numbers = #tpu.dot_dimension_numbers<[1], [0], [0], [1], [0, 0, 1, 1], [], []>} : vector<256x4xbf16>, vector<4x128xbf16>, vector<256x128xf32> -> vector<256x128xf32>
    %18 = arith.addf %16, %17 : vector<256x128xf32>
    %c0_22 = arith.constant 0 : index
    %c0_23 = arith.constant 0 : index
    %19 = vector.load %arg5[%c0_22, %c0_23] : memref<256x128xf32, #tpu.memory_space<vmem>>, vector<256x128xf32>
    tpu.vector_store %arg5[%c0_22, %c0_23], %18 {strides = array<i32>} : memref<256x128xf32, #tpu.memory_space<vmem>>, vector<256x128xf32>,
    %c0_24 = arith.constant 0 : index
    %c0_25 = arith.constant 0 : index
    %c2 = arith.constant 2 : index
    %c0_26 = arith.constant 0 : index
    %20 = vector.load %arg1[%c0_24, %c0_25, %c2, %c0_26] : memref<1x18x18x4xbf16, #tpu.memory_space<vmem>>, vector<1x16x16x4xbf16>
    %21 = vector.shape_cast %20 : vector<1x16x16x4xbf16> to vector<16x16x4xbf16>
    %22 = vector.shape_cast %21 : vector<16x16x4xbf16> to vector<256x4xbf16>
    %c2_27 = arith.constant 2 : index
    %c0_28 = arith.constant 0 : index
    %c0_29 = arith.constant 0 : index
    %23 = vector.load %arg2[%c2_27, %c0_28, %c0_29] : memref<9x4x128xbf16, #tpu.memory_space<vmem>>, vector<1x4x128xbf16>
    %24 = vector.shape_cast %23 : vector<1x4x128xbf16> to vector<4x128xbf16>
    %c0_30 = arith.constant 0 : index
    %c0_31 = arith.constant 0 : index
    %25 = vector.load %arg5[%c0_30, %c0_31] : memref<256x128xf32, #tpu.memory_space<vmem>>, vector<256x128xf32>
    %cst_32 = arith.constant dense<0.000000e+00> : vector<256x128xf32>
    %26 = tpu.matmul %22, %24, %cst_32 {dimension_numbers = #tpu.dot_dimension_numbers<[1], [0], [0], [1], [0, 0, 1, 1], [], []>} : vector<256x4xbf16>, vector<4x128xbf16>, vector<256x128xf32> -> vector<256x128xf32>
    %27 = arith.addf %25, %26 : vector<256x128xf32>
    %c0_33 = arith.constant 0 : index
    %c0_34 = arith.constant 0 : index
    %28 = vector.load %arg5[%c0_33, %c0_34] : memref<256x128xf32, #tpu.memory_space<vmem>>, vector<256x128xf32>
    tpu.vector_store %arg5[%c0_33, %c0_34], %27 {strides = array<i32>} : memref<256x128xf32, #tpu.memory_space<vmem>>, vector<256x128xf32>,
    %c0_35 = arith.constant 0 : index
    %c1_36 = arith.constant 1 : index
    %c0_37 = arith.constant 0 : index
    %c0_38 = arith.constant 0 : index
    %29 = vector.load %arg1[%c0_35, %c1_36, %c0_37, %c0_38] : memref<1x18x18x4xbf16, #tpu.memory_space<vmem>>, vector<1x16x16x4xbf16>
    %30 = vector.shape_cast %29 : vector<1x16x16x4xbf16> to vector<16x16x4xbf16>
    %31 = vector.shape_cast %30 : vector<16x16x4xbf16> to vector<256x4xbf16>
    %c3 = arith.constant 3 : index
    %c0_39 = arith.constant 0 : index
    %c0_40 = arith.constant 0 : index
    %32 = vector.load %arg2[%c3, %c0_39, %c0_40] : memref<9x4x128xbf16, #tpu.memory_space<vmem>>, vector<1x4x128xbf16>
    %33 = vector.shape_cast %32 : vector<1x4x128xbf16> to vector<4x128xbf16>
    %c0_41 = arith.constant 0 : index
    %c0_42 = arith.constant 0 : index
    %34 = vector.load %arg5[%c0_41, %c0_42] : memref<256x128xf32, #tpu.memory_space<vmem>>, vector<256x128xf32>
    %cst_43 = arith.constant dense<0.000000e+00> : vector<256x128xf32>
    %35 = tpu.matmul %31, %33, %cst_43 {dimension_numbers = #tpu.dot_dimension_numbers<[1], [0], [0], [1], [0, 0, 1, 1], [], []>} : vector<256x4xbf16>, vector<4x128xbf16>, vector<256x128xf32> -> vector<256x128xf32>
    %36 = arith.addf %34, %35 : vector<256x128xf32>
    %c0_44 = arith.constant 0 : index
    %c0_45 = arith.constant 0 : index
    %37 = vector.load %arg5[%c0_44, %c0_45] : memref<256x128xf32, #tpu.memory_space<vmem>>, vector<256x128xf32>
    tpu.vector_store %arg5[%c0_44, %c0_45], %36 {strides = array<i32>} : memref<256x128xf32, #tpu.memory_space<vmem>>, vector<256x128xf32>,
    %c0_46 = arith.constant 0 : index
    %c1_47 = arith.constant 1 : index
    %c1_48 = arith.constant 1 : index
    %c0_49 = arith.constant 0 : index
    %38 = vector.load %arg1[%c0_46, %c1_47, %c1_48, %c0_49] : memref<1x18x18x4xbf16, #tpu.memory_space<vmem>>, vector<1x16x16x4xbf16>
    %39 = vector.shape_cast %38 : vector<1x16x16x4xbf16> to vector<16x16x4xbf16>
    %40 = vector.shape_cast %39 : vector<16x16x4xbf16> to vector<256x4xbf16>
    %c4 = arith.constant 4 : index
    %c0_50 = arith.constant 0 : index
    %c0_51 = arith.constant 0 : index
    %41 = vector.load %arg2[%c4, %c0_50, %c0_51] : memref<9x4x128xbf16, #tpu.memory_space<vmem>>, vector<1x4x128xbf16>
    %42 = vector.shape_cast %41 : vector<1x4x128xbf16> to vector<4x128xbf16>
    %c0_52 = arith.constant 0 : index
    %c0_53 = arith.constant 0 : index
    %43 = vector.load %arg5[%c0_52, %c0_53] : memref<256x128xf32, #tpu.memory_space<vmem>>, vector<256x128xf32>
    %cst_54 = arith.constant dense<0.000000e+00> : vector<256x128xf32>
    %44 = tpu.matmul %40, %42, %cst_54 {dimension_numbers = #tpu.dot_dimension_numbers<[1], [0], [0], [1], [0, 0, 1, 1], [], []>} : vector<256x4xbf16>, vector<4x128xbf16>, vector<256x128xf32> -> vector<256x128xf32>
    %45 = arith.addf %43, %44 : vector<256x128xf32>
    %c0_55 = arith.constant 0 : index
    %c0_56 = arith.constant 0 : index
    %46 = vector.load %arg5[%c0_55, %c0_56] : memref<256x128xf32, #tpu.memory_space<vmem>>, vector<256x128xf32>
    tpu.vector_store %arg5[%c0_55, %c0_56], %45 {strides = array<i32>} : memref<256x128xf32, #tpu.memory_space<vmem>>, vector<256x128xf32>,
    %c0_57 = arith.constant 0 : index
    %c1_58 = arith.constant 1 : index
    %c2_59 = arith.constant 2 : index
    %c0_60 = arith.constant 0 : index
    %47 = vector.load %arg1[%c0_57, %c1_58, %c2_59, %c0_60] : memref<1x18x18x4xbf16, #tpu.memory_space<vmem>>, vector<1x16x16x4xbf16>
    %48 = vector.shape_cast %47 : vector<1x16x16x4xbf16> to vector<16x16x4xbf16>
    %49 = vector.shape_cast %48 : vector<16x16x4xbf16> to vector<256x4xbf16>
    %c5 = arith.constant 5 : index
    %c0_61 = arith.constant 0 : index
    %c0_62 = arith.constant 0 : index
    %50 = vector.load %arg2[%c5, %c0_61, %c0_62] : memref<9x4x128xbf16, #tpu.memory_space<vmem>>, vector<1x4x128xbf16>
    %51 = vector.shape_cast %50 : vector<1x4x128xbf16> to vector<4x128xbf16>
    %c0_63 = arith.constant 0 : index
    %c0_64 = arith.constant 0 : index
    %52 = vector.load %arg5[%c0_63, %c0_64] : memref<256x128xf32, #tpu.memory_space<vmem>>, vector<256x128xf32>
    %cst_65 = arith.constant dense<0.000000e+00> : vector<256x128xf32>
    %53 = tpu.matmul %49, %51, %cst_65 {dimension_numbers = #tpu.dot_dimension_numbers<[1], [0], [0], [1], [0, 0, 1, 1], [], []>} : vector<256x4xbf16>, vector<4x128xbf16>, vector<256x128xf32> -> vector<256x128xf32>
    %54 = arith.addf %52, %53 : vector<256x128xf32>
    %c0_66 = arith.constant 0 : index
    %c0_67 = arith.constant 0 : index
    %55 = vector.load %arg5[%c0_66, %c0_67] : memref<256x128xf32, #tpu.memory_space<vmem>>, vector<256x128xf32>
    tpu.vector_store %arg5[%c0_66, %c0_67], %54 {strides = array<i32>} : memref<256x128xf32, #tpu.memory_space<vmem>>, vector<256x128xf32>,
    %c0_68 = arith.constant 0 : index
    %c2_69 = arith.constant 2 : index
    %c0_70 = arith.constant 0 : index
    %c0_71 = arith.constant 0 : index
    %56 = vector.load %arg1[%c0_68, %c2_69, %c0_70, %c0_71] : memref<1x18x18x4xbf16, #tpu.memory_space<vmem>>, vector<1x16x16x4xbf16>
    %57 = vector.shape_cast %56 : vector<1x16x16x4xbf16> to vector<16x16x4xbf16>
    %58 = vector.shape_cast %57 : vector<16x16x4xbf16> to vector<256x4xbf16>
    %c6 = arith.constant 6 : index
    %c0_72 = arith.constant 0 : index
    %c0_73 = arith.constant 0 : index
    %59 = vector.load %arg2[%c6, %c0_72, %c0_73] : memref<9x4x128xbf16, #tpu.memory_space<vmem>>, vector<1x4x128xbf16>
    %60 = vector.shape_cast %59 : vector<1x4x128xbf16> to vector<4x128xbf16>
    %c0_74 = arith.constant 0 : index
    %c0_75 = arith.constant 0 : index
    %61 = vector.load %arg5[%c0_74, %c0_75] : memref<256x128xf32, #tpu.memory_space<vmem>>, vector<256x128xf32>
    %cst_76 = arith.constant dense<0.000000e+00> : vector<256x128xf32>
    %62 = tpu.matmul %58, %60, %cst_76 {dimension_numbers = #tpu.dot_dimension_numbers<[1], [0], [0], [1], [0, 0, 1, 1], [], []>} : vector<256x4xbf16>, vector<4x128xbf16>, vector<256x128xf32> -> vector<256x128xf32>
    %63 = arith.addf %61, %62 : vector<256x128xf32>
    %c0_77 = arith.constant 0 : index
    %c0_78 = arith.constant 0 : index
    %64 = vector.load %arg5[%c0_77, %c0_78] : memref<256x128xf32, #tpu.memory_space<vmem>>, vector<256x128xf32>
    tpu.vector_store %arg5[%c0_77, %c0_78], %63 {strides = array<i32>} : memref<256x128xf32, #tpu.memory_space<vmem>>, vector<256x128xf32>,
    %c0_79 = arith.constant 0 : index
    %c2_80 = arith.constant 2 : index
    %c1_81 = arith.constant 1 : index
    %c0_82 = arith.constant 0 : index
    %65 = vector.load %arg1[%c0_79, %c2_80, %c1_81, %c0_82] : memref<1x18x18x4xbf16, #tpu.memory_space<vmem>>, vector<1x16x16x4xbf16>
    %66 = vector.shape_cast %65 : vector<1x16x16x4xbf16> to vector<16x16x4xbf16>
    %67 = vector.shape_cast %66 : vector<16x16x4xbf16> to vector<256x4xbf16>
    %c7 = arith.constant 7 : index
    %c0_83 = arith.constant 0 : index
    %c0_84 = arith.constant 0 : index
    %68 = vector.load %arg2[%c7, %c0_83, %c0_84] : memref<9x4x128xbf16, #tpu.memory_space<vmem>>, vector<1x4x128xbf16>
    %69 = vector.shape_cast %68 : vector<1x4x128xbf16> to vector<4x128xbf16>
    %c0_85 = arith.constant 0 : index
    %c0_86 = arith.constant 0 : index
    %70 = vector.load %arg5[%c0_85, %c0_86] : memref<256x128xf32, #tpu.memory_space<vmem>>, vector<256x128xf32>
    %cst_87 = arith.constant dense<0.000000e+00> : vector<256x128xf32>
    %71 = tpu.matmul %67, %69, %cst_87 {dimension_numbers = #tpu.dot_dimension_numbers<[1], [0], [0], [1], [0, 0, 1, 1], [], []>} : vector<256x4xbf16>, vector<4x128xbf16>, vector<256x128xf32> -> vector<256x128xf32>
    %72 = arith.addf %70, %71 : vector<256x128xf32>
    %c0_88 = arith.constant 0 : index
    %c0_89 = arith.constant 0 : index
    %73 = vector.load %arg5[%c0_88, %c0_89] : memref<256x128xf32, #tpu.memory_space<vmem>>, vector<256x128xf32>
    tpu.vector_store %arg5[%c0_88, %c0_89], %72 {strides = array<i32>} : memref<256x128xf32, #tpu.memory_space<vmem>>, vector<256x128xf32>,
    %c0_90 = arith.constant 0 : index
    %c2_91 = arith.constant 2 : index
    %c2_92 = arith.constant 2 : index
    %c0_93 = arith.constant 0 : index
    %74 = vector.load %arg1[%c0_90, %c2_91, %c2_92, %c0_93] : memref<1x18x18x4xbf16, #tpu.memory_space<vmem>>, vector<1x16x16x4xbf16>
    %75 = vector.shape_cast %74 : vector<1x16x16x4xbf16> to vector<16x16x4xbf16>
    %76 = vector.shape_cast %75 : vector<16x16x4xbf16> to vector<256x4xbf16>
    %c8 = arith.constant 8 : index
    %c0_94 = arith.constant 0 : index
    %c0_95 = arith.constant 0 : index
    %77 = vector.load %arg2[%c8, %c0_94, %c0_95] : memref<9x4x128xbf16, #tpu.memory_space<vmem>>, vector<1x4x128xbf16>
    %78 = vector.shape_cast %77 : vector<1x4x128xbf16> to vector<4x128xbf16>
    %c0_96 = arith.constant 0 : index
    %c0_97 = arith.constant 0 : index
    %79 = vector.load %arg5[%c0_96, %c0_97] : memref<256x128xf32, #tpu.memory_space<vmem>>, vector<256x128xf32>
    %cst_98 = arith.constant dense<0.000000e+00> : vector<256x128xf32>
    %80 = tpu.matmul %76, %78, %cst_98 {dimension_numbers = #tpu.dot_dimension_numbers<[1], [0], [0], [1], [0, 0, 1, 1], [], []>} : vector<256x4xbf16>, vector<4x128xbf16>, vector<256x128xf32> -> vector<256x128xf32>
    %81 = arith.addf %79, %80 : vector<256x128xf32>
    %c0_99 = arith.constant 0 : index
    %c0_100 = arith.constant 0 : index
    %82 = vector.load %arg5[%c0_99, %c0_100] : memref<256x128xf32, #tpu.memory_space<vmem>>, vector<256x128xf32>
    tpu.vector_store %arg5[%c0_99, %c0_100], %81 {strides = array<i32>} : memref<256x128xf32, #tpu.memory_space<vmem>>, vector<256x128xf32>,
    %c0_101 = arith.constant 0 : index
    %c0_102 = arith.constant 0 : index
    %83 = vector.load %arg5[%c0_101, %c0_102] : memref<256x128xf32, #tpu.memory_space<vmem>>, vector<256x128xf32>
    %c0_103 = arith.constant 0 : index
    %c0_104 = arith.constant 0 : index
    %84 = vector.load %arg3[%c0_103, %c0_104] : memref<1x128xf32, #tpu.memory_space<vmem>>, vector<1x128xf32>
    %85 = vector.broadcast %84 : vector<1x128xf32> to vector<256x128xf32>
    %86 = arith.addf %83, %85 : vector<256x128xf32>
    %cst_105 = arith.constant 0.000000e+00 : f32
    %87 = vector.broadcast %cst_105 : f32 to vector<256x128xf32>
    %88 = arith.maximumf %86, %87 : vector<256x128xf32>
    %c0_106 = arith.constant 0 : index
    %c0_107 = arith.constant 0 : index
    %c0_108 = arith.constant 0 : index
    %89 = vector.load %arg4[%c0_106, %c0_107, %c0_108] : memref<1x256x128xf32, #tpu.memory_space<vmem>>, vector<1x256x128xf32>
    %90 = vector.shape_cast %89 : vector<1x256x128xf32> to vector<256x128xf32>
    %91 = vector.shape_cast %88 : vector<256x128xf32> to vector<1x256x128xf32>
    tpu.vector_store %arg4[%c0_106, %c0_107, %c0_108], %91 {strides = array<i32>} : memref<1x256x128xf32, #tpu.memory_space<vmem>>, vector<1x256x128xf32>,
    return
  }
  func.func @transform_0(%arg0: i32) -> (i32, i32, i32, i32) {
    %c0_i32 = arith.constant 0 : i32
    %c0_i32_0 = arith.constant 0 : i32
    %c0_i32_1 = arith.constant 0 : i32
    %c0_i32_2 = arith.constant 0 : i32
    return %arg0, %c0_i32, %c0_i32_0, %c0_i32_1 : i32, i32, i32, i32
  }
  func.func @transform_1(%arg0: i32) -> (i32, i32, i32) {
    %c0_i32 = arith.constant 0 : i32
    %c0_i32_0 = arith.constant 0 : i32
    %c0_i32_1 = arith.constant 0 : i32
    %c0_i32_2 = arith.constant 0 : i32
    return %c0_i32, %c0_i32_0, %c0_i32_1 : i32, i32, i32
  }
  func.func @transform_2(%arg0: i32) -> (i32, i32) {
    %c0_i32 = arith.constant 0 : i32
    %c0_i32_0 = arith.constant 0 : i32
    %c0_i32_1 = arith.constant 0 : i32
    return %c0_i32, %c0_i32_0 : i32, i32
  }
  func.func @transform_3(%arg0: i32) -> (i32, i32, i32) {
    %c0_i32 = arith.constant 0 : i32
    %c0_i32_0 = arith.constant 0 : i32
    %c0_i32_1 = arith.constant 0 : i32
    return %arg0, %c0_i32, %c0_i32_0 : i32, i32, i32
  }
}

</mosaic_0001>

<llo_original>
// kernel: tpu_custom_call.1
$region0: #{tpu_custom_call.1}
  #allocation0 [shape = 'u32[]', space=smem, size = 0x4, offset = 0x4, fixed_abs, tag = 'smem constant byte address 0x4 - core index']
  #allocation1 [shape = 'u32[144,128]{1,0:T(1,128)}', space=vmem, size = 0x12000, scoped, tag = 'internal scratch']
  #allocation2 [shape = 'f32[256,128]{1,0:T(8,128)}', space=vmem, size = 0x20000, scoped, tag = 'scratch operand']
  %s0 = inlined_call_operand.vmem [shape: bf16[2,18,18,4], index: 0, kind: input, shape index: {}]
  %s1 = inlined_call_operand.vmem [shape: bf16[9,4,128], index: 1, kind: input, shape index: {}]
  %s2 = inlined_call_operand.vmem [shape: f32[1,128], index: 2, kind: input, shape index: {}]
  %s3 = inlined_call_operand.hbm [shape: f32[2,256,128], index: 3, kind: output, shape index: {}]
  %s4 = sld [smem:[#allocation0]]
  $region45: #{tpu_custom_call.1} parent=0
    _
  %s6 = ssub.s32 1, %s4
  %s7 = scalar_select 0, %s6, %s4
  $region1: #{tpu_custom_call.1} parent=0
    #allocation3 [shape = 'u8[262144]{0}', space=vmem, size = 0x40000, scoped, tag = 'output window, operand 0']
    #allocation4 [shape = 's32[2]{0}', space=sflag, size = 0x8, scoped, tag = 'scoped memory for tpu_custom_call.1']
    %8 = vsyncpa [#allocation4], 0
    %s9 = scalar_lea.sflag [#allocation4], 1
    %10 = vsyncpa %s9, 0
    loop: start=0, step=1, limit=4
    $region2: #{tpu_custom_call.1} parent=1 // loop_pre_header
      _
    $region3: #{tpu_custom_call.1} parent=1 // loop_header
      %s12 = sphi 0, %s16
      %p13 = scmp.ge.s32.totalorder %s12, 4
      %s22 = sphi 0, %s24
      %s25 = sphi 0, %s22
      %s26 = sphi 0, %s25
      %s42 = sphi 0, %s26
      %s46 = sphi 0, %s46
      %s48 = sphi 0, %s46
      %s49 = sphi 0, %s48
      %s63 = sphi 0, %s49
      %s67 = sphi 0, %s67
      %s69 = sphi 0, %s67
      %s70 = sphi 0, %s69
      %s84 = sphi 0, %s70
      %s90 = sphi 0, %s92
      %s93 = sphi 0, %s90
      %s94 = sphi 0, %s93
      %s110 = sphi 0, %s94
    $region4: #{tpu_custom_call.1} parent=1 // loop_header_branch
      %15 = sbr.rel (%p13) target = $region8
    $region5: #{tpu_custom_call.1} parent=1 // loop_body
      %s17 = ssub.s32 %s12, 1
      %s18 = ssub.s32 %s12, 2
      %s19 = sadd.s32 %s12, 1
      %s20 = ssub.s32 %s12, %s19
      %p21 = scmp.eq.s32.totalorder %s20, 0
      %s23 = sadd.s32 %s22, 1
      %s24 = scalar_select %p21, %s22, %s23
      %p27 = pneg %p21
      %p28 = scmp.eq.s32.totalorder %s12, 1
      %p29 = por %p27, %p28
      %p30 = scmp.ne.s32.totalorder %s22, %s25
      %p31 = scmp.eq.s32.totalorder %s12, 0
      %p32 = por %p30, %p31
      %p33 = scmp.ne.s32.totalorder %s22, %s25
      %p34 = scmp.eq.s32.totalorder %s17, 1
      %p35 = por %p33, %p34
      %p36 = scmp.ne.s32.totalorder %s25, %s26
      %p37 = scmp.eq.s32.totalorder %s17, 0
      %p38 = por %p36, %p37
      %p39 = scmp.ne.s32.totalorder %s25, %s26
      %p40 = scmp.eq.s32.totalorder %s18, 1
      %p41 = por %p39, %p40
      %p43 = scmp.ne.s32.totalorder %s26, %s42
      %p44 = scmp.eq.s32.totalorder %s18, 0
      %p45 = por %p43, %p44
      %s47 = sadd.s32 %s46, 1
      %p50 = scmp.eq.s32.totalorder %s12, 1
      %p51 = scmp.ne.s32.totalorder %s46, %s48
      %p52 = scmp.eq.s32.totalorder %s12, 0
      %p53 = por %p51, %p52
      %p54 = scmp.ne.s32.totalorder %s46, %s48
      %p55 = scmp.eq.s32.totalorder %s17, 1
      %p56 = por %p54, %p55
      %p57 = scmp.ne.s32.totalorder %s48, %s49
      %p58 = scmp.eq.s32.totalorder %s17, 0
      %p59 = por %p57, %p58
      %p60 = scmp.ne.s32.totalorder %s48, %s49
      %p61 = scmp.eq.s32.totalorder %s18, 1
      %p62 = por %p60, %p61
      %p64 = scmp.ne.s32.totalorder %s49, %s63
      %p65 = scmp.eq.s32.totalorder %s18, 0
      %p66 = por %p64, %p65
      %s68 = sadd.s32 %s67, 1
      %p71 = scmp.eq.s32.totalorder %s12, 1
      %p72 = scmp.ne.s32.totalorder %s67, %s69
      %p73 = scmp.eq.s32.totalorder %s12, 0
      %p74 = por %p72, %p73
      %p75 = scmp.ne.s32.totalorder %s67, %s69
      %p76 = scmp.eq.s32.totalorder %s17, 1
      %p77 = por %p75, %p76
      %p78 = scmp.ne.s32.totalorder %s69, %s70
      %p79 = scmp.eq.s32.totalorder %s17, 0
      %p80 = por %p78, %p79
      %p81 = scmp.ne.s32.totalorder %s69, %s70
      %p82 = scmp.eq.s32.totalorder %s18, 1
      %p83 = por %p81, %p82
      %p85 = scmp.ne.s32.totalorder %s70, %s84
      %p86 = scmp.eq.s32.totalorder %s18, 0
      %p87 = por %p85, %p86
      %s88 = ssub.s32 %s12, %s19
      %p89 = scmp.eq.s32.totalorder %s88, 0
      %s91 = sadd.s32 %s90, 1
      %s92 = scalar_select %p89, %s90, %s91
      %p95 = pneg %p89
      %p96 = scmp.eq.s32.totalorder %s12, 1
      %p97 = por %p95, %p96
      %p98 = scmp.ne.s32.totalorder %s90, %s93
      %p99 = scmp.eq.s32.totalorder %s12, 0
      %p100 = por %p98, %p99
      %p101 = scmp.ne.s32.totalorder %s90, %s93
      %p102 = scmp.eq.s32.totalorder %s17, 1
      %p103 = por %p101, %p102
      %p104 = scmp.ne.s32.totalorder %s93, %s94
      %p105 = scmp.eq.s32.totalorder %s17, 0
      %p106 = por %p104, %p105
      %p107 = scmp.ne.s32.totalorder %s93, %s94
      %p108 = scmp.eq.s32.totalorder %s18, 1
      %p109 = por %p107, %p108
      %p111 = scmp.ne.s32.totalorder %s94, %s110
      %p112 = scmp.eq.s32.totalorder %s18, 0
      %p113 = por %p111, %p112
      %p114 = scmp.le.s32.totalorder 1, %s12
      %p115 = scmp.lt.s32.totalorder %s12, 3
      %p116 = pnand %p114, %p115
      %p117 = pneg %p116
      // Predicated region
      $region9: #{tpu_custom_call.1} parent=5 // pred_check
        _
      $region10: #{tpu_custom_call.1} parent=5 // pred_check_branch
        %119 = sbr.rel (%p116) target = $region12
      $region11: #{tpu_custom_call.1} parent=5 // pred_region
        %s120 = ssub.s32 %s12, 1
        // Predicated region
        $region13: #{tpu_custom_call.1} parent=11 // pred_check
          %p121 = pneg %p59
        $region14: #{tpu_custom_call.1} parent=11 // pred_check_branch
          %123 = sbr.rel (%p121) target = $region16
        $region15: #{tpu_custom_call.1} parent=11 // pred_region
          _
        $region16: #{tpu_custom_call.1} parent=11 // pred_fallthru
          _
        // Predicated region
        $region17: #{tpu_custom_call.1} parent=11 // pred_check
          %p124 = pneg %p80
        $region18: #{tpu_custom_call.1} parent=11 // pred_check_branch
          %126 = sbr.rel (%p124) target = $region20
        $region19: #{tpu_custom_call.1} parent=11 // pred_region
          _
        $region20: #{tpu_custom_call.1} parent=11 // pred_fallthru
          _
      $region12: #{tpu_custom_call.1} parent=5 // pred_fallthru
        _
      %p127 = scmp.lt.s32.totalorder %s12, 2
      // Predicated region
      $region21: #{tpu_custom_call.1} parent=5 // pred_check
        %p128 = pneg %p127
      $region22: #{tpu_custom_call.1} parent=5 // pred_check_branch
        %130 = sbr.rel (%p128) target = $region24
      $region23: #{tpu_custom_call.1} parent=5 // pred_region
        // Predicated region
        $region25: #{tpu_custom_call.1} parent=23 // pred_check
          %p131 = pneg %p32
        $region26: #{tpu_custom_call.1} parent=23 // pred_check_branch
          %133 = sbr.rel (%p131) target = $region28
        $region27: #{tpu_custom_call.1} parent=23 // pred_region
          %p134 = scmp.lt.s32.totalorder %s12, 1
          %s135 = scalar_select %p134, %s12, 1
          %s136 = smul.addr %s135, 54
          %s137 = smul.addr %s136, 4
          %s138 = scalar_lea.vmem %s0, %s137
        $region28: #{tpu_custom_call.1} parent=23 // pred_fallthru
          _
      $region24: #{tpu_custom_call.1} parent=5 // pred_fallthru
        _
      %p139 = scmp.le.s32.totalorder 1, %s12
      %p140 = scmp.lt.s32.totalorder %s12, 3
      %p141 = pnand %p139, %p140
      %p142 = pneg %p141
      // Predicated region
      $region29: #{tpu_custom_call.1} parent=5 // pred_check
        _
      $region30: #{tpu_custom_call.1} parent=5 // pred_check_branch
        %144 = sbr.rel (%p141) target = $region32
      $region31: #{tpu_custom_call.1} parent=5 // pred_region
        %s145 = ssub.s32 %s12, 1
        %p146 = scmp.lt.s32.totalorder %s17, 1
        %s147 = scalar_select %p146, %s17, 1
        %s148 = smul.addr %s147, 54
        %s149 = smul.addr %s148, 4
        %s150 = scalar_lea.vmem %s0, %s149
        %p151 = pneg %p38
        %p152 = pneg %p35
        %p153 = pneg %p59
        %p154 = pneg %p56
        %p155 = pneg %p80
        %p156 = pneg %p77
        %p157 = pneg %p106
        %p158 = pneg %p103
        %s159 = sand.u32 %s93, 1
        %s160 = scalar_lea.sflag [#allocation4], %s159
        %s161 = sand.u32 %s93, 1
        %s162 = smul.addr %s161, 256
        %s163 = scalar_lea.vmem [#allocation3], %s162
        %p164 = scmp.lt.s32.totalorder %s17, 1
        %s165 = scalar_select %p164, %s17, 1
        %s166 = smul.addr %s165, 54
        %s167 = smul.addr %s166, 4
        %s168 = scalar_lea.vmem %s0, %s167
        %170 = vst [vmem:[#allocation2] sm:$0xff] 0.0
        %171 = vst [vmem:[#allocation2 + $0x8] sm:$0xff] 0.0
        %172 = vst [vmem:[#allocation2 + $0x10] sm:$0xff] 0.0
        %173 = vst [vmem:[#allocation2 + $0x18] sm:$0xff] 0.0
        %174 = vst [vmem:[#allocation2 + $0x20] sm:$0xff] 0.0
        %175 = vst [vmem:[#allocation2 + $0x28] sm:$0xff] 0.0
        %176 = vst [vmem:[#allocation2 + $0x30] sm:$0xff] 0.0
        %177 = vst [vmem:[#allocation2 + $0x38] sm:$0xff] 0.0
        %178 = vst [vmem:[#allocation2 + $0x40] sm:$0xff] 0.0
        %179 = vst [vmem:[#allocation2 + $0x48] sm:$0xff] 0.0
        %180 = vst [vmem:[#allocation2 + $0x50] sm:$0xff] 0.0
        %181 = vst [vmem:[#allocation2 + $0x58] sm:$0xff] 0.0
        %182 = vst [vmem:[#allocation2 + $0x60] sm:$0xff] 0.0
        %183 = vst [vmem:[#allocation2 + $0x68] sm:$0xff] 0.0
        %184 = vst [vmem:[#allocation2 + $0x70] sm:$0xff] 0.0
        %185 = vst [vmem:[#allocation2 + $0x78] sm:$0xff] 0.0
        %186 = vst [vmem:[#allocation2 + $0x80] sm:$0xff] 0.0
        %187 = vst [vmem:[#allocation2 + $0x88] sm:$0xff] 0.0
        %188 = vst [vmem:[#allocation2 + $0x90] sm:$0xff] 0.0
        %189 = vst [vmem:[#allocation2 + $0x98] sm:$0xff] 0.0
        %190 = vst [vmem:[#allocation2 + $0xa0] sm:$0xff] 0.0
        %191 = vst [vmem:[#allocation2 + $0xa8] sm:$0xff] 0.0
        %192 = vst [vmem:[#allocation2 + $0xb0] sm:$0xff] 0.0
        %193 = vst [vmem:[#allocation2 + $0xb8] sm:$0xff] 0.0
        %194 = vst [vmem:[#allocation2 + $0xc0] sm:$0xff] 0.0
        %195 = vst [vmem:[#allocation2 + $0xc8] sm:$0xff] 0.0
        %196 = vst [vmem:[#allocation2 + $0xd0] sm:$0xff] 0.0
        %197 = vst [vmem:[#allocation2 + $0xd8] sm:$0xff] 0.0
        %198 = vst [vmem:[#allocation2 + $0xe0] sm:$0xff] 0.0
        %199 = vst [vmem:[#allocation2 + $0xe8] sm:$0xff] 0.0
        %200 = vst [vmem:[#allocation2 + $0xf0] sm:$0xff] 0.0
        %201 = vst [vmem:[#allocation2 + $0xf8] sm:$0xff] 0.0
        %v202 = vld [vmem:[%s168] sm:$0xf]
        %v203 = vld [vmem:[%s168 + $0x4] sm:$0xf]
        %v204 = vld [vmem:[%s168 + $0xc] sm:$0xf]
        %v205 = vld [vmem:[%s168 + $0x10] sm:$0xf]
        %v206 = vld [vmem:[%s168 + $0x18] sm:$0xf]
        %v207 = vld [vmem:[%s168 + $0x1c] sm:$0xf]
        %v208 = vld [vmem:[%s168 + $0x24] sm:$0xf]
        %v209 = vld [vmem:[%s168 + $0x28] sm:$0xf]
        %v210 = vld [vmem:[%s168 + $0x30] sm:$0xf]
        %v211 = vld [vmem:[%s168 + $0x34] sm:$0xf]
        %v212 = vld [vmem:[%s168 + $0x3c] sm:$0xf]
        %v213 = vld [vmem:[%s168 + $0x40] sm:$0xf]
        %v214 = vld [vmem:[%s168 + $0x48] sm:$0xf]
        %v215 = vld [vmem:[%s168 + $0x4c] sm:$0xf]
        %v216 = vld [vmem:[%s168 + $0x54] sm:$0xf]
        %v217 = vld [vmem:[%s168 + $0x58] sm:$0xf]
        %v218 = vld [vmem:[%s168 + $0x60] sm:$0xf]
        %v219 = vld [vmem:[%s168 + $0x64] sm:$0xf]
        %v220 = vld [vmem:[%s168 + $0x6c] sm:$0xf]
        %v221 = vld [vmem:[%s168 + $0x70] sm:$0xf]
        %v222 = vld [vmem:[%s168 + $0x78] sm:$0xf]
        %v223 = vld [vmem:[%s168 + $0x7c] sm:$0xf]
        %v224 = vld [vmem:[%s168 + $0x84] sm:$0xf]
        %v225 = vld [vmem:[%s168 + $0x88] sm:$0xf]
        %v226 = vld [vmem:[%s168 + $0x90] sm:$0xf]
        %v227 = vld [vmem:[%s168 + $0x94] sm:$0xf]
        %v228 = vld [vmem:[%s168 + $0x9c] sm:$0xf]
        %v229 = vld [vmem:[%s168 + $0xa0] sm:$0xf]
        %v230 = vld [vmem:[%s168 + $0xa8] sm:$0xf]
        %v231 = vld [vmem:[%s168 + $0xac] sm:$0xf]
        %v232 = vld [vmem:[%s168 + $0xb4] sm:$0xf]
        %v233 = vld [vmem:[%s168 + $0xb8] sm:$0xf]
        %v234 = vld [vmem:[%s1] sm:$0x3]
        %v235 = vld [vmem:[#allocation2] sm:$0xff]
        %v236 = vld [vmem:[#allocation2 + $0x8] sm:$0xff]
        %v237 = vld [vmem:[#allocation2 + $0x10] sm:$0xff]
        %v238 = vld [vmem:[#allocation2 + $0x18] sm:$0xff]
        %v239 = vld [vmem:[#allocation2 + $0x20] sm:$0xff]
        %v240 = vld [vmem:[#allocation2 + $0x28] sm:$0xff]
        %v241 = vld [vmem:[#allocation2 + $0x30] sm:$0xff]
        %v242 = vld [vmem:[#allocation2 + $0x38] sm:$0xff]
        %v243 = vld [vmem:[#allocation2 + $0x40] sm:$0xff]
        %v244 = vld [vmem:[#allocation2 + $0x48] sm:$0xff]
        %v245 = vld [vmem:[#allocation2 + $0x50] sm:$0xff]
        %v246 = vld [vmem:[#allocation2 + $0x58] sm:$0xff]
        %v247 = vld [vmem:[#allocation2 + $0x60] sm:$0xff]
        %v248 = vld [vmem:[#allocation2 + $0x68] sm:$0xff]
        %v249 = vld [vmem:[#allocation2 + $0x70] sm:$0xff]
        %v250 = vld [vmem:[#allocation2 + $0x78] sm:$0xff]
        %v251 = vld [vmem:[#allocation2 + $0x80] sm:$0xff]
        %v252 = vld [vmem:[#allocation2 + $0x88] sm:$0xff]
        %v253 = vld [vmem:[#allocation2 + $0x90] sm:$0xff]
        %v254 = vld [vmem:[#allocation2 + $0x98] sm:$0xff]
        %v255 = vld [vmem:[#allocation2 + $0xa0] sm:$0xff]
        %v256 = vld [vmem:[#allocation2 + $0xa8] sm:$0xff]
        %v257 = vld [vmem:[#allocation2 + $0xb0] sm:$0xff]
        %v258 = vld [vmem:[#allocation2 + $0xb8] sm:$0xff]
        %v259 = vld [vmem:[#allocation2 + $0xc0] sm:$0xff]
        %v260 = vld [vmem:[#allocation2 + $0xc8] sm:$0xff]
        %v261 = vld [vmem:[#allocation2 + $0xd0] sm:$0xff]
        %v262 = vld [vmem:[#allocation2 + $0xd8] sm:$0xff]
        %v263 = vld [vmem:[#allocation2 + $0xe0] sm:$0xff]
        %v264 = vld [vmem:[#allocation2 + $0xe8] sm:$0xff]
        %v265 = vld [vmem:[#allocation2 + $0xf0] sm:$0xff]
        %v266 = vld [vmem:[#allocation2 + $0xf8] sm:$0xff]
        %v299 = vunpack.c.l.b16 %v202
        %v300 = vunpack.c.l.b16 %v203
        %v301 = vunpack.c.l.b16 %v204
        %v302 = vunpack.c.l.b16 %v205
        %v303 = vunpack.c.l.b16 %v206
        %v304 = vunpack.c.l.b16 %v207
        %v305 = vunpack.c.l.b16 %v208
        %v306 = vunpack.c.l.b16 %v209
        %v307 = vunpack.c.l.b16 %v210
        %v308 = vunpack.c.l.b16 %v211
        %v309 = vunpack.c.l.b16 %v212
        %v310 = vunpack.c.l.b16 %v213
        %v311 = vunpack.c.l.b16 %v214
        %v312 = vunpack.c.l.b16 %v215
        %v313 = vunpack.c.l.b16 %v216
        %v314 = vunpack.c.l.b16 %v217
        %v315 = vunpack.c.l.b16 %v218
        %v316 = vunpack.c.l.b16 %v219
        %v317 = vunpack.c.l.b16 %v220
        %v318 = vunpack.c.l.b16 %v221
        %v319 = vunpack.c.l.b16 %v222
        %v320 = vunpack.c.l.b16 %v223
        %v321 = vunpack.c.l.b16 %v224
        %v322 = vunpack.c.l.b16 %v225
        %v323 = vunpack.c.l.b16 %v226
        %v324 = vunpack.c.l.b16 %v227
        %v325 = vunpack.c.l.b16 %v228
        %v326 = vunpack.c.l.b16 %v229
        %v327 = vunpack.c.l.b16 %v230
        %v328 = vunpack.c.l.b16 %v231
        %v329 = vunpack.c.l.b16 %v232
        %v330 = vunpack.c.l.b16 %v233
        %v331 = vpack.c.b16 %v300, %v299
        %v332 = vpack.c.b16 %v302, %v301
        %v333 = vpack.c.b16 %v304, %v303
        %v334 = vpack.c.b16 %v306, %v305
        %v335 = vpack.c.b16 %v308, %v307
        %v336 = vpack.c.b16 %v310, %v309
        %v337 = vpack.c.b16 %v312, %v311
        %v338 = vpack.c.b16 %v314, %v313
        %v339 = vpack.c.b16 %v316, %v315
        %v340 = vpack.c.b16 %v318, %v317
        %v341 = vpack.c.b16 %v320, %v319
        %v342 = vpack.c.b16 %v322, %v321
        %v343 = vpack.c.b16 %v324, %v323
        %v344 = vpack.c.b16 %v326, %v325
        %v345 = vpack.c.b16 %v328, %v327
        %v346 = vpack.c.b16 %v330, %v329
        %vm347 = vcmask 31744
        %v349 = vsel %vm347, %v331, 0
        %v352 = vsel %vm347, %v332, 0
        %v355 = vsel %vm347, %v333, 0
        %v358 = vsel %vm347, %v334, 0
        %v361 = vsel %vm347, %v335, 0
        %v364 = vsel %vm347, %v336, 0
        %v367 = vsel %vm347, %v337, 0
        %v370 = vsel %vm347, %v338, 0
        %v373 = vsel %vm347, %v339, 0
        %v376 = vsel %vm347, %v340, 0
        %v379 = vsel %vm347, %v341, 0
        %v382 = vsel %vm347, %v342, 0
        %v385 = vsel %vm347, %v343, 0
        %v388 = vsel %vm347, %v344, 0
        %v391 = vsel %vm347, %v345, 0
        %v394 = vsel %vm347, %v346, 0
        %vm396 = vcmask 1041408
        %v398 = vsel %vm396, %v234, 0
        %400 = vmatprep.subr.bf16.mxu0 0
        %401 = vmatpush1.bf16.msra.mxu0 0
        %402 = vmatprep.subr.bf16.mxu0 0
        %403 = vmatpush1.bf16.msra.mxu0 0
        %404 = vmatprep.subr.bf16.mxu0 0
        %405 = vmatpush1.bf16.msra.mxu0 0
        %406 = vmatprep.subr.bf16.mxu0 0
        %407 = vmatpush1.bf16.msra.mxu0 0
        %408 = vmatprep.subr.bf16.mxu0 0
        %409 = vmatpush1.bf16.msra.mxu0 0
        %410 = vmatprep.subr.bf16.mxu0 0
        %411 = vmatpush1.bf16.msra.mxu0 0
        %412 = vmatprep.subr.bf16.mxu0 0
        %413 = vmatpush1.bf16.msra.mxu0 0
        %414 = vmatprep.subr.bf16.mxu0 0
        %415 = vmatpush1.bf16.msra.mxu0 %v398
        %416 = vmatprep.subr.bf16.mxu0 0
        %417 = vmatpush2.bf16.msra.mxu0 0
        %418 = vmatprep.subr.bf16.mxu0 0
        %419 = vmatpush2.bf16.msra.mxu0 0
        %420 = vmatprep.subr.bf16.mxu0 0
        %421 = vmatpush2.bf16.msra.mxu0 0
        %422 = vmatprep.subr.bf16.mxu0 0
        %423 = vmatpush2.bf16.msra.mxu0 0
        %424 = vmatprep.subr.bf16.mxu0 0
        %425 = vmatpush2.bf16.msra.mxu0 0
        %426 = vmatprep.subr.bf16.mxu0 0
        %427 = vmatpush2.bf16.msra.mxu0 0
        %428 = vmatprep.subr.bf16.mxu0 0
        %429 = vmatpush2.bf16.msra.mxu0 0
        %430 = vmatprep.subr.bf16.mxu0 0
        %431 = vmatpush2.bf16.msra.mxu0 0
        %432 = vmatprep.mubr.bf16.mxu0 0
        %433 = vmatmul.mubr.bf16.gmra.mxu0 %v349
        %v434 = vpop.f32.mrf.mxu0
        %v435 = vadd.f32 0.0, %v434
        %v436 = vpop.f32.mrf.mxu0
        %v437 = vpop.f32.mrf.mxu0
        %v438 = vadd.f32 0.0, %v437
        %v439 = vpop.f32.mrf.mxu0
        %440 = vmatprep.mubr.bf16.mxu0 0
        %441 = vmatmul.mubr.bf16.gmra.mxu0 %v352
        %v442 = vpop.f32.mrf.mxu0
        %v443 = vadd.f32 0.0, %v442
        %v444 = vpop.f32.mrf.mxu0
        %v445 = vpop.f32.mrf.mxu0
        %v446 = vadd.f32 0.0, %v445
        %v447 = vpop.f32.mrf.mxu0
        %448 = vmatprep.mubr.bf16.mxu0 0
        %449 = vmatmul.mubr.bf16.gmra.mxu0 %v355
        %v450 = vpop.f32.mrf.mxu0
        %v451 = vadd.f32 0.0, %v450
        %v452 = vpop.f32.mrf.mxu0
        %v453 = vpop.f32.mrf.mxu0
        %v454 = vadd.f32 0.0, %v453
        %v455 = vpop.f32.mrf.mxu0
        %456 = vmatprep.mubr.bf16.mxu0 0
        %457 = vmatmul.mubr.bf16.gmra.mxu0 %v358
        %v458 = vpop.f32.mrf.mxu0
        %v459 = vadd.f32 0.0, %v458
        %v460 = vpop.f32.mrf.mxu0
        %v461 = vpop.f32.mrf.mxu0
        %v462 = vadd.f32 0.0, %v461
        %v463 = vpop.f32.mrf.mxu0
        %464 = vmatprep.mubr.bf16.mxu0 0
        %465 = vmatmul.mubr.bf16.gmra.mxu0 %v361
        %v466 = vpop.f32.mrf.mxu0
        %v467 = vadd.f32 0.0, %v466
        %v468 = vpop.f32.mrf.mxu0
        %v469 = vpop.f32.mrf.mxu0
        %v470 = vadd.f32 0.0, %v469
        %v471 = vpop.f32.mrf.mxu0
        %472 = vmatprep.mubr.bf16.mxu0 0
        %473 = vmatmul.mubr.bf16.gmra.mxu0 %v364
        %v474 = vpop.f32.mrf.mxu0
        %v475 = vadd.f32 0.0, %v474
        %v476 = vpop.f32.mrf.mxu0
        %v477 = vpop.f32.mrf.mxu0
        %v478 = vadd.f32 0.0, %v477
        %v479 = vpop.f32.mrf.mxu0
        %480 = vmatprep.mubr.bf16.mxu0 0
        %481 = vmatmul.mubr.bf16.gmra.mxu0 %v367
        %v482 = vpop.f32.mrf.mxu0
        %v483 = vadd.f32 0.0, %v482
        %v484 = vpop.f32.mrf.mxu0
        %v485 = vpop.f32.mrf.mxu0
        %v486 = vadd.f32 0.0, %v485
        %v487 = vpop.f32.mrf.mxu0
        %488 = vmatprep.mubr.bf16.mxu0 0
        %489 = vmatmul.mubr.bf16.gmra.mxu0 %v370
        %v490 = vpop.f32.mrf.mxu0
        %v491 = vadd.f32 0.0, %v490
        %v492 = vpop.f32.mrf.mxu0
        %v493 = vpop.f32.mrf.mxu0
        %v494 = vadd.f32 0.0, %v493
        %v495 = vpop.f32.mrf.mxu0
        %496 = vmatprep.mubr.bf16.mxu0 0
        %497 = vmatmul.mubr.bf16.gmra.mxu0 %v373
        %v498 = vpop.f32.mrf.mxu0
        %v499 = vadd.f32 0.0, %v498
        %v500 = vpop.f32.mrf.mxu0
        %v501 = vpop.f32.mrf.mxu0
        %v502 = vadd.f32 0.0, %v501
        %v503 = vpop.f32.mrf.mxu0
        %504 = vmatprep.mubr.bf16.mxu0 0
        %505 = vmatmul.mubr.bf16.gmra.mxu0 %v376
        %v506 = vpop.f32.mrf.mxu0
        %v507 = vadd.f32 0.0, %v506
        %v508 = vpop.f32.mrf.mxu0
        %v509 = vpop.f32.mrf.mxu0
        %v510 = vadd.f32 0.0, %v509
        %v511 = vpop.f32.mrf.mxu0
        %512 = vmatprep.mubr.bf16.mxu0 0
        %513 = vmatmul.mubr.bf16.gmra.mxu0 %v379
        %v514 = vpop.f32.mrf.mxu0
        %v515 = vadd.f32 0.0, %v514
        %v516 = vpop.f32.mrf.mxu0
        %v517 = vpop.f32.mrf.mxu0
        %v518 = vadd.f32 0.0, %v517
        %v519 = vpop.f32.mrf.mxu0
        %520 = vmatprep.mubr.bf16.mxu0 0
        %521 = vmatmul.mubr.bf16.gmra.mxu0 %v382
        %v522 = vpop.f32.mrf.mxu0
        %v523 = vadd.f32 0.0, %v522
        %v524 = vpop.f32.mrf.mxu0
        %v525 = vpop.f32.mrf.mxu0
        %v526 = vadd.f32 0.0, %v525
        %v527 = vpop.f32.mrf.mxu0
        %528 = vmatprep.mubr.bf16.mxu0 0
        %529 = vmatmul.mubr.bf16.gmra.mxu0 %v385
        %v530 = vpop.f32.mrf.mxu0
        %v531 = vadd.f32 0.0, %v530
        %v532 = vpop.f32.mrf.mxu0
        %v533 = vpop.f32.mrf.mxu0
        %v534 = vadd.f32 0.0, %v533
        %v535 = vpop.f32.mrf.mxu0
        %536 = vmatprep.mubr.bf16.mxu0 0
        %537 = vmatmul.mubr.bf16.gmra.mxu0 %v388
        %v538 = vpop.f32.mrf.mxu0
        %v539 = vadd.f32 0.0, %v538
        %v540 = vpop.f32.mrf.mxu0
        %v541 = vpop.f32.mrf.mxu0
        %v542 = vadd.f32 0.0, %v541
        %v543 = vpop.f32.mrf.mxu0
        %544 = vmatprep.mubr.bf16.mxu0 0
        %545 = vmatmul.mubr.bf16.gmra.mxu0 %v391
        %v546 = vpop.f32.mrf.mxu0
        %v547 = vadd.f32 0.0, %v546
        %v548 = vpop.f32.mrf.mxu0
        %v549 = vpop.f32.mrf.mxu0
        %v550 = vadd.f32 0.0, %v549
        %v551 = vpop.f32.mrf.mxu0
        %552 = vmatprep.mubr.bf16.mxu0 0
        %553 = vmatmul.mubr.bf16.gmra.mxu0 %v394
        %v554 = vpop.f32.mrf.mxu0
        %v555 = vadd.f32 0.0, %v554
        %v556 = vpop.f32.mrf.mxu0
        %v557 = vpop.f32.mrf.mxu0
        %v558 = vadd.f32 0.0, %v557
        %v559 = vpop.f32.mrf.mxu0
        %560 = vdwg.mxu0
        %v561 = vadd.f32 %v235, %v435
        %v562 = vadd.f32 %v236, %v438
        %v563 = vadd.f32 %v237, %v443
        %v564 = vadd.f32 %v238, %v446
        %v565 = vadd.f32 %v239, %v451
        %v566 = vadd.f32 %v240, %v454
        %v567 = vadd.f32 %v241, %v459
        %v568 = vadd.f32 %v242, %v462
        %v569 = vadd.f32 %v243, %v467
        %v570 = vadd.f32 %v244, %v470
        %v571 = vadd.f32 %v245, %v475
        %v572 = vadd.f32 %v246, %v478
        %v573 = vadd.f32 %v247, %v483
        %v574 = vadd.f32 %v248, %v486
        %v575 = vadd.f32 %v249, %v491
        %v576 = vadd.f32 %v250, %v494
        %v577 = vadd.f32 %v251, %v499
        %v578 = vadd.f32 %v252, %v502
        %v579 = vadd.f32 %v253, %v507
        %v580 = vadd.f32 %v254, %v510
        %v581 = vadd.f32 %v255, %v515
        %v582 = vadd.f32 %v256, %v518
        %v583 = vadd.f32 %v257, %v523
        %v584 = vadd.f32 %v258, %v526
        %v585 = vadd.f32 %v259, %v531
        %v586 = vadd.f32 %v260, %v534
        %v587 = vadd.f32 %v261, %v539
        %v588 = vadd.f32 %v262, %v542
        %v589 = vadd.f32 %v263, %v547
        %v590 = vadd.f32 %v264, %v550
        %v591 = vadd.f32 %v265, %v555
        %v592 = vadd.f32 %v266, %v558
        %593 = vst [vmem:[#allocation2] sm:$0xff] %v561
        %594 = vst [vmem:[#allocation2 + $0x8] sm:$0xff] %v562
        %595 = vst [vmem:[#allocation2 + $0x10] sm:$0xff] %v563
        %596 = vst [vmem:[#allocation2 + $0x18] sm:$0xff] %v564
        %597 = vst [vmem:[#allocation2 + $0x20] sm:$0xff] %v565
        %598 = vst [vmem:[#allocation2 + $0x28] sm:$0xff] %v566
        %599 = vst [vmem:[#allocation2 + $0x30] sm:$0xff] %v567
        %600 = vst [vmem:[#allocation2 + $0x38] sm:$0xff] %v568
        %601 = vst [vmem:[#allocation2 + $0x40] sm:$0xff] %v569
        %602 = vst [vmem:[#allocation2 + $0x48] sm:$0xff] %v570
        %603 = vst [vmem:[#allocation2 + $0x50] sm:$0xff] %v571
        %604 = vst [vmem:[#allocation2 + $0x58] sm:$0xff] %v572
        %605 = vst [vmem:[#allocation2 + $0x60] sm:$0xff] %v573
        %606 = vst [vmem:[#allocation2 + $0x68] sm:$0xff] %v574
        %607 = vst [vmem:[#allocation2 + $0x70] sm:$0xff] %v575
        %608 = vst [vmem:[#allocation2 + $0x78] sm:$0xff] %v576
        %609 = vst [vmem:[#allocation2 + $0x80] sm:$0xff] %v577
        %610 = vst [vmem:[#allocation2 + $0x88] sm:$0xff] %v578
        %611 = vst [vmem:[#allocation2 + $0x90] sm:$0xff] %v579
        %612 = vst [vmem:[#allocation2 + $0x98] sm:$0xff] %v580
        %613 = vst [vmem:[#allocation2 + $0xa0] sm:$0xff] %v581
        %614 = vst [vmem:[#allocation2 + $0xa8] sm:$0xff] %v582
        %615 = vst [vmem:[#allocation2 + $0xb0] sm:$0xff] %v583
        %616 = vst [vmem:[#allocation2 + $0xb8] sm:$0xff] %v584
        %617 = vst [vmem:[#allocation2 + $0xc0] sm:$0xff] %v585
        %618 = vst [vmem:[#allocation2 + $0xc8] sm:$0xff] %v586
        %619 = vst [vmem:[#allocation2 + $0xd0] sm:$0xff] %v587
        %620 = vst [vmem:[#allocation2 + $0xd8] sm:$0xff] %v588
        %621 = vst [vmem:[#allocation2 + $0xe0] sm:$0xff] %v589
        %622 = vst [vmem:[#allocation2 + $0xe8] sm:$0xff] %v590
        %623 = vst [vmem:[#allocation2 + $0xf0] sm:$0xff] %v591
        %624 = vst [vmem:[#allocation2 + $0xf8] sm:$0xff] %v592
        %v625 = vld [vmem:[%s168] sm:$0xf]
        %v626 = vld [vmem:[%s168 + $0x4] sm:$0xf]
        %v627 = vld [vmem:[%s168 + $0x8] sm:$0x1]
        %v628 = vld [vmem:[%s168 + $0xc] sm:$0xf]
        %v629 = vld [vmem:[%s168 + $0x10] sm:$0xf]
        %v630 = vld [vmem:[%s168 + $0x14] sm:$0x1]
        %v631 = vld [vmem:[%s168 + $0x18] sm:$0xf]
        %v632 = vld [vmem:[%s168 + $0x1c] sm:$0xf]
        %v633 = vld [vmem:[%s168 + $0x20] sm:$0x1]
        %v634 = vld [vmem:[%s168 + $0x24] sm:$0xf]
        %v635 = vld [vmem:[%s168 + $0x28] sm:$0xf]
        %v636 = vld [vmem:[%s168 + $0x2c] sm:$0x1]
        %v637 = vld [vmem:[%s168 + $0x30] sm:$0xf]
        %v638 = vld [vmem:[%s168 + $0x34] sm:$0xf]
        %v639 = vld [vmem:[%s168 + $0x38] sm:$0x1]
        %v640 = vld [vmem:[%s168 + $0x3c] sm:$0xf]
        %v641 = vld [vmem:[%s168 + $0x40] sm:$0xf]
        %v642 = vld [vmem:[%s168 + $0x44] sm:$0x1]
        %v643 = vld [vmem:[%s168 + $0x48] sm:$0xf]
        %v644 = vld [vmem:[%s168 + $0x4c] sm:$0xf]
        %v645 = vld [vmem:[%s168 + $0x50] sm:$0x1]
        %v646 = vld [vmem:[%s168 + $0x54] sm:$0xf]
        %v647 = vld [vmem:[%s168 + $0x58] sm:$0xf]
        %v648 = vld [vmem:[%s168 + $0x5c] sm:$0x1]
        %v649 = vld [vmem:[%s168 + $0x60] sm:$0xf]
        %v650 = vld [vmem:[%s168 + $0x64] sm:$0xf]
        %v651 = vld [vmem:[%s168 + $0x68] sm:$0x1]
        %v652 = vld [vmem:[%s168 + $0x6c] sm:$0xf]
        %v653 = vld [vmem:[%s168 + $0x70] sm:$0xf]
        %v654 = vld [vmem:[%s168 + $0x74] sm:$0x1]
        %v655 = vld [vmem:[%s168 + $0x78] sm:$0xf]
        %v656 = vld [vmem:[%s168 + $0x7c] sm:$0xf]
        %v657 = vld [vmem:[%s168 + $0x80] sm:$0x1]
        %v658 = vld [vmem:[%s168 + $0x84] sm:$0xf]
        %v659 = vld [vmem:[%s168 + $0x88] sm:$0xf]
        %v660 = vld [vmem:[%s168 + $0x8c] sm:$0x1]
        %v661 = vld [vmem:[%s168 + $0x90] sm:$0xf]
        %v662 = vld [vmem:[%s168 + $0x94] sm:$0xf]
        %v663 = vld [vmem:[%s168 + $0x98] sm:$0x1]
        %v664 = vld [vmem:[%s168 + $0x9c] sm:$0xf]
        %v665 = vld [vmem:[%s168 + $0xa0] sm:$0xf]
        %v666 = vld [vmem:[%s168 + $0xa4] sm:$0x1]
        %v667 = vld [vmem:[%s168 + $0xa8] sm:$0xf]
        %v668 = vld [vmem:[%s168 + $0xac] sm:$0xf]
        %v669 = vld [vmem:[%s168 + $0xb0] sm:$0x1]
        %v670 = vld [vmem:[%s168 + $0xb4] sm:$0xf]
        %v671 = vld [vmem:[%s168 + $0xb8] sm:$0xf]
        %v672 = vld [vmem:[%s168 + $0xbc] sm:$0x1]
        %vm673 = vsmask.f32 3328
        %vm674 = vsmask.f32 7440
        %vm675 = vmor %vm673, %vm674
        %v677 = vshrl.u32 %v625, 16
        %v679 = vrot.slane %v677, 4
        %v680 = vshll.u32 %v625, 16
        %v682 = vrot.slane %v680, 5
        %v683 = vor.u32 %v679, %v682
        %v684 = vrot.slane %v683, 4
        %v686 = vshll.u32 %v626, 16
        %v688 = vrot.slane %v686, 5
        %v689 = vsel %vm675, %v684, %v688
        %v690 = vshrl.u32 %v626, 16
        %v692 = vrot.slane %v690, 4
        %v693 = vor.u32 %v692, %v688
        %v694 = vrot.slane %v693, 4
        %v696 = vshll.u32 %v627, 16
        %v698 = vrot.slane %v696, 5
        %v699 = vsel %vm675, %v694, %v698
        %v701 = vshrl.u32 %v628, 16
        %v703 = vrot.slane %v701, 4
        %v704 = vshll.u32 %v628, 16
        %v706 = vrot.slane %v704, 5
        %v707 = vor.u32 %v703, %v706
        %v708 = vrot.slane %v707, 4
        %v710 = vshll.u32 %v629, 16
        %v712 = vrot.slane %v710, 5
        %v713 = vsel %vm675, %v708, %v712
        %v714 = vshrl.u32 %v629, 16
        %v716 = vrot.slane %v714, 4
        %v717 = vor.u32 %v716, %v712
        %v718 = vrot.slane %v717, 4
        %v720 = vshll.u32 %v630, 16
        %v722 = vrot.slane %v720, 5
        %v723 = vsel %vm675, %v718, %v722
        %v725 = vshrl.u32 %v631, 16
        %v727 = vrot.slane %v725, 4
        %v728 = vshll.u32 %v631, 16
        %v730 = vrot.slane %v728, 5
        %v731 = vor.u32 %v727, %v730
        %v732 = vrot.slane %v731, 4
        %v734 = vshll.u32 %v632, 16
        %v736 = vrot.slane %v734, 5
        %v737 = vsel %vm675, %v732, %v736
        %v738 = vshrl.u32 %v632, 16
        %v740 = vrot.slane %v738, 4
        %v741 = vor.u32 %v740, %v736
        %v742 = vrot.slane %v741, 4
        %v744 = vshll.u32 %v633, 16
        %v746 = vrot.slane %v744, 5
        %v747 = vsel %vm675, %v742, %v746
        %v749 = vshrl.u32 %v634, 16
        %v751 = vrot.slane %v749, 4
        %v752 = vshll.u32 %v634, 16
        %v754 = vrot.slane %v752, 5
        %v755 = vor.u32 %v751, %v754
        %v756 = vrot.slane %v755, 4
        %v758 = vshll.u32 %v635, 16
        %v760 = vrot.slane %v758, 5
        %v761 = vsel %vm675, %v756, %v760
        %v762 = vshrl.u32 %v635, 16
        %v764 = vrot.slane %v762, 4
        %v765 = vor.u32 %v764, %v760
        %v766 = vrot.slane %v765, 4
        %v768 = vshll.u32 %v636, 16
        %v770 = vrot.slane %v768, 5
        %v771 = vsel %vm675, %v766, %v770
        %v773 = vshrl.u32 %v637, 16
        %v775 = vrot.slane %v773, 4
        %v776 = vshll.u32 %v637, 16
        %v778 = vrot.slane %v776, 5
        %v779 = vor.u32 %v775, %v778
        %v780 = vrot.slane %v779, 4
        %v782 = vshll.u32 %v638, 16
        %v784 = vrot.slane %v782, 5
        %v785 = vsel %vm675, %v780, %v784
        %v786 = vshrl.u32 %v638, 16
        %v788 = vrot.slane %v786, 4
        %v789 = vor.u32 %v788, %v784
        %v790 = vrot.slane %v789, 4
        %v792 = vshll.u32 %v639, 16
        %v794 = vrot.slane %v792, 5
        %v795 = vsel %vm675, %v790, %v794
        %v797 = vshrl.u32 %v640, 16
        %v799 = vrot.slane %v797, 4
        %v800 = vshll.u32 %v640, 16
        %v802 = vrot.slane %v800, 5
        %v803 = vor.u32 %v799, %v802
        %v804 = vrot.slane %v803, 4
        %v806 = vshll.u32 %v641, 16
        %v808 = vrot.slane %v806, 5
        %v809 = vsel %vm675, %v804, %v808
        %v810 = vshrl.u32 %v641, 16
        %v812 = vrot.slane %v810, 4
        %v813 = vor.u32 %v812, %v808
        %v814 = vrot.slane %v813, 4
        %v816 = vshll.u32 %v642, 16
        %v818 = vrot.slane %v816, 5
        %v819 = vsel %vm675, %v814, %v818
        %v821 = vshrl.u32 %v643, 16
        %v823 = vrot.slane %v821, 4
        %v824 = vshll.u32 %v643, 16
        %v826 = vrot.slane %v824, 5
        %v827 = vor.u32 %v823, %v826
        %v828 = vrot.slane %v827, 4
        %v830 = vshll.u32 %v644, 16
        %v832 = vrot.slane %v830, 5
        %v833 = vsel %vm675, %v828, %v832
        %v834 = vshrl.u32 %v644, 16
        %v836 = vrot.slane %v834, 4
        %v837 = vor.u32 %v836, %v832
        %v838 = vrot.slane %v837, 4
        %v840 = vshll.u32 %v645, 16
        %v842 = vrot.slane %v840, 5
        %v843 = vsel %vm675, %v838, %v842
        %v845 = vshrl.u32 %v646, 16
        %v847 = vrot.slane %v845, 4
        %v848 = vshll.u32 %v646, 16
        %v850 = vrot.slane %v848, 5
        %v851 = vor.u32 %v847, %v850
        %v852 = vrot.slane %v851, 4
        %v854 = vshll.u32 %v647, 16
        %v856 = vrot.slane %v854, 5
        %v857 = vsel %vm675, %v852, %v856
        %v858 = vshrl.u32 %v647, 16
        %v860 = vrot.slane %v858, 4
        %v861 = vor.u32 %v860, %v856
        %v862 = vrot.slane %v861, 4
        %v864 = vshll.u32 %v648, 16
        %v866 = vrot.slane %v864, 5
        %v867 = vsel %vm675, %v862, %v866
        %v869 = vshrl.u32 %v649, 16
        %v871 = vrot.slane %v869, 4
        %v872 = vshll.u32 %v649, 16
        %v874 = vrot.slane %v872, 5
        %v875 = vor.u32 %v871, %v874
        %v876 = vrot.slane %v875, 4
        %v878 = vshll.u32 %v650, 16
        %v880 = vrot.slane %v878, 5
        %v881 = vsel %vm675, %v876, %v880
        %v882 = vshrl.u32 %v650, 16
        %v884 = vrot.slane %v882, 4
        %v885 = vor.u32 %v884, %v880
        %v886 = vrot.slane %v885, 4
        %v888 = vshll.u32 %v651, 16
        %v890 = vrot.slane %v888, 5
        %v891 = vsel %vm675, %v886, %v890
        %v893 = vshrl.u32 %v652, 16
        %v895 = vrot.slane %v893, 4
        %v896 = vshll.u32 %v652, 16
        %v898 = vrot.slane %v896, 5
        %v899 = vor.u32 %v895, %v898
        %v900 = vrot.slane %v899, 4
        %v902 = vshll.u32 %v653, 16
        %v904 = vrot.slane %v902, 5
        %v905 = vsel %vm675, %v900, %v904
        %v906 = vshrl.u32 %v653, 16
        %v908 = vrot.slane %v906, 4
        %v909 = vor.u32 %v908, %v904
        %v910 = vrot.slane %v909, 4
        %v912 = vshll.u32 %v654, 16
        %v914 = vrot.slane %v912, 5
        %v915 = vsel %vm675, %v910, %v914
        %v917 = vshrl.u32 %v655, 16
        %v919 = vrot.slane %v917, 4
        %v920 = vshll.u32 %v655, 16
        %v922 = vrot.slane %v920, 5
        %v923 = vor.u32 %v919, %v922
        %v924 = vrot.slane %v923, 4
        %v926 = vshll.u32 %v656, 16
        %v928 = vrot.slane %v926, 5
        %v929 = vsel %vm675, %v924, %v928
        %v930 = vshrl.u32 %v656, 16
        %v932 = vrot.slane %v930, 4
        %v933 = vor.u32 %v932, %v928
        %v934 = vrot.slane %v933, 4
        %v936 = vshll.u32 %v657, 16
        %v938 = vrot.slane %v936, 5
        %v939 = vsel %vm675, %v934, %v938
        %v941 = vshrl.u32 %v658, 16
        %v943 = vrot.slane %v941, 4
        %v944 = vshll.u32 %v658, 16
        %v946 = vrot.slane %v944, 5
        %v947 = vor.u32 %v943, %v946
        %v948 = vrot.slane %v947, 4
        %v950 = vshll.u32 %v659, 16
        %v952 = vrot.slane %v950, 5
        %v953 = vsel %vm675, %v948, %v952
        %v954 = vshrl.u32 %v659, 16
        %v956 = vrot.slane %v954, 4
        %v957 = vor.u32 %v956, %v952
        %v958 = vrot.slane %v957, 4
        %v960 = vshll.u32 %v660, 16
        %v962 = vrot.slane %v960, 5
        %v963 = vsel %vm675, %v958, %v962
        %v965 = vshrl.u32 %v661, 16
        %v967 = vrot.slane %v965, 4
        %v968 = vshll.u32 %v661, 16
        %v970 = vrot.slane %v968, 5
        %v971 = vor.u32 %v967, %v970
        %v972 = vrot.slane %v971, 4
        %v974 = vshll.u32 %v662, 16
        %v976 = vrot.slane %v974, 5
        %v977 = vsel %vm675, %v972, %v976
        %v978 = vshrl.u32 %v662, 16
        %v980 = vrot.slane %v978, 4
        %v981 = vor.u32 %v980, %v976
        %v982 = vrot.slane %v981, 4
        %v984 = vshll.u32 %v663, 16
        %v986 = vrot.slane %v984, 5
        %v987 = vsel %vm675, %v982, %v986
        %v989 = vshrl.u32 %v664, 16
        %v991 = vrot.slane %v989, 4
        %v992 = vshll.u32 %v664, 16
        %v994 = vrot.slane %v992, 5
        %v995 = vor.u32 %v991, %v994
        %v996 = vrot.slane %v995, 4
        %v998 = vshll.u32 %v665, 16
        %v1000 = vrot.slane %v998, 5
        %v1001 = vsel %vm675, %v996, %v1000
        %v1002 = vshrl.u32 %v665, 16
        %v1004 = vrot.slane %v1002, 4
        %v1005 = vor.u32 %v1004, %v1000
        %v1006 = vrot.slane %v1005, 4
        %v1008 = vshll.u32 %v666, 16
        %v1010 = vrot.slane %v1008, 5
        %v1011 = vsel %vm675, %v1006, %v1010
        %v1013 = vshrl.u32 %v667, 16
        %v1015 = vrot.slane %v1013, 4
        %v1016 = vshll.u32 %v667, 16
        %v1018 = vrot.slane %v1016, 5
        %v1019 = vor.u32 %v1015, %v1018
        %v1020 = vrot.slane %v1019, 4
        %v1022 = vshll.u32 %v668, 16
        %v1024 = vrot.slane %v1022, 5
        %v1025 = vsel %vm675, %v1020, %v1024
        %v1026 = vshrl.u32 %v668, 16
        %v1028 = vrot.slane %v1026, 4
        %v1029 = vor.u32 %v1028, %v1024
        %v1030 = vrot.slane %v1029, 4
        %v1032 = vshll.u32 %v669, 16
        %v1034 = vrot.slane %v1032, 5
        %v1035 = vsel %vm675, %v1030, %v1034
        %v1037 = vshrl.u32 %v670, 16
        %v1039 = vrot.slane %v1037, 4
        %v1040 = vshll.u32 %v670, 16
        %v1042 = vrot.slane %v1040, 5
        %v1043 = vor.u32 %v1039, %v1042
        %v1044 = vrot.slane %v1043, 4
        %v1046 = vshll.u32 %v671, 16
        %v1048 = vrot.slane %v1046, 5
        %v1049 = vsel %vm675, %v1044, %v1048
        %v1050 = vshrl.u32 %v671, 16
        %v1052 = vrot.slane %v1050, 4
        %v1053 = vor.u32 %v1052, %v1048
        %v1054 = vrot.slane %v1053, 4
        %v1056 = vshll.u32 %v672, 16
        %v1058 = vrot.slane %v1056, 5
        %v1059 = vsel %vm675, %v1054, %v1058
        %s1060 = scalar_lea.vmem %s1, 2
        %v1061 = vld [vmem:[%s1060] sm:$0x3]
        %v1062 = vld [vmem:[#allocation2] sm:$0xff]
        %v1063 = vld [vmem:[#allocation2 + $0x8] sm:$0xff]
        %v1064 = vld [vmem:[#allocation2 + $0x10] sm:$0xff]
        %v1065 = vld [vmem:[#allocation2 + $0x18] sm:$0xff]
        %v1066 = vld [vmem:[#allocation2 + $0x20] sm:$0xff]
        %v1067 = vld [vmem:[#allocation2 + $0x28] sm:$0xff]
        %v1068 = vld [vmem:[#allocation2 + $0x30] sm:$0xff]
        %v1069 = vld [vmem:[#allocation2 + $0x38] sm:$0xff]
        %v1070 = vld [vmem:[#allocation2 + $0x40] sm:$0xff]
        %v1071 = vld [vmem:[#allocation2 + $0x48] sm:$0xff]
        %v1072 = vld [vmem:[#allocation2 + $0x50] sm:$0xff]
        %v1073 = vld [vmem:[#allocation2 + $0x58] sm:$0xff]
        %v1074 = vld [vmem:[#allocation2 + $0x60] sm:$0xff]
        %v1075 = vld [vmem:[#allocation2 + $0x68] sm:$0xff]
        %v1076 = vld [vmem:[#allocation2 + $0x70] sm:$0xff]
        %v1077 = vld [vmem:[#allocation2 + $0x78] sm:$0xff]
        %v1078 = vld [vmem:[#allocation2 + $0x80] sm:$0xff]
        %v1079 = vld [vmem:[#allocation2 + $0x88] sm:$0xff]
        %v1080 = vld [vmem:[#allocation2 + $0x90] sm:$0xff]
        %v1081 = vld [vmem:[#allocation2 + $0x98] sm:$0xff]
        %v1082 = vld [vmem:[#allocation2 + $0xa0] sm:$0xff]
        %v1083 = vld [vmem:[#allocation2 + $0xa8] sm:$0xff]
        %v1084 = vld [vmem:[#allocation2 + $0xb0] sm:$0xff]
        %v1085 = vld [vmem:[#allocation2 + $0xb8] sm:$0xff]
        %v1086 = vld [vmem:[#allocation2 + $0xc0] sm:$0xff]
        %v1087 = vld [vmem:[#allocation2 + $0xc8] sm:$0xff]
        %v1088 = vld [vmem:[#allocation2 + $0xd0] sm:$0xff]
        %v1089 = vld [vmem:[#allocation2 + $0xd8] sm:$0xff]
        %v1090 = vld [vmem:[#allocation2 + $0xe0] sm:$0xff]
        %v1091 = vld [vmem:[#allocation2 + $0xe8] sm:$0xff]
        %v1092 = vld [vmem:[#allocation2 + $0xf0] sm:$0xff]
        %v1093 = vld [vmem:[#allocation2 + $0xf8] sm:$0xff]
        %v1094 = vunpack.c.l.b16 %v689
        %v1095 = vunpack.c.l.b16 %v699
        %v1096 = vunpack.c.l.b16 %v713
        %v1097 = vunpack.c.l.b16 %v723
        %v1098 = vunpack.c.l.b16 %v737
        %v1099 = vunpack.c.l.b16 %v747
        %v1100 = vunpack.c.l.b16 %v761
        %v1101 = vunpack.c.l.b16 %v771
        %v1102 = vunpack.c.l.b16 %v785
        %v1103 = vunpack.c.l.b16 %v795
        %v1104 = vunpack.c.l.b16 %v809
        %v1105 = vunpack.c.l.b16 %v819
        %v1106 = vunpack.c.l.b16 %v833
        %v1107 = vunpack.c.l.b16 %v843
        %v1108 = vunpack.c.l.b16 %v857
        %v1109 = vunpack.c.l.b16 %v867
        %v1110 = vunpack.c.l.b16 %v881
        %v1111 = vunpack.c.l.b16 %v891
        %v1112 = vunpack.c.l.b16 %v905
        %v1113 = vunpack.c.l.b16 %v915
        %v1114 = vunpack.c.l.b16 %v929
        %v1115 = vunpack.c.l.b16 %v939
        %v1116 = vunpack.c.l.b16 %v953
        %v1117 = vunpack.c.l.b16 %v963
        %v1118 = vunpack.c.l.b16 %v977
        %v1119 = vunpack.c.l.b16 %v987
        %v1120 = vunpack.c.l.b16 %v1001
        %v1121 = vunpack.c.l.b16 %v1011
        %v1122 = vunpack.c.l.b16 %v1025
        %v1123 = vunpack.c.l.b16 %v1035
        %v1124 = vunpack.c.l.b16 %v1049
        %v1125 = vunpack.c.l.b16 %v1059
        %v1126 = vpack.c.b16 %v1095, %v1094
        %v1127 = vpack.c.b16 %v1097, %v1096
        %v1128 = vpack.c.b16 %v1099, %v1098
        %v1129 = vpack.c.b16 %v1101, %v1100
        %v1130 = vpack.c.b16 %v1103, %v1102
        %v1131 = vpack.c.b16 %v1105, %v1104
        %v1132 = vpack.c.b16 %v1107, %v1106
        %v1133 = vpack.c.b16 %v1109, %v1108
        %v1134 = vpack.c.b16 %v1111, %v1110
        %v1135 = vpack.c.b16 %v1113, %v1112
        %v1136 = vpack.c.b16 %v1115, %v1114
        %v1137 = vpack.c.b16 %v1117, %v1116
        %v1138 = vpack.c.b16 %v1119, %v1118
        %v1139 = vpack.c.b16 %v1121, %v1120
        %v1140 = vpack.c.b16 %v1123, %v1122
        %v1141 = vpack.c.b16 %v1125, %v1124
        %v1143 = vsel %vm347, %v1126, 0
        %v1146 = vsel %vm347, %v1127, 0
        %v1149 = vsel %vm347, %v1128, 0
        %v1152 = vsel %vm347, %v1129, 0
        %v1155 = vsel %vm347, %v1130, 0
        %v1158 = vsel %vm347, %v1131, 0
        %v1161 = vsel %vm347, %v1132, 0
        %v1164 = vsel %vm347, %v1133, 0
        %v1167 = vsel %vm347, %v1134, 0
        %v1170 = vsel %vm347, %v1135, 0
        %v1173 = vsel %vm347, %v1136, 0
        %v1176 = vsel %vm347, %v1137, 0
        %v1179 = vsel %vm347, %v1138, 0
        %v1182 = vsel %vm347, %v1139, 0
        %v1185 = vsel %vm347, %v1140, 0
        %v1188 = vsel %vm347, %v1141, 0
        %v1191 = vsel %vm396, %v1061, 0
        %1193 = vmatprep.subr.bf16.mxu0 0
        %1194 = vmatpush1.bf16.msra.mxu0 0
        %1195 = vmatprep.subr.bf16.mxu0 0
        %1196 = vmatpush1.bf16.msra.mxu0 0
        %1197 = vmatprep.subr.bf16.mxu0 0
        %1198 = vmatpush1.bf16.msra.mxu0 0
        %1199 = vmatprep.subr.bf16.mxu0 0
        %1200 = vmatpush1.bf16.msra.mxu0 0
        %1201 = vmatprep.subr.bf16.mxu0 0
        %1202 = vmatpush1.bf16.msra.mxu0 0
        %1203 = vmatprep.subr.bf16.mxu0 0
        %1204 = vmatpush1.bf16.msra.mxu0 0
        %1205 = vmatprep.subr.bf16.mxu0 0
        %1206 = vmatpush1.bf16.msra.mxu0 0
        %1207 = vmatprep.subr.bf16.mxu0 0
        %1208 = vmatpush1.bf16.msra.mxu0 %v1191
        %1209 = vmatprep.subr.bf16.mxu0 0
        %1210 = vmatpush2.bf16.msra.mxu0 0
        %1211 = vmatprep.subr.bf16.mxu0 0
        %1212 = vmatpush2.bf16.msra.mxu0 0
        %1213 = vmatprep.subr.bf16.mxu0 0
        %1214 = vmatpush2.bf16.msra.mxu0 0
        %1215 = vmatprep.subr.bf16.mxu0 0
        %1216 = vmatpush2.bf16.msra.mxu0 0
        %1217 = vmatprep.subr.bf16.mxu0 0
        %1218 = vmatpush2.bf16.msra.mxu0 0
        %1219 = vmatprep.subr.bf16.mxu0 0
        %1220 = vmatpush2.bf16.msra.mxu0 0
        %1221 = vmatprep.subr.bf16.mxu0 0
        %1222 = vmatpush2.bf16.msra.mxu0 0
        %1223 = vmatprep.subr.bf16.mxu0 0
        %1224 = vmatpush2.bf16.msra.mxu0 0
        %1225 = vmatprep.mubr.bf16.mxu0 0
        %1226 = vmatmul.mubr.bf16.gmra.mxu0 %v1143
        %v1227 = vpop.f32.mrf.mxu0
        %v1228 = vadd.f32 0.0, %v1227
        %v1229 = vpop.f32.mrf.mxu0
        %v1230 = vpop.f32.mrf.mxu0
        %v1231 = vadd.f32 0.0, %v1230
        %v1232 = vpop.f32.mrf.mxu0
        %1233 = vmatprep.mubr.bf16.mxu0 0
        %1234 = vmatmul.mubr.bf16.gmra.mxu0 %v1146
        %v1235 = vpop.f32.mrf.mxu0
        %v1236 = vadd.f32 0.0, %v1235
        %v1237 = vpop.f32.mrf.mxu0
        %v1238 = vpop.f32.mrf.mxu0
        %v1239 = vadd.f32 0.0, %v1238
        %v1240 = vpop.f32.mrf.mxu0
        %1241 = vmatprep.mubr.bf16.mxu0 0
        %1242 = vmatmul.mubr.bf16.gmra.mxu0 %v1149
        %v1243 = vpop.f32.mrf.mxu0
        %v1244 = vadd.f32 0.0, %v1243
        %v1245 = vpop.f32.mrf.mxu0
        %v1246 = vpop.f32.mrf.mxu0
        %v1247 = vadd.f32 0.0, %v1246
        %v1248 = vpop.f32.mrf.mxu0
        %1249 = vmatprep.mubr.bf16.mxu0 0
        %1250 = vmatmul.mubr.bf16.gmra.mxu0 %v1152
        %v1251 = vpop.f32.mrf.mxu0
        %v1252 = vadd.f32 0.0, %v1251
        %v1253 = vpop.f32.mrf.mxu0
        %v1254 = vpop.f32.mrf.mxu0
        %v1255 = vadd.f32 0.0, %v1254
        %v1256 = vpop.f32.mrf.mxu0
        %1257 = vmatprep.mubr.bf16.mxu0 0
        %1258 = vmatmul.mubr.bf16.gmra.mxu0 %v1155
        %v1259 = vpop.f32.mrf.mxu0
        %v1260 = vadd.f32 0.0, %v1259
        %v1261 = vpop.f32.mrf.mxu0
        %v1262 = vpop.f32.mrf.mxu0
        %v1263 = vadd.f32 0.0, %v1262
        %v1264 = vpop.f32.mrf.mxu0
        %1265 = vmatprep.mubr.bf16.mxu0 0
        %1266 = vmatmul.mubr.bf16.gmra.mxu0 %v1158
        %v1267 = vpop.f32.mrf.mxu0
        %v1268 = vadd.f32 0.0, %v1267
        %v1269 = vpop.f32.mrf.mxu0
        %v1270 = vpop.f32.mrf.mxu0
        %v1271 = vadd.f32 0.0, %v1270
        %v1272 = vpop.f32.mrf.mxu0
        %1273 = vmatprep.mubr.bf16.mxu0 0
        %1274 = vmatmul.mubr.bf16.gmra.mxu0 %v1161
        %v1275 = vpop.f32.mrf.mxu0
        %v1276 = vadd.f32 0.0, %v1275
        %v1277 = vpop.f32.mrf.mxu0
        %v1278 = vpop.f32.mrf.mxu0
        %v1279 = vadd.f32 0.0, %v1278
        %v1280 = vpop.f32.mrf.mxu0
        %1281 = vmatprep.mubr.bf16.mxu0 0
        %1282 = vmatmul.mubr.bf16.gmra.mxu0 %v1164
        %v1283 = vpop.f32.mrf.mxu0
        %v1284 = vadd.f32 0.0, %v1283
        %v1285 = vpop.f32.mrf.mxu0
        %v1286 = vpop.f32.mrf.mxu0
        %v1287 = vadd.f32 0.0, %v1286
        %v1288 = vpop.f32.mrf.mxu0
        %1289 = vmatprep.mubr.bf16.mxu0 0
        %1290 = vmatmul.mubr.bf16.gmra.mxu0 %v1167
        %v1291 = vpop.f32.mrf.mxu0
        %v1292 = vadd.f32 0.0, %v1291
        %v1293 = vpop.f32.mrf.mxu0
        %v1294 = vpop.f32.mrf.mxu0
        %v1295 = vadd.f32 0.0, %v1294
        %v1296 = vpop.f32.mrf.mxu0
        %1297 = vmatprep.mubr.bf16.mxu0 0
        %1298 = vmatmul.mubr.bf16.gmra.mxu0 %v1170
        %v1299 = vpop.f32.mrf.mxu0
        %v1300 = vadd.f32 0.0, %v1299
        %v1301 = vpop.f32.mrf.mxu0
        %v1302 = vpop.f32.mrf.mxu0
        %v1303 = vadd.f32 0.0, %v1302
        %v1304 = vpop.f32.mrf.mxu0
        %1305 = vmatprep.mubr.bf16.mxu0 0
        %1306 = vmatmul.mubr.bf16.gmra.mxu0 %v1173
        %v1307 = vpop.f32.mrf.mxu0
        %v1308 = vadd.f32 0.0, %v1307
        %v1309 = vpop.f32.mrf.mxu0
        %v1310 = vpop.f32.mrf.mxu0
        %v1311 = vadd.f32 0.0, %v1310
        %v1312 = vpop.f32.mrf.mxu0
        %1313 = vmatprep.mubr.bf16.mxu0 0
        %1314 = vmatmul.mubr.bf16.gmra.mxu0 %v1176
        %v1315 = vpop.f32.mrf.mxu0
        %v1316 = vadd.f32 0.0, %v1315
        %v1317 = vpop.f32.mrf.mxu0
        %v1318 = vpop.f32.mrf.mxu0
        %v1319 = vadd.f32 0.0, %v1318
        %v1320 = vpop.f32.mrf.mxu0
        %1321 = vmatprep.mubr.bf16.mxu0 0
        %1322 = vmatmul.mubr.bf16.gmra.mxu0 %v1179
        %v1323 = vpop.f32.mrf.mxu0
        %v1324 = vadd.f32 0.0, %v1323
        %v1325 = vpop.f32.mrf.mxu0
        %v1326 = vpop.f32.mrf.mxu0
        %v1327 = vadd.f32 0.0, %v1326
        %v1328 = vpop.f32.mrf.mxu0
        %1329 = vmatprep.mubr.bf16.mxu0 0
        %1330 = vmatmul.mubr.bf16.gmra.mxu0 %v1182
        %v1331 = vpop.f32.mrf.mxu0
        %v1332 = vadd.f32 0.0, %v1331
        %v1333 = vpop.f32.mrf.mxu0
        %v1334 = vpop.f32.mrf.mxu0
        %v1335 = vadd.f32 0.0, %v1334
        %v1336 = vpop.f32.mrf.mxu0
        %1337 = vmatprep.mubr.bf16.mxu0 0
        %1338 = vmatmul.mubr.bf16.gmra.mxu0 %v1185
        %v1339 = vpop.f32.mrf.mxu0
        %v1340 = vadd.f32 0.0, %v1339
        %v1341 = vpop.f32.mrf.mxu0
        %v1342 = vpop.f32.mrf.mxu0
        %v1343 = vadd.f32 0.0, %v1342
        %v1344 = vpop.f32.mrf.mxu0
        %1345 = vmatprep.mubr.bf16.mxu0 0
        %1346 = vmatmul.mubr.bf16.gmra.mxu0 %v1188
        %v1347 = vpop.f32.mrf.mxu0
        %v1348 = vadd.f32 0.0, %v1347
        %v1349 = vpop.f32.mrf.mxu0
        %v1350 = vpop.f32.mrf.mxu0
        %v1351 = vadd.f32 0.0, %v1350
        %v1352 = vpop.f32.mrf.mxu0
        %1353 = vdwg.mxu0
        %v1354 = vadd.f32 %v1062, %v1228
        %v1355 = vadd.f32 %v1063, %v1231
        %v1356 = vadd.f32 %v1064, %v1236
        %v1357 = vadd.f32 %v1065, %v1239
        %v1358 = vadd.f32 %v1066, %v1244
        %v1359 = vadd.f32 %v1067, %v1247
        %v1360 = vadd.f32 %v1068, %v1252
        %v1361 = vadd.f32 %v1069, %v1255
        %v1362 = vadd.f32 %v1070, %v1260
        %v1363 = vadd.f32 %v1071, %v1263
        %v1364 = vadd.f32 %v1072, %v1268
        %v1365 = vadd.f32 %v1073, %v1271
        %v1366 = vadd.f32 %v1074, %v1276
        %v1367 = vadd.f32 %v1075, %v1279
        %v1368 = vadd.f32 %v1076, %v1284
        %v1369 = vadd.f32 %v1077, %v1287
        %v1370 = vadd.f32 %v1078, %v1292
        %v1371 = vadd.f32 %v1079, %v1295
        %v1372 = vadd.f32 %v1080, %v1300
        %v1373 = vadd.f32 %v1081, %v1303
        %v1374 = vadd.f32 %v1082, %v1308
        %v1375 = vadd.f32 %v1083, %v1311
        %v1376 = vadd.f32 %v1084, %v1316
        %v1377 = vadd.f32 %v1085, %v1319
        %v1378 = vadd.f32 %v1086, %v1324
        %v1379 = vadd.f32 %v1087, %v1327
        %v1380 = vadd.f32 %v1088, %v1332
        %v1381 = vadd.f32 %v1089, %v1335
        %v1382 = vadd.f32 %v1090, %v1340
        %v1383 = vadd.f32 %v1091, %v1343
        %v1384 = vadd.f32 %v1092, %v1348
        %v1385 = vadd.f32 %v1093, %v1351
        %1386 = vst [vmem:[#allocation2] sm:$0xff] %v1354
        %1387 = vst [vmem:[#allocation2 + $0x8] sm:$0xff] %v1355
        %1388 = vst [vmem:[#allocation2 + $0x10] sm:$0xff] %v1356
        %1389 = vst [vmem:[#allocation2 + $0x18] sm:$0xff] %v1357
        %1390 = vst [vmem:[#allocation2 + $0x20] sm:$0xff] %v1358
        %1391 = vst [vmem:[#allocation2 + $0x28] sm:$0xff] %v1359
        %1392 = vst [vmem:[#allocation2 + $0x30] sm:$0xff] %v1360
        %1393 = vst [vmem:[#allocation2 + $0x38] sm:$0xff] %v1361
        %1394 = vst [vmem:[#allocation2 + $0x40] sm:$0xff] %v1362
        %1395 = vst [vmem:[#allocation2 + $0x48] sm:$0xff] %v1363
        %1396 = vst [vmem:[#allocation2 + $0x50] sm:$0xff] %v1364
        %1397 = vst [vmem:[#allocation2 + $0x58] sm:$0xff] %v1365
        %1398 = vst [vmem:[#allocation2 + $0x60] sm:$0xff] %v1366
        %1399 = vst [vmem:[#allocation2 + $0x68] sm:$0xff] %v1367
        %1400 = vst [vmem:[#allocation2 + $0x70] sm:$0xff] %v1368
        %1401 = vst [vmem:[#allocation2 + $0x78] sm:$0xff] %v1369
        %1402 = vst [vmem:[#allocation2 + $0x80] sm:$0xff] %v1370
        %1403 = vst [vmem:[#allocation2 + $0x88] sm:$0xff] %v1371
        %1404 = vst [vmem:[#allocation2 + $0x90] sm:$0xff] %v1372
        %1405 = vst [vmem:[#allocation2 + $0x98] sm:$0xff] %v1373
        %1406 = vst [vmem:[#allocation2 + $0xa0] sm:$0xff] %v1374
        %1407 = vst [vmem:[#allocation2 + $0xa8] sm:$0xff] %v1375
        %1408 = vst [vmem:[#allocation2 + $0xb0] sm:$0xff] %v1376
        %1409 = vst [vmem:[#allocation2 + $0xb8] sm:$0xff] %v1377
        %1410 = vst [vmem:[#allocation2 + $0xc0] sm:$0xff] %v1378
        %1411 = vst [vmem:[#allocation2 + $0xc8] sm:$0xff] %v1379
        %1412 = vst [vmem:[#allocation2 + $0xd0] sm:$0xff] %v1380
        %1413 = vst [vmem:[#allocation2 + $0xd8] sm:$0xff] %v1381
        %1414 = vst [vmem:[#allocation2 + $0xe0] sm:$0xff] %v1382
        %1415 = vst [vmem:[#allocation2 + $0xe8] sm:$0xff] %v1383
        %1416 = vst [vmem:[#allocation2 + $0xf0] sm:$0xff] %v1384
        %1417 = vst [vmem:[#allocation2 + $0xf8] sm:$0xff] %v1385
        %v1418 = vld [vmem:[%s168] sm:$0xe]
        %v1419 = vld [vmem:[%s168 + $0x4] sm:$0xf]
        %v1420 = vld [vmem:[%s168 + $0x8] sm:$0x1]
        %v1421 = vld [vmem:[%s168 + $0xc] sm:$0xe]
        %v1422 = vld [vmem:[%s168 + $0x10] sm:$0xf]
        %v1423 = vld [vmem:[%s168 + $0x14] sm:$0x1]
        %v1424 = vld [vmem:[%s168 + $0x18] sm:$0xe]
        %v1425 = vld [vmem:[%s168 + $0x1c] sm:$0xf]
        %v1426 = vld [vmem:[%s168 + $0x20] sm:$0x1]
        %v1427 = vld [vmem:[%s168 + $0x24] sm:$0xe]
        %v1428 = vld [vmem:[%s168 + $0x28] sm:$0xf]
        %v1429 = vld [vmem:[%s168 + $0x2c] sm:$0x1]
        %v1430 = vld [vmem:[%s168 + $0x30] sm:$0xe]
        %v1431 = vld [vmem:[%s168 + $0x34] sm:$0xf]
        %v1432 = vld [vmem:[%s168 + $0x38] sm:$0x1]
        %v1433 = vld [vmem:[%s168 + $0x3c] sm:$0xe]
        %v1434 = vld [vmem:[%s168 + $0x40] sm:$0xf]
        %v1435 = vld [vmem:[%s168 + $0x44] sm:$0x1]
        %v1436 = vld [vmem:[%s168 + $0x48] sm:$0xe]
        %v1437 = vld [vmem:[%s168 + $0x4c] sm:$0xf]
        %v1438 = vld [vmem:[%s168 + $0x50] sm:$0x1]
        %v1439 = vld [vmem:[%s168 + $0x54] sm:$0xe]
        %v1440 = vld [vmem:[%s168 + $0x58] sm:$0xf]
        %v1441 = vld [vmem:[%s168 + $0x5c] sm:$0x1]
        %v1442 = vld [vmem:[%s168 + $0x60] sm:$0xe]
        %v1443 = vld [vmem:[%s168 + $0x64] sm:$0xf]
        %v1444 = vld [vmem:[%s168 + $0x68] sm:$0x1]
        %v1445 = vld [vmem:[%s168 + $0x6c] sm:$0xe]
        %v1446 = vld [vmem:[%s168 + $0x70] sm:$0xf]
        %v1447 = vld [vmem:[%s168 + $0x74] sm:$0x1]
        %v1448 = vld [vmem:[%s168 + $0x78] sm:$0xe]
        %v1449 = vld [vmem:[%s168 + $0x7c] sm:$0xf]
        %v1450 = vld [vmem:[%s168 + $0x80] sm:$0x1]
        %v1451 = vld [vmem:[%s168 + $0x84] sm:$0xe]
        %v1452 = vld [vmem:[%s168 + $0x88] sm:$0xf]
        %v1453 = vld [vmem:[%s168 + $0x8c] sm:$0x1]
        %v1454 = vld [vmem:[%s168 + $0x90] sm:$0xe]
        %v1455 = vld [vmem:[%s168 + $0x94] sm:$0xf]
        %v1456 = vld [vmem:[%s168 + $0x98] sm:$0x1]
        %v1457 = vld [vmem:[%s168 + $0x9c] sm:$0xe]
        %v1458 = vld [vmem:[%s168 + $0xa0] sm:$0xf]
        %v1459 = vld [vmem:[%s168 + $0xa4] sm:$0x1]
        %v1460 = vld [vmem:[%s168 + $0xa8] sm:$0xe]
        %v1461 = vld [vmem:[%s168 + $0xac] sm:$0xf]
        %v1462 = vld [vmem:[%s168 + $0xb0] sm:$0x1]
        %v1463 = vld [vmem:[%s168 + $0xb4] sm:$0xe]
        %v1464 = vld [vmem:[%s168 + $0xb8] sm:$0xf]
        %v1465 = vld [vmem:[%s168 + $0xbc] sm:$0x1]
        %vm1514 = vcmask 1042432
        %vm1515 = vcmask 1046532
        %vm1516 = vmor %vm1514, %vm1515
        %v1517 = vrot.slane %v1418, 5
        %v1518 = vrot.slane %v1517, 4
        %v1519 = vrot.slane %v1419, 5
        %v1520 = vsel %vm1516, %v1518, %v1519
        %v1521 = vrot.slane %v1519, 4
        %v1522 = vrot.slane %v1420, 5
        %v1523 = vsel %vm1516, %v1521, %v1522
        %v1524 = vrot.slane %v1421, 5
        %v1525 = vrot.slane %v1524, 4
        %v1526 = vrot.slane %v1422, 5
        %v1527 = vsel %vm1516, %v1525, %v1526
        %v1528 = vrot.slane %v1526, 4
        %v1529 = vrot.slane %v1423, 5
        %v1530 = vsel %vm1516, %v1528, %v1529
        %v1531 = vrot.slane %v1424, 5
        %v1532 = vrot.slane %v1531, 4
        %v1533 = vrot.slane %v1425, 5
        %v1534 = vsel %vm1516, %v1532, %v1533
        %v1535 = vrot.slane %v1533, 4
        %v1536 = vrot.slane %v1426, 5
        %v1537 = vsel %vm1516, %v1535, %v1536
        %v1538 = vrot.slane %v1427, 5
        %v1539 = vrot.slane %v1538, 4
        %v1540 = vrot.slane %v1428, 5
        %v1541 = vsel %vm1516, %v1539, %v1540
        %v1542 = vrot.slane %v1540, 4
        %v1543 = vrot.slane %v1429, 5
        %v1544 = vsel %vm1516, %v1542, %v1543
        %v1545 = vrot.slane %v1430, 5
        %v1546 = vrot.slane %v1545, 4
        %v1547 = vrot.slane %v1431, 5
        %v1548 = vsel %vm1516, %v1546, %v1547
        %v1549 = vrot.slane %v1547, 4
        %v1550 = vrot.slane %v1432, 5
        %v1551 = vsel %vm1516, %v1549, %v1550
        %v1552 = vrot.slane %v1433, 5
        %v1553 = vrot.slane %v1552, 4
        %v1554 = vrot.slane %v1434, 5
        %v1555 = vsel %vm1516, %v1553, %v1554
        %v1556 = vrot.slane %v1554, 4
        %v1557 = vrot.slane %v1435, 5
        %v1558 = vsel %vm1516, %v1556, %v1557
        %v1559 = vrot.slane %v1436, 5
        %v1560 = vrot.slane %v1559, 4
        %v1561 = vrot.slane %v1437, 5
        %v1562 = vsel %vm1516, %v1560, %v1561
        %v1563 = vrot.slane %v1561, 4
        %v1564 = vrot.slane %v1438, 5
        %v1565 = vsel %vm1516, %v1563, %v1564
        %v1566 = vrot.slane %v1439, 5
        %v1567 = vrot.slane %v1566, 4
        %v1568 = vrot.slane %v1440, 5
        %v1569 = vsel %vm1516, %v1567, %v1568
        %v1570 = vrot.slane %v1568, 4
        %v1571 = vrot.slane %v1441, 5
        %v1572 = vsel %vm1516, %v1570, %v1571
        %v1573 = vrot.slane %v1442, 5
        %v1574 = vrot.slane %v1573, 4
        %v1575 = vrot.slane %v1443, 5
        %v1576 = vsel %vm1516, %v1574, %v1575
        %v1577 = vrot.slane %v1575, 4
        %v1578 = vrot.slane %v1444, 5
        %v1579 = vsel %vm1516, %v1577, %v1578
        %v1580 = vrot.slane %v1445, 5
        %v1581 = vrot.slane %v1580, 4
        %v1582 = vrot.slane %v1446, 5
        %v1583 = vsel %vm1516, %v1581, %v1582
        %v1584 = vrot.slane %v1582, 4
        %v1585 = vrot.slane %v1447, 5
        %v1586 = vsel %vm1516, %v1584, %v1585
        %v1587 = vrot.slane %v1448, 5
        %v1588 = vrot.slane %v1587, 4
        %v1589 = vrot.slane %v1449, 5
        %v1590 = vsel %vm1516, %v1588, %v1589
        %v1591 = vrot.slane %v1589, 4
        %v1592 = vrot.slane %v1450, 5
        %v1593 = vsel %vm1516, %v1591, %v1592
        %v1594 = vrot.slane %v1451, 5
        %v1595 = vrot.slane %v1594, 4
        %v1596 = vrot.slane %v1452, 5
        %v1597 = vsel %vm1516, %v1595, %v1596
        %v1598 = vrot.slane %v1596, 4
        %v1599 = vrot.slane %v1453, 5
        %v1600 = vsel %vm1516, %v1598, %v1599
        %v1601 = vrot.slane %v1454, 5
        %v1602 = vrot.slane %v1601, 4
        %v1603 = vrot.slane %v1455, 5
        %v1604 = vsel %vm1516, %v1602, %v1603
        %v1605 = vrot.slane %v1603, 4
        %v1606 = vrot.slane %v1456, 5
        %v1607 = vsel %vm1516, %v1605, %v1606
        %v1608 = vrot.slane %v1457, 5
        %v1609 = vrot.slane %v1608, 4
        %v1610 = vrot.slane %v1458, 5
        %v1611 = vsel %vm1516, %v1609, %v1610
        %v1612 = vrot.slane %v1610, 4
        %v1613 = vrot.slane %v1459, 5
        %v1614 = vsel %vm1516, %v1612, %v1613
        %v1615 = vrot.slane %v1460, 5
        %v1616 = vrot.slane %v1615, 4
        %v1617 = vrot.slane %v1461, 5
        %v1618 = vsel %vm1516, %v1616, %v1617
        %v1619 = vrot.slane %v1617, 4
        %v1620 = vrot.slane %v1462, 5
        %v1621 = vsel %vm1516, %v1619, %v1620
        %v1622 = vrot.slane %v1463, 5
        %v1623 = vrot.slane %v1622, 4
        %v1624 = vrot.slane %v1464, 5
        %v1625 = vsel %vm1516, %v1623, %v1624
        %v1626 = vrot.slane %v1624, 4
        %v1627 = vrot.slane %v1465, 5
        %v1628 = vsel %vm1516, %v1626, %v1627
        %s1629 = scalar_lea.vmem %s1, 4
        %v1630 = vld [vmem:[%s1629] sm:$0x3]
        %v1631 = vld [vmem:[#allocation2] sm:$0xff]
        %v1632 = vld [vmem:[#allocation2 + $0x8] sm:$0xff]
        %v1633 = vld [vmem:[#allocation2 + $0x10] sm:$0xff]
        %v1634 = vld [vmem:[#allocation2 + $0x18] sm:$0xff]
        %v1635 = vld [vmem:[#allocation2 + $0x20] sm:$0xff]
        %v1636 = vld [vmem:[#allocation2 + $0x28] sm:$0xff]
        %v1637 = vld [vmem:[#allocation2 + $0x30] sm:$0xff]
        %v1638 = vld [vmem:[#allocation2 + $0x38] sm:$0xff]
        %v1639 = vld [vmem:[#allocation2 + $0x40] sm:$0xff]
        %v1640 = vld [vmem:[#allocation2 + $0x48] sm:$0xff]
        %v1641 = vld [vmem:[#allocation2 + $0x50] sm:$0xff]
        %v1642 = vld [vmem:[#allocation2 + $0x58] sm:$0xff]
        %v1643 = vld [vmem:[#allocation2 + $0x60] sm:$0xff]
        %v1644 = vld [vmem:[#allocation2 + $0x68] sm:$0xff]
        %v1645 = vld [vmem:[#allocation2 + $0x70] sm:$0xff]
        %v1646 = vld [vmem:[#allocation2 + $0x78] sm:$0xff]
        %v1647 = vld [vmem:[#allocation2 + $0x80] sm:$0xff]
        %v1648 = vld [vmem:[#allocation2 + $0x88] sm:$0xff]
        %v1649 = vld [vmem:[#allocation2 + $0x90] sm:$0xff]
        %v1650 = vld [vmem:[#allocation2 + $0x98] sm:$0xff]
        %v1651 = vld [vmem:[#allocation2 + $0xa0] sm:$0xff]
        %v1652 = vld [vmem:[#allocation2 + $0xa8] sm:$0xff]
        %v1653 = vld [vmem:[#allocation2 + $0xb0] sm:$0xff]
        %v1654 = vld [vmem:[#allocation2 + $0xb8] sm:$0xff]
        %v1655 = vld [vmem:[#allocation2 + $0xc0] sm:$0xff]
        %v1656 = vld [vmem:[#allocation2 + $0xc8] sm:$0xff]
        %v1657 = vld [vmem:[#allocation2 + $0xd0] sm:$0xff]
        %v1658 = vld [vmem:[#allocation2 + $0xd8] sm:$0xff]
        %v1659 = vld [vmem:[#allocation2 + $0xe0] sm:$0xff]
        %v1660 = vld [vmem:[#allocation2 + $0xe8] sm:$0xff]
        %v1661 = vld [vmem:[#allocation2 + $0xf0] sm:$0xff]
        %v1662 = vld [vmem:[#allocation2 + $0xf8] sm:$0xff]
        %v1663 = vunpack.c.l.b16 %v1520
        %v1664 = vunpack.c.l.b16 %v1523
        %v1665 = vunpack.c.l.b16 %v1527
        %v1666 = vunpack.c.l.b16 %v1530
        %v1667 = vunpack.c.l.b16 %v1534
        %v1668 = vunpack.c.l.b16 %v1537
        %v1669 = vunpack.c.l.b16 %v1541
        %v1670 = vunpack.c.l.b16 %v1544
        %v1671 = vunpack.c.l.b16 %v1548
        %v1672 = vunpack.c.l.b16 %v1551
        %v1673 = vunpack.c.l.b16 %v1555
        %v1674 = vunpack.c.l.b16 %v1558
        %v1675 = vunpack.c.l.b16 %v1562
        %v1676 = vunpack.c.l.b16 %v1565
        %v1677 = vunpack.c.l.b16 %v1569
        %v1678 = vunpack.c.l.b16 %v1572
        %v1679 = vunpack.c.l.b16 %v1576
        %v1680 = vunpack.c.l.b16 %v1579
        %v1681 = vunpack.c.l.b16 %v1583
        %v1682 = vunpack.c.l.b16 %v1586
        %v1683 = vunpack.c.l.b16 %v1590
        %v1684 = vunpack.c.l.b16 %v1593
        %v1685 = vunpack.c.l.b16 %v1597
        %v1686 = vunpack.c.l.b16 %v1600
        %v1687 = vunpack.c.l.b16 %v1604
        %v1688 = vunpack.c.l.b16 %v1607
        %v1689 = vunpack.c.l.b16 %v1611
        %v1690 = vunpack.c.l.b16 %v1614
        %v1691 = vunpack.c.l.b16 %v1618
        %v1692 = vunpack.c.l.b16 %v1621
        %v1693 = vunpack.c.l.b16 %v1625
        %v1694 = vunpack.c.l.b16 %v1628
        %v1695 = vpack.c.b16 %v1664, %v1663
        %v1696 = vpack.c.b16 %v1666, %v1665
        %v1697 = vpack.c.b16 %v1668, %v1667
        %v1698 = vpack.c.b16 %v1670, %v1669
        %v1699 = vpack.c.b16 %v1672, %v1671
        %v1700 = vpack.c.b16 %v1674, %v1673
        %v1701 = vpack.c.b16 %v1676, %v1675
        %v1702 = vpack.c.b16 %v1678, %v1677
        %v1703 = vpack.c.b16 %v1680, %v1679
        %v1704 = vpack.c.b16 %v1682, %v1681
        %v1705 = vpack.c.b16 %v1684, %v1683
        %v1706 = vpack.c.b16 %v1686, %v1685
        %v1707 = vpack.c.b16 %v1688, %v1687
        %v1708 = vpack.c.b16 %v1690, %v1689
        %v1709 = vpack.c.b16 %v1692, %v1691
        %v1710 = vpack.c.b16 %v1694, %v1693
        %v1712 = vsel %vm347, %v1695, 0
        %v1715 = vsel %vm347, %v1696, 0
        %v1718 = vsel %vm347, %v1697, 0
        %v1721 = vsel %vm347, %v1698, 0
        %v1724 = vsel %vm347, %v1699, 0
        %v1727 = vsel %vm347, %v1700, 0
        %v1730 = vsel %vm347, %v1701, 0
        %v1733 = vsel %vm347, %v1702, 0
        %v1736 = vsel %vm347, %v1703, 0
        %v1739 = vsel %vm347, %v1704, 0
        %v1742 = vsel %vm347, %v1705, 0
        %v1745 = vsel %vm347, %v1706, 0
        %v1748 = vsel %vm347, %v1707, 0
        %v1751 = vsel %vm347, %v1708, 0
        %v1754 = vsel %vm347, %v1709, 0
        %v1757 = vsel %vm347, %v1710, 0
        %v1760 = vsel %vm396, %v1630, 0
        %1762 = vmatprep.subr.bf16.mxu0 0
        %1763 = vmatpush1.bf16.msra.mxu0 0
        %1764 = vmatprep.subr.bf16.mxu0 0
        %1765 = vmatpush1.bf16.msra.mxu0 0
        %1766 = vmatprep.subr.bf16.mxu0 0
        %1767 = vmatpush1.bf16.msra.mxu0 0
        %1768 = vmatprep.subr.bf16.mxu0 0
        %1769 = vmatpush1.bf16.msra.mxu0 0
        %1770 = vmatprep.subr.bf16.mxu0 0
        %1771 = vmatpush1.bf16.msra.mxu0 0
        %1772 = vmatprep.subr.bf16.mxu0 0
        %1773 = vmatpush1.bf16.msra.mxu0 0
        %1774 = vmatprep.subr.bf16.mxu0 0
        %1775 = vmatpush1.bf16.msra.mxu0 0
        %1776 = vmatprep.subr.bf16.mxu0 0
        %1777 = vmatpush1.bf16.msra.mxu0 %v1760
        %1778 = vmatprep.subr.bf16.mxu0 0
        %1779 = vmatpush2.bf16.msra.mxu0 0
        %1780 = vmatprep.subr.bf16.mxu0 0
        %1781 = vmatpush2.bf16.msra.mxu0 0
        %1782 = vmatprep.subr.bf16.mxu0 0
        %1783 = vmatpush2.bf16.msra.mxu0 0
        %1784 = vmatprep.subr.bf16.mxu0 0
        %1785 = vmatpush2.bf16.msra.mxu0 0
        %1786 = vmatprep.subr.bf16.mxu0 0
        %1787 = vmatpush2.bf16.msra.mxu0 0
        %1788 = vmatprep.subr.bf16.mxu0 0
        %1789 = vmatpush2.bf16.msra.mxu0 0
        %1790 = vmatprep.subr.bf16.mxu0 0
        %1791 = vmatpush2.bf16.msra.mxu0 0
        %1792 = vmatprep.subr.bf16.mxu0 0
        %1793 = vmatpush2.bf16.msra.mxu0 0
        %1794 = vmatprep.mubr.bf16.mxu0 0
        %1795 = vmatmul.mubr.bf16.gmra.mxu0 %v1712
        %v1796 = vpop.f32.mrf.mxu0
        %v1797 = vadd.f32 0.0, %v1796
        %v1798 = vpop.f32.mrf.mxu0
        %v1799 = vpop.f32.mrf.mxu0
        %v1800 = vadd.f32 0.0, %v1799
        %v1801 = vpop.f32.mrf.mxu0
        %1802 = vmatprep.mubr.bf16.mxu0 0
        %1803 = vmatmul.mubr.bf16.gmra.mxu0 %v1715
        %v1804 = vpop.f32.mrf.mxu0
        %v1805 = vadd.f32 0.0, %v1804
        %v1806 = vpop.f32.mrf.mxu0
        %v1807 = vpop.f32.mrf.mxu0
        %v1808 = vadd.f32 0.0, %v1807
        %v1809 = vpop.f32.mrf.mxu0
        %1810 = vmatprep.mubr.bf16.mxu0 0
        %1811 = vmatmul.mubr.bf16.gmra.mxu0 %v1718
        %v1812 = vpop.f32.mrf.mxu0
        %v1813 = vadd.f32 0.0, %v1812
        %v1814 = vpop.f32.mrf.mxu0
        %v1815 = vpop.f32.mrf.mxu0
        %v1816 = vadd.f32 0.0, %v1815
        %v1817 = vpop.f32.mrf.mxu0
        %1818 = vmatprep.mubr.bf16.mxu0 0
        %1819 = vmatmul.mubr.bf16.gmra.mxu0 %v1721
        %v1820 = vpop.f32.mrf.mxu0
        %v1821 = vadd.f32 0.0, %v1820
        %v1822 = vpop.f32.mrf.mxu0
        %v1823 = vpop.f32.mrf.mxu0
        %v1824 = vadd.f32 0.0, %v1823
        %v1825 = vpop.f32.mrf.mxu0
        %1826 = vmatprep.mubr.bf16.mxu0 0
        %1827 = vmatmul.mubr.bf16.gmra.mxu0 %v1724
        %v1828 = vpop.f32.mrf.mxu0
        %v1829 = vadd.f32 0.0, %v1828
        %v1830 = vpop.f32.mrf.mxu0
        %v1831 = vpop.f32.mrf.mxu0
        %v1832 = vadd.f32 0.0, %v1831
        %v1833 = vpop.f32.mrf.mxu0
        %1834 = vmatprep.mubr.bf16.mxu0 0
        %1835 = vmatmul.mubr.bf16.gmra.mxu0 %v1727
        %v1836 = vpop.f32.mrf.mxu0
        %v1837 = vadd.f32 0.0, %v1836
        %v1838 = vpop.f32.mrf.mxu0
        %v1839 = vpop.f32.mrf.mxu0
        %v1840 = vadd.f32 0.0, %v1839
        %v1841 = vpop.f32.mrf.mxu0
        %1842 = vmatprep.mubr.bf16.mxu0 0
        %1843 = vmatmul.mubr.bf16.gmra.mxu0 %v1730
        %v1844 = vpop.f32.mrf.mxu0
        %v1845 = vadd.f32 0.0, %v1844
        %v1846 = vpop.f32.mrf.mxu0
        %v1847 = vpop.f32.mrf.mxu0
        %v1848 = vadd.f32 0.0, %v1847
        %v1849 = vpop.f32.mrf.mxu0
        %1850 = vmatprep.mubr.bf16.mxu0 0
        %1851 = vmatmul.mubr.bf16.gmra.mxu0 %v1733
        %v1852 = vpop.f32.mrf.mxu0
        %v1853 = vadd.f32 0.0, %v1852
        %v1854 = vpop.f32.mrf.mxu0
        %v1855 = vpop.f32.mrf.mxu0
        %v1856 = vadd.f32 0.0, %v1855
        %v1857 = vpop.f32.mrf.mxu0
        %1858 = vmatprep.mubr.bf16.mxu0 0
        %1859 = vmatmul.mubr.bf16.gmra.mxu0 %v1736
        %v1860 = vpop.f32.mrf.mxu0
        %v1861 = vadd.f32 0.0, %v1860
        %v1862 = vpop.f32.mrf.mxu0
        %v1863 = vpop.f32.mrf.mxu0
        %v1864 = vadd.f32 0.0, %v1863
        %v1865 = vpop.f32.mrf.mxu0
        %1866 = vmatprep.mubr.bf16.mxu0 0
        %1867 = vmatmul.mubr.bf16.gmra.mxu0 %v1739
        %v1868 = vpop.f32.mrf.mxu0
        %v1869 = vadd.f32 0.0, %v1868
        %v1870 = vpop.f32.mrf.mxu0
        %v1871 = vpop.f32.mrf.mxu0
        %v1872 = vadd.f32 0.0, %v1871
        %v1873 = vpop.f32.mrf.mxu0
        %1874 = vmatprep.mubr.bf16.mxu0 0
        %1875 = vmatmul.mubr.bf16.gmra.mxu0 %v1742
        %v1876 = vpop.f32.mrf.mxu0
        %v1877 = vadd.f32 0.0, %v1876
        %v1878 = vpop.f32.mrf.mxu0
        %v1879 = vpop.f32.mrf.mxu0
        %v1880 = vadd.f32 0.0, %v1879
        %v1881 = vpop.f32.mrf.mxu0
        %1882 = vmatprep.mubr.bf16.mxu0 0
        %1883 = vmatmul.mubr.bf16.gmra.mxu0 %v1745
        %v1884 = vpop.f32.mrf.mxu0
        %v1885 = vadd.f32 0.0, %v1884
        %v1886 = vpop.f32.mrf.mxu0
        %v1887 = vpop.f32.mrf.mxu0
        %v1888 = vadd.f32 0.0, %v1887
        %v1889 = vpop.f32.mrf.mxu0
        %1890 = vmatprep.mubr.bf16.mxu0 0
        %1891 = vmatmul.mubr.bf16.gmra.mxu0 %v1748
        %v1892 = vpop.f32.mrf.mxu0
        %v1893 = vadd.f32 0.0, %v1892
        %v1894 = vpop.f32.mrf.mxu0
        %v1895 = vpop.f32.mrf.mxu0
        %v1896 = vadd.f32 0.0, %v1895
        %v1897 = vpop.f32.mrf.mxu0
        %1898 = vmatprep.mubr.bf16.mxu0 0
        %1899 = vmatmul.mubr.bf16.gmra.mxu0 %v1751
        %v1900 = vpop.f32.mrf.mxu0
        %v1901 = vadd.f32 0.0, %v1900
        %v1902 = vpop.f32.mrf.mxu0
        %v1903 = vpop.f32.mrf.mxu0
        %v1904 = vadd.f32 0.0, %v1903
        %v1905 = vpop.f32.mrf.mxu0
        %1906 = vmatprep.mubr.bf16.mxu0 0
        %1907 = vmatmul.mubr.bf16.gmra.mxu0 %v1754
        %v1908 = vpop.f32.mrf.mxu0
        %v1909 = vadd.f32 0.0, %v1908
        %v1910 = vpop.f32.mrf.mxu0
        %v1911 = vpop.f32.mrf.mxu0
        %v1912 = vadd.f32 0.0, %v1911
        %v1913 = vpop.f32.mrf.mxu0
        %1914 = vmatprep.mubr.bf16.mxu0 0
        %1915 = vmatmul.mubr.bf16.gmra.mxu0 %v1757
        %v1916 = vpop.f32.mrf.mxu0
        %v1917 = vadd.f32 0.0, %v1916
        %v1918 = vpop.f32.mrf.mxu0
        %v1919 = vpop.f32.mrf.mxu0
        %v1920 = vadd.f32 0.0, %v1919
        %v1921 = vpop.f32.mrf.mxu0
        %1922 = vdwg.mxu0
        %v1923 = vadd.f32 %v1631, %v1797
        %v1924 = vadd.f32 %v1632, %v1800
        %v1925 = vadd.f32 %v1633, %v1805
        %v1926 = vadd.f32 %v1634, %v1808
        %v1927 = vadd.f32 %v1635, %v1813
        %v1928 = vadd.f32 %v1636, %v1816
        %v1929 = vadd.f32 %v1637, %v1821
        %v1930 = vadd.f32 %v1638, %v1824
        %v1931 = vadd.f32 %v1639, %v1829
        %v1932 = vadd.f32 %v1640, %v1832
        %v1933 = vadd.f32 %v1641, %v1837
        %v1934 = vadd.f32 %v1642, %v1840
        %v1935 = vadd.f32 %v1643, %v1845
        %v1936 = vadd.f32 %v1644, %v1848
        %v1937 = vadd.f32 %v1645, %v1853
        %v1938 = vadd.f32 %v1646, %v1856
        %v1939 = vadd.f32 %v1647, %v1861
        %v1940 = vadd.f32 %v1648, %v1864
        %v1941 = vadd.f32 %v1649, %v1869
        %v1942 = vadd.f32 %v1650, %v1872
        %v1943 = vadd.f32 %v1651, %v1877
        %v1944 = vadd.f32 %v1652, %v1880
        %v1945 = vadd.f32 %v1653, %v1885
        %v1946 = vadd.f32 %v1654, %v1888
        %v1947 = vadd.f32 %v1655, %v1893
        %v1948 = vadd.f32 %v1656, %v1896
        %v1949 = vadd.f32 %v1657, %v1901
        %v1950 = vadd.f32 %v1658, %v1904
        %v1951 = vadd.f32 %v1659, %v1909
        %v1952 = vadd.f32 %v1660, %v1912
        %v1953 = vadd.f32 %v1661, %v1917
        %v1954 = vadd.f32 %v1662, %v1920
        %1955 = vst [vmem:[#allocation2] sm:$0xff] %v1923
        %1956 = vst [vmem:[#allocation2 + $0x8] sm:$0xff] %v1924
        %1957 = vst [vmem:[#allocation2 + $0x10] sm:$0xff] %v1925
        %1958 = vst [vmem:[#allocation2 + $0x18] sm:$0xff] %v1926
        %1959 = vst [vmem:[#allocation2 + $0x20] sm:$0xff] %v1927
        %1960 = vst [vmem:[#allocation2 + $0x28] sm:$0xff] %v1928
        %1961 = vst [vmem:[#allocation2 + $0x30] sm:$0xff] %v1929
        %1962 = vst [vmem:[#allocation2 + $0x38] sm:$0xff] %v1930
        %1963 = vst [vmem:[#allocation2 + $0x40] sm:$0xff] %v1931
        %1964 = vst [vmem:[#allocation2 + $0x48] sm:$0xff] %v1932
        %1965 = vst [vmem:[#allocation2 + $0x50] sm:$0xff] %v1933
        %1966 = vst [vmem:[#allocation2 + $0x58] sm:$0xff] %v1934
        %1967 = vst [vmem:[#allocation2 + $0x60] sm:$0xff] %v1935
        %1968 = vst [vmem:[#allocation2 + $0x68] sm:$0xff] %v1936
        %1969 = vst [vmem:[#allocation2 + $0x70] sm:$0xff] %v1937
        %1970 = vst [vmem:[#allocation2 + $0x78] sm:$0xff] %v1938
        %1971 = vst [vmem:[#allocation2 + $0x80] sm:$0xff] %v1939
        %1972 = vst [vmem:[#allocation2 + $0x88] sm:$0xff] %v1940
        %1973 = vst [vmem:[#allocation2 + $0x90] sm:$0xff] %v1941
        %1974 = vst [vmem:[#allocation2 + $0x98] sm:$0xff] %v1942
        %1975 = vst [vmem:[#allocation2 + $0xa0] sm:$0xff] %v1943
        %1976 = vst [vmem:[#allocation2 + $0xa8] sm:$0xff] %v1944
        %1977 = vst [vmem:[#allocation2 + $0xb0] sm:$0xff] %v1945
        %1978 = vst [vmem:[#allocation2 + $0xb8] sm:$0xff] %v1946
        %1979 = vst [vmem:[#allocation2 + $0xc0] sm:$0xff] %v1947
        %1980 = vst [vmem:[#allocation2 + $0xc8] sm:$0xff] %v1948
        %1981 = vst [vmem:[#allocation2 + $0xd0] sm:$0xff] %v1949
        %1982 = vst [vmem:[#allocation2 + $0xd8] sm:$0xff] %v1950
        %1983 = vst [vmem:[#allocation2 + $0xe0] sm:$0xff] %v1951
        %1984 = vst [vmem:[#allocation2 + $0xe8] sm:$0xff] %v1952
        %1985 = vst [vmem:[#allocation2 + $0xf0] sm:$0xff] %v1953
        %1986 = vst [vmem:[#allocation2 + $0xf8] sm:$0xff] %v1954
        %s1987 = scalar_lea.vmem %s168, 12
        %v1988 = vld [vmem:[%s1987] sm:$0xf]
        %v1989 = vld [vmem:[%s1987 + $0x4] sm:$0xf]
        %v1990 = vld [vmem:[%s1987 + $0xc] sm:$0xf]
        %v1991 = vld [vmem:[%s1987 + $0x10] sm:$0xf]
        %v1992 = vld [vmem:[%s1987 + $0x18] sm:$0xf]
        %v1993 = vld [vmem:[%s1987 + $0x1c] sm:$0xf]
        %v1994 = vld [vmem:[%s1987 + $0x24] sm:$0xf]
        %v1995 = vld [vmem:[%s1987 + $0x28] sm:$0xf]
        %v1996 = vld [vmem:[%s1987 + $0x30] sm:$0xf]
        %v1997 = vld [vmem:[%s1987 + $0x34] sm:$0xf]
        %v1998 = vld [vmem:[%s1987 + $0x3c] sm:$0xf]
        %v1999 = vld [vmem:[%s1987 + $0x40] sm:$0xf]
        %v2000 = vld [vmem:[%s1987 + $0x48] sm:$0xf]
        %v2001 = vld [vmem:[%s1987 + $0x4c] sm:$0xf]
        %v2002 = vld [vmem:[%s1987 + $0x54] sm:$0xf]
        %v2003 = vld [vmem:[%s1987 + $0x58] sm:$0xf]
        %v2004 = vld [vmem:[%s1987 + $0x60] sm:$0xf]
        %v2005 = vld [vmem:[%s1987 + $0x64] sm:$0xf]
        %v2006 = vld [vmem:[%s1987 + $0x6c] sm:$0xf]
        %v2007 = vld [vmem:[%s1987 + $0x70] sm:$0xf]
        %v2008 = vld [vmem:[%s1987 + $0x78] sm:$0xf]
        %v2009 = vld [vmem:[%s1987 + $0x7c] sm:$0xf]
        %v2010 = vld [vmem:[%s1987 + $0x84] sm:$0xf]
        %v2011 = vld [vmem:[%s1987 + $0x88] sm:$0xf]
        %v2012 = vld [vmem:[%s1987 + $0x90] sm:$0xf]
        %v2013 = vld [vmem:[%s1987 + $0x94] sm:$0xf]
        %v2014 = vld [vmem:[%s1987 + $0x9c] sm:$0xf]
        %v2015 = vld [vmem:[%s1987 + $0xa0] sm:$0xf]
        %v2016 = vld [vmem:[%s1987 + $0xa8] sm:$0xf]
        %v2017 = vld [vmem:[%s1987 + $0xac] sm:$0xf]
        %v2018 = vld [vmem:[%s1987 + $0xb4] sm:$0xf]
        %v2019 = vld [vmem:[%s1987 + $0xb8] sm:$0xf]
        %s2020 = scalar_lea.vmem %s1, 6
        %v2021 = vld [vmem:[%s2020] sm:$0x3]
        %v2022 = vld [vmem:[#allocation2] sm:$0xff]
        %v2023 = vld [vmem:[#allocation2 + $0x8] sm:$0xff]
        %v2024 = vld [vmem:[#allocation2 + $0x10] sm:$0xff]
        %v2025 = vld [vmem:[#allocation2 + $0x18] sm:$0xff]
        %v2026 = vld [vmem:[#allocation2 + $0x20] sm:$0xff]
        %v2027 = vld [vmem:[#allocation2 + $0x28] sm:$0xff]
        %v2028 = vld [vmem:[#allocation2 + $0x30] sm:$0xff]
        %v2029 = vld [vmem:[#allocation2 + $0x38] sm:$0xff]
        %v2030 = vld [vmem:[#allocation2 + $0x40] sm:$0xff]
        %v2031 = vld [vmem:[#allocation2 + $0x48] sm:$0xff]
        %v2032 = vld [vmem:[#allocation2 + $0x50] sm:$0xff]
        %v2033 = vld [vmem:[#allocation2 + $0x58] sm:$0xff]
        %v2034 = vld [vmem:[#allocation2 + $0x60] sm:$0xff]
        %v2035 = vld [vmem:[#allocation2 + $0x68] sm:$0xff]
        %v2036 = vld [vmem:[#allocation2 + $0x70] sm:$0xff]
        %v2037 = vld [vmem:[#allocation2 + $0x78] sm:$0xff]
        %v2038 = vld [vmem:[#allocation2 + $0x80] sm:$0xff]
        %v2039 = vld [vmem:[#allocation2 + $0x88] sm:$0xff]
        %v2040 = vld [vmem:[#allocation2 + $0x90] sm:$0xff]
        %v2041 = vld [vmem:[#allocation2 + $0x98] sm:$0xff]
        %v2042 = vld [vmem:[#allocation2 + $0xa0] sm:$0xff]
        %v2043 = vld [vmem:[#allocation2 + $0xa8] sm:$0xff]
        %v2044 = vld [vmem:[#allocation2 + $0xb0] sm:$0xff]
        %v2045 = vld [vmem:[#allocation2 + $0xb8] sm:$0xff]
        %v2046 = vld [vmem:[#allocation2 + $0xc0] sm:$0xff]
        %v2047 = vld [vmem:[#allocation2 + $0xc8] sm:$0xff]
        %v2048 = vld [vmem:[#allocation2 + $0xd0] sm:$0xff]
        %v2049 = vld [vmem:[#allocation2 + $0xd8] sm:$0xff]
        %v2050 = vld [vmem:[#allocation2 + $0xe0] sm:$0xff]
        %v2051 = vld [vmem:[#allocation2 + $0xe8] sm:$0xff]
        %v2052 = vld [vmem:[#allocation2 + $0xf0] sm:$0xff]
        %v2053 = vld [vmem:[#allocation2 + $0xf8] sm:$0xff]
        %v2086 = vunpack.c.l.b16 %v1988
        %v2087 = vunpack.c.l.b16 %v1989
        %v2088 = vunpack.c.l.b16 %v1990
        %v2089 = vunpack.c.l.b16 %v1991
        %v2090 = vunpack.c.l.b16 %v1992
        %v2091 = vunpack.c.l.b16 %v1993
        %v2092 = vunpack.c.l.b16 %v1994
        %v2093 = vunpack.c.l.b16 %v1995
        %v2094 = vunpack.c.l.b16 %v1996
        %v2095 = vunpack.c.l.b16 %v1997
        %v2096 = vunpack.c.l.b16 %v1998
        %v2097 = vunpack.c.l.b16 %v1999
        %v2098 = vunpack.c.l.b16 %v2000
        %v2099 = vunpack.c.l.b16 %v2001
        %v2100 = vunpack.c.l.b16 %v2002
        %v2101 = vunpack.c.l.b16 %v2003
        %v2102 = vunpack.c.l.b16 %v2004
        %v2103 = vunpack.c.l.b16 %v2005
        %v2104 = vunpack.c.l.b16 %v2006
        %v2105 = vunpack.c.l.b16 %v2007
        %v2106 = vunpack.c.l.b16 %v2008
        %v2107 = vunpack.c.l.b16 %v2009
        %v2108 = vunpack.c.l.b16 %v2010
        %v2109 = vunpack.c.l.b16 %v2011
        %v2110 = vunpack.c.l.b16 %v2012
        %v2111 = vunpack.c.l.b16 %v2013
        %v2112 = vunpack.c.l.b16 %v2014
        %v2113 = vunpack.c.l.b16 %v2015
        %v2114 = vunpack.c.l.b16 %v2016
        %v2115 = vunpack.c.l.b16 %v2017
        %v2116 = vunpack.c.l.b16 %v2018
        %v2117 = vunpack.c.l.b16 %v2019
        %v2118 = vpack.c.b16 %v2087, %v2086
        %v2119 = vpack.c.b16 %v2089, %v2088
        %v2120 = vpack.c.b16 %v2091, %v2090
        %v2121 = vpack.c.b16 %v2093, %v2092
        %v2122 = vpack.c.b16 %v2095, %v2094
        %v2123 = vpack.c.b16 %v2097, %v2096
        %v2124 = vpack.c.b16 %v2099, %v2098
        %v2125 = vpack.c.b16 %v2101, %v2100
        %v2126 = vpack.c.b16 %v2103, %v2102
        %v2127 = vpack.c.b16 %v2105, %v2104
        %v2128 = vpack.c.b16 %v2107, %v2106
        %v2129 = vpack.c.b16 %v2109, %v2108
        %v2130 = vpack.c.b16 %v2111, %v2110
        %v2131 = vpack.c.b16 %v2113, %v2112
        %v2132 = vpack.c.b16 %v2115, %v2114
        %v2133 = vpack.c.b16 %v2117, %v2116
        %v2135 = vsel %vm347, %v2118, 0
        %v2138 = vsel %vm347, %v2119, 0
        %v2141 = vsel %vm347, %v2120, 0
        %v2144 = vsel %vm347, %v2121, 0
        %v2147 = vsel %vm347, %v2122, 0
        %v2150 = vsel %vm347, %v2123, 0
        %v2153 = vsel %vm347, %v2124, 0
        %v2156 = vsel %vm347, %v2125, 0
        %v2159 = vsel %vm347, %v2126, 0
        %v2162 = vsel %vm347, %v2127, 0
        %v2165 = vsel %vm347, %v2128, 0
        %v2168 = vsel %vm347, %v2129, 0
        %v2171 = vsel %vm347, %v2130, 0
        %v2174 = vsel %vm347, %v2131, 0
        %v2177 = vsel %vm347, %v2132, 0
        %v2180 = vsel %vm347, %v2133, 0
        %v2183 = vsel %vm396, %v2021, 0
        %2185 = vmatprep.subr.bf16.mxu0 0
        %2186 = vmatpush1.bf16.msra.mxu0 0
        %2187 = vmatprep.subr.bf16.mxu0 0
        %2188 = vmatpush1.bf16.msra.mxu0 0
        %2189 = vmatprep.subr.bf16.mxu0 0
        %2190 = vmatpush1.bf16.msra.mxu0 0
        %2191 = vmatprep.subr.bf16.mxu0 0
        %2192 = vmatpush1.bf16.msra.mxu0 0
        %2193 = vmatprep.subr.bf16.mxu0 0
        %2194 = vmatpush1.bf16.msra.mxu0 0
        %2195 = vmatprep.subr.bf16.mxu0 0
        %2196 = vmatpush1.bf16.msra.mxu0 0
        %2197 = vmatprep.subr.bf16.mxu0 0
        %2198 = vmatpush1.bf16.msra.mxu0 0
        %2199 = vmatprep.subr.bf16.mxu0 0
        %2200 = vmatpush1.bf16.msra.mxu0 %v2183
        %2201 = vmatprep.subr.bf16.mxu0 0
        %2202 = vmatpush2.bf16.msra.mxu0 0
        %2203 = vmatprep.subr.bf16.mxu0 0
        %2204 = vmatpush2.bf16.msra.mxu0 0
        %2205 = vmatprep.subr.bf16.mxu0 0
        %2206 = vmatpush2.bf16.msra.mxu0 0
        %2207 = vmatprep.subr.bf16.mxu0 0
        %2208 = vmatpush2.bf16.msra.mxu0 0
        %2209 = vmatprep.subr.bf16.mxu0 0
        %2210 = vmatpush2.bf16.msra.mxu0 0
        %2211 = vmatprep.subr.bf16.mxu0 0
        %2212 = vmatpush2.bf16.msra.mxu0 0
        %2213 = vmatprep.subr.bf16.mxu0 0
        %2214 = vmatpush2.bf16.msra.mxu0 0
        %2215 = vmatprep.subr.bf16.mxu0 0
        %2216 = vmatpush2.bf16.msra.mxu0 0
        %2217 = vmatprep.mubr.bf16.mxu0 0
        %2218 = vmatmul.mubr.bf16.gmra.mxu0 %v2135
        %v2219 = vpop.f32.mrf.mxu0
        %v2220 = vadd.f32 0.0, %v2219
        %v2221 = vpop.f32.mrf.mxu0
        %v2222 = vpop.f32.mrf.mxu0
        %v2223 = vadd.f32 0.0, %v2222
        %v2224 = vpop.f32.mrf.mxu0
        %2225 = vmatprep.mubr.bf16.mxu0 0
        %2226 = vmatmul.mubr.bf16.gmra.mxu0 %v2138
        %v2227 = vpop.f32.mrf.mxu0
        %v2228 = vadd.f32 0.0, %v2227
        %v2229 = vpop.f32.mrf.mxu0
        %v2230 = vpop.f32.mrf.mxu0
        %v2231 = vadd.f32 0.0, %v2230
        %v2232 = vpop.f32.mrf.mxu0
        %2233 = vmatprep.mubr.bf16.mxu0 0
        %2234 = vmatmul.mubr.bf16.gmra.mxu0 %v2141
        %v2235 = vpop.f32.mrf.mxu0
        %v2236 = vadd.f32 0.0, %v2235
        %v2237 = vpop.f32.mrf.mxu0
        %v2238 = vpop.f32.mrf.mxu0
        %v2239 = vadd.f32 0.0, %v2238
        %v2240 = vpop.f32.mrf.mxu0
        %2241 = vmatprep.mubr.bf16.mxu0 0
        %2242 = vmatmul.mubr.bf16.gmra.mxu0 %v2144
        %v2243 = vpop.f32.mrf.mxu0
        %v2244 = vadd.f32 0.0, %v2243
        %v2245 = vpop.f32.mrf.mxu0
        %v2246 = vpop.f32.mrf.mxu0
        %v2247 = vadd.f32 0.0, %v2246
        %v2248 = vpop.f32.mrf.mxu0
        %2249 = vmatprep.mubr.bf16.mxu0 0
        %2250 = vmatmul.mubr.bf16.gmra.mxu0 %v2147
        %v2251 = vpop.f32.mrf.mxu0
        %v2252 = vadd.f32 0.0, %v2251
        %v2253 = vpop.f32.mrf.mxu0
        %v2254 = vpop.f32.mrf.mxu0
        %v2255 = vadd.f32 0.0, %v2254
        %v2256 = vpop.f32.mrf.mxu0
        %2257 = vmatprep.mubr.bf16.mxu0 0
        %2258 = vmatmul.mubr.bf16.gmra.mxu0 %v2150
        %v2259 = vpop.f32.mrf.mxu0
        %v2260 = vadd.f32 0.0, %v2259
        %v2261 = vpop.f32.mrf.mxu0
        %v2262 = vpop.f32.mrf.mxu0
        %v2263 = vadd.f32 0.0, %v2262
        %v2264 = vpop.f32.mrf.mxu0
        %2265 = vmatprep.mubr.bf16.mxu0 0
        %2266 = vmatmul.mubr.bf16.gmra.mxu0 %v2153
        %v2267 = vpop.f32.mrf.mxu0
        %v2268 = vadd.f32 0.0, %v2267
        %v2269 = vpop.f32.mrf.mxu0
        %v2270 = vpop.f32.mrf.mxu0
        %v2271 = vadd.f32 0.0, %v2270
        %v2272 = vpop.f32.mrf.mxu0
        %2273 = vmatprep.mubr.bf16.mxu0 0
        %2274 = vmatmul.mubr.bf16.gmra.mxu0 %v2156
        %v2275 = vpop.f32.mrf.mxu0
        %v2276 = vadd.f32 0.0, %v2275
        %v2277 = vpop.f32.mrf.mxu0
        %v2278 = vpop.f32.mrf.mxu0
        %v2279 = vadd.f32 0.0, %v2278
        %v2280 = vpop.f32.mrf.mxu0
        %2281 = vmatprep.mubr.bf16.mxu0 0
        %2282 = vmatmul.mubr.bf16.gmra.mxu0 %v2159
        %v2283 = vpop.f32.mrf.mxu0
        %v2284 = vadd.f32 0.0, %v2283
        %v2285 = vpop.f32.mrf.mxu0
        %v2286 = vpop.f32.mrf.mxu0
        %v2287 = vadd.f32 0.0, %v2286
        %v2288 = vpop.f32.mrf.mxu0
        %2289 = vmatprep.mubr.bf16.mxu0 0
        %2290 = vmatmul.mubr.bf16.gmra.mxu0 %v2162
        %v2291 = vpop.f32.mrf.mxu0
        %v2292 = vadd.f32 0.0, %v2291
        %v2293 = vpop.f32.mrf.mxu0
        %v2294 = vpop.f32.mrf.mxu0
        %v2295 = vadd.f32 0.0, %v2294
        %v2296 = vpop.f32.mrf.mxu0
        %2297 = vmatprep.mubr.bf16.mxu0 0
        %2298 = vmatmul.mubr.bf16.gmra.mxu0 %v2165
        %v2299 = vpop.f32.mrf.mxu0
        %v2300 = vadd.f32 0.0, %v2299
        %v2301 = vpop.f32.mrf.mxu0
        %v2302 = vpop.f32.mrf.mxu0
        %v2303 = vadd.f32 0.0, %v2302
        %v2304 = vpop.f32.mrf.mxu0
        %2305 = vmatprep.mubr.bf16.mxu0 0
        %2306 = vmatmul.mubr.bf16.gmra.mxu0 %v2168
        %v2307 = vpop.f32.mrf.mxu0
        %v2308 = vadd.f32 0.0, %v2307
        %v2309 = vpop.f32.mrf.mxu0
        %v2310 = vpop.f32.mrf.mxu0
        %v2311 = vadd.f32 0.0, %v2310
        %v2312 = vpop.f32.mrf.mxu0
        %2313 = vmatprep.mubr.bf16.mxu0 0
        %2314 = vmatmul.mubr.bf16.gmra.mxu0 %v2171
        %v2315 = vpop.f32.mrf.mxu0
        %v2316 = vadd.f32 0.0, %v2315
        %v2317 = vpop.f32.mrf.mxu0
        %v2318 = vpop.f32.mrf.mxu0
        %v2319 = vadd.f32 0.0, %v2318
        %v2320 = vpop.f32.mrf.mxu0
        %2321 = vmatprep.mubr.bf16.mxu0 0
        %2322 = vmatmul.mubr.bf16.gmra.mxu0 %v2174
        %v2323 = vpop.f32.mrf.mxu0
        %v2324 = vadd.f32 0.0, %v2323
        %v2325 = vpop.f32.mrf.mxu0
        %v2326 = vpop.f32.mrf.mxu0
        %v2327 = vadd.f32 0.0, %v2326
        %v2328 = vpop.f32.mrf.mxu0
        %2329 = vmatprep.mubr.bf16.mxu0 0
        %2330 = vmatmul.mubr.bf16.gmra.mxu0 %v2177
        %v2331 = vpop.f32.mrf.mxu0
        %v2332 = vadd.f32 0.0, %v2331
        %v2333 = vpop.f32.mrf.mxu0
        %v2334 = vpop.f32.mrf.mxu0
        %v2335 = vadd.f32 0.0, %v2334
        %v2336 = vpop.f32.mrf.mxu0
        %2337 = vmatprep.mubr.bf16.mxu0 0
        %2338 = vmatmul.mubr.bf16.gmra.mxu0 %v2180
        %v2339 = vpop.f32.mrf.mxu0
        %v2340 = vadd.f32 0.0, %v2339
        %v2341 = vpop.f32.mrf.mxu0
        %v2342 = vpop.f32.mrf.mxu0
        %v2343 = vadd.f32 0.0, %v2342
        %v2344 = vpop.f32.mrf.mxu0
        %2345 = vdwg.mxu0
        %v2346 = vadd.f32 %v2022, %v2220
        %v2347 = vadd.f32 %v2023, %v2223
        %v2348 = vadd.f32 %v2024, %v2228
        %v2349 = vadd.f32 %v2025, %v2231
        %v2350 = vadd.f32 %v2026, %v2236
        %v2351 = vadd.f32 %v2027, %v2239
        %v2352 = vadd.f32 %v2028, %v2244
        %v2353 = vadd.f32 %v2029, %v2247
        %v2354 = vadd.f32 %v2030, %v2252
        %v2355 = vadd.f32 %v2031, %v2255
        %v2356 = vadd.f32 %v2032, %v2260
        %v2357 = vadd.f32 %v2033, %v2263
        %v2358 = vadd.f32 %v2034, %v2268
        %v2359 = vadd.f32 %v2035, %v2271
        %v2360 = vadd.f32 %v2036, %v2276
        %v2361 = vadd.f32 %v2037, %v2279
        %v2362 = vadd.f32 %v2038, %v2284
        %v2363 = vadd.f32 %v2039, %v2287
        %v2364 = vadd.f32 %v2040, %v2292
        %v2365 = vadd.f32 %v2041, %v2295
        %v2366 = vadd.f32 %v2042, %v2300
        %v2367 = vadd.f32 %v2043, %v2303
        %v2368 = vadd.f32 %v2044, %v2308
        %v2369 = vadd.f32 %v2045, %v2311
        %v2370 = vadd.f32 %v2046, %v2316
        %v2371 = vadd.f32 %v2047, %v2319
        %v2372 = vadd.f32 %v2048, %v2324
        %v2373 = vadd.f32 %v2049, %v2327
        %v2374 = vadd.f32 %v2050, %v2332
        %v2375 = vadd.f32 %v2051, %v2335
        %v2376 = vadd.f32 %v2052, %v2340
        %v2377 = vadd.f32 %v2053, %v2343
        %2378 = vst [vmem:[#allocation2] sm:$0xff] %v2346
        %2379 = vst [vmem:[#allocation2 + $0x8] sm:$0xff] %v2347
        %2380 = vst [vmem:[#allocation2 + $0x10] sm:$0xff] %v2348
        %2381 = vst [vmem:[#allocation2 + $0x18] sm:$0xff] %v2349
        %2382 = vst [vmem:[#allocation2 + $0x20] sm:$0xff] %v2350
        %2383 = vst [vmem:[#allocation2 + $0x28] sm:$0xff] %v2351
        %2384 = vst [vmem:[#allocation2 + $0x30] sm:$0xff] %v2352
        %2385 = vst [vmem:[#allocation2 + $0x38] sm:$0xff] %v2353
        %2386 = vst [vmem:[#allocation2 + $0x40] sm:$0xff] %v2354
        %2387 = vst [vmem:[#allocation2 + $0x48] sm:$0xff] %v2355
        %2388 = vst [vmem:[#allocation2 + $0x50] sm:$0xff] %v2356
        %2389 = vst [vmem:[#allocation2 + $0x58] sm:$0xff] %v2357
        %2390 = vst [vmem:[#allocation2 + $0x60] sm:$0xff] %v2358
        %2391 = vst [vmem:[#allocation2 + $0x68] sm:$0xff] %v2359
        %2392 = vst [vmem:[#allocation2 + $0x70] sm:$0xff] %v2360
        %2393 = vst [vmem:[#allocation2 + $0x78] sm:$0xff] %v2361
        %2394 = vst [vmem:[#allocation2 + $0x80] sm:$0xff] %v2362
        %2395 = vst [vmem:[#allocation2 + $0x88] sm:$0xff] %v2363
        %2396 = vst [vmem:[#allocation2 + $0x90] sm:$0xff] %v2364
        %2397 = vst [vmem:[#allocation2 + $0x98] sm:$0xff] %v2365
        %2398 = vst [vmem:[#allocation2 + $0xa0] sm:$0xff] %v2366
        %2399 = vst [vmem:[#allocation2 + $0xa8] sm:$0xff] %v2367
        %2400 = vst [vmem:[#allocation2 + $0xb0] sm:$0xff] %v2368
        %2401 = vst [vmem:[#allocation2 + $0xb8] sm:$0xff] %v2369
        %2402 = vst [vmem:[#allocation2 + $0xc0] sm:$0xff] %v2370
        %2403 = vst [vmem:[#allocation2 + $0xc8] sm:$0xff] %v2371
        %2404 = vst [vmem:[#allocation2 + $0xd0] sm:$0xff] %v2372
        %2405 = vst [vmem:[#allocation2 + $0xd8] sm:$0xff] %v2373
        %2406 = vst [vmem:[#allocation2 + $0xe0] sm:$0xff] %v2374
        %2407 = vst [vmem:[#allocation2 + $0xe8] sm:$0xff] %v2375
        %2408 = vst [vmem:[#allocation2 + $0xf0] sm:$0xff] %v2376
        %2409 = vst [vmem:[#allocation2 + $0xf8] sm:$0xff] %v2377
        %v2410 = vld [vmem:[%s1987] sm:$0xf]
        %v2411 = vld [vmem:[%s1987 + $0x4] sm:$0xf]
        %v2412 = vld [vmem:[%s1987 + $0x8] sm:$0x1]
        %v2413 = vld [vmem:[%s1987 + $0xc] sm:$0xf]
        %v2414 = vld [vmem:[%s1987 + $0x10] sm:$0xf]
        %v2415 = vld [vmem:[%s1987 + $0x14] sm:$0x1]
        %v2416 = vld [vmem:[%s1987 + $0x18] sm:$0xf]
        %v2417 = vld [vmem:[%s1987 + $0x1c] sm:$0xf]
        %v2418 = vld [vmem:[%s1987 + $0x20] sm:$0x1]
        %v2419 = vld [vmem:[%s1987 + $0x24] sm:$0xf]
        %v2420 = vld [vmem:[%s1987 + $0x28] sm:$0xf]
        %v2421 = vld [vmem:[%s1987 + $0x2c] sm:$0x1]
        %v2422 = vld [vmem:[%s1987 + $0x30] sm:$0xf]
        %v2423 = vld [vmem:[%s1987 + $0x34] sm:$0xf]
        %v2424 = vld [vmem:[%s1987 + $0x38] sm:$0x1]
        %v2425 = vld [vmem:[%s1987 + $0x3c] sm:$0xf]
        %v2426 = vld [vmem:[%s1987 + $0x40] sm:$0xf]
        %v2427 = vld [vmem:[%s1987 + $0x44] sm:$0x1]
        %v2428 = vld [vmem:[%s1987 + $0x48] sm:$0xf]
        %v2429 = vld [vmem:[%s1987 + $0x4c] sm:$0xf]
        %v2430 = vld [vmem:[%s1987 + $0x50] sm:$0x1]
        %v2431 = vld [vmem:[%s1987 + $0x54] sm:$0xf]
        %v2432 = vld [vmem:[%s1987 + $0x58] sm:$0xf]
        %v2433 = vld [vmem:[%s1987 + $0x5c] sm:$0x1]
        %v2434 = vld [vmem:[%s1987 + $0x60] sm:$0xf]
        %v2435 = vld [vmem:[%s1987 + $0x64] sm:$0xf]
        %v2436 = vld [vmem:[%s1987 + $0x68] sm:$0x1]
        %v2437 = vld [vmem:[%s1987 + $0x6c] sm:$0xf]
        %v2438 = vld [vmem:[%s1987 + $0x70] sm:$0xf]
        %v2439 = vld [vmem:[%s1987 + $0x74] sm:$0x1]
        %v2440 = vld [vmem:[%s1987 + $0x78] sm:$0xf]
        %v2441 = vld [vmem:[%s1987 + $0x7c] sm:$0xf]
        %v2442 = vld [vmem:[%s1987 + $0x80] sm:$0x1]
        %v2443 = vld [vmem:[%s1987 + $0x84] sm:$0xf]
        %v2444 = vld [vmem:[%s1987 + $0x88] sm:$0xf]
        %v2445 = vld [vmem:[%s1987 + $0x8c] sm:$0x1]
        %v2446 = vld [vmem:[%s1987 + $0x90] sm:$0xf]
        %v2447 = vld [vmem:[%s1987 + $0x94] sm:$0xf]
        %v2448 = vld [vmem:[%s1987 + $0x98] sm:$0x1]
        %v2449 = vld [vmem:[%s1987 + $0x9c] sm:$0xf]
        %v2450 = vld [vmem:[%s1987 + $0xa0] sm:$0xf]
        %v2451 = vld [vmem:[%s1987 + $0xa4] sm:$0x1]
        %v2452 = vld [vmem:[%s1987 + $0xa8] sm:$0xf]
        %v2453 = vld [vmem:[%s1987 + $0xac] sm:$0xf]
        %v2454 = vld [vmem:[%s1987 + $0xb0] sm:$0x1]
        %v2455 = vld [vmem:[%s1987 + $0xb4] sm:$0xf]
        %v2456 = vld [vmem:[%s1987 + $0xb8] sm:$0xf]
        %v2457 = vld [vmem:[%s1987 + $0xbc] sm:$0x1]
        %v2459 = vshrl.u32 %v2410, 16
        %v2461 = vrot.slane %v2459, 4
        %v2462 = vshll.u32 %v2410, 16
        %v2464 = vrot.slane %v2462, 5
        %v2465 = vor.u32 %v2461, %v2464
        %v2466 = vrot.slane %v2465, 4
        %v2468 = vshll.u32 %v2411, 16
        %v2470 = vrot.slane %v2468, 5
        %v2471 = vsel %vm675, %v2466, %v2470
        %v2472 = vshrl.u32 %v2411, 16
        %v2474 = vrot.slane %v2472, 4
        %v2475 = vor.u32 %v2474, %v2470
        %v2476 = vrot.slane %v2475, 4
        %v2478 = vshll.u32 %v2412, 16
        %v2480 = vrot.slane %v2478, 5
        %v2481 = vsel %vm675, %v2476, %v2480
        %v2483 = vshrl.u32 %v2413, 16
        %v2485 = vrot.slane %v2483, 4
        %v2486 = vshll.u32 %v2413, 16
        %v2488 = vrot.slane %v2486, 5
        %v2489 = vor.u32 %v2485, %v2488
        %v2490 = vrot.slane %v2489, 4
        %v2492 = vshll.u32 %v2414, 16
        %v2494 = vrot.slane %v2492, 5
        %v2495 = vsel %vm675, %v2490, %v2494
        %v2496 = vshrl.u32 %v2414, 16
        %v2498 = vrot.slane %v2496, 4
        %v2499 = vor.u32 %v2498, %v2494
        %v2500 = vrot.slane %v2499, 4
        %v2502 = vshll.u32 %v2415, 16
        %v2504 = vrot.slane %v2502, 5
        %v2505 = vsel %vm675, %v2500, %v2504
        %v2507 = vshrl.u32 %v2416, 16
        %v2509 = vrot.slane %v2507, 4
        %v2510 = vshll.u32 %v2416, 16
        %v2512 = vrot.slane %v2510, 5
        %v2513 = vor.u32 %v2509, %v2512
        %v2514 = vrot.slane %v2513, 4
        %v2516 = vshll.u32 %v2417, 16
        %v2518 = vrot.slane %v2516, 5
        %v2519 = vsel %vm675, %v2514, %v2518
        %v2520 = vshrl.u32 %v2417, 16
        %v2522 = vrot.slane %v2520, 4
        %v2523 = vor.u32 %v2522, %v2518
        %v2524 = vrot.slane %v2523, 4
        %v2526 = vshll.u32 %v2418, 16
        %v2528 = vrot.slane %v2526, 5
        %v2529 = vsel %vm675, %v2524, %v2528
        %v2531 = vshrl.u32 %v2419, 16
        %v2533 = vrot.slane %v2531, 4
        %v2534 = vshll.u32 %v2419, 16
        %v2536 = vrot.slane %v2534, 5
        %v2537 = vor.u32 %v2533, %v2536
        %v2538 = vrot.slane %v2537, 4
        %v2540 = vshll.u32 %v2420, 16
        %v2542 = vrot.slane %v2540, 5
        %v2543 = vsel %vm675, %v2538, %v2542
        %v2544 = vshrl.u32 %v2420, 16
        %v2546 = vrot.slane %v2544, 4
        %v2547 = vor.u32 %v2546, %v2542
        %v2548 = vrot.slane %v2547, 4
        %v2550 = vshll.u32 %v2421, 16
        %v2552 = vrot.slane %v2550, 5
        %v2553 = vsel %vm675, %v2548, %v2552
        %v2555 = vshrl.u32 %v2422, 16
        %v2557 = vrot.slane %v2555, 4
        %v2558 = vshll.u32 %v2422, 16
        %v2560 = vrot.slane %v2558, 5
        %v2561 = vor.u32 %v2557, %v2560
        %v2562 = vrot.slane %v2561, 4
        %v2564 = vshll.u32 %v2423, 16
        %v2566 = vrot.slane %v2564, 5
        %v2567 = vsel %vm675, %v2562, %v2566
        %v2568 = vshrl.u32 %v2423, 16
        %v2570 = vrot.slane %v2568, 4
        %v2571 = vor.u32 %v2570, %v2566
        %v2572 = vrot.slane %v2571, 4
        %v2574 = vshll.u32 %v2424, 16
        %v2576 = vrot.slane %v2574, 5
        %v2577 = vsel %vm675, %v2572, %v2576
        %v2579 = vshrl.u32 %v2425, 16
        %v2581 = vrot.slane %v2579, 4
        %v2582 = vshll.u32 %v2425, 16
        %v2584 = vrot.slane %v2582, 5
        %v2585 = vor.u32 %v2581, %v2584
        %v2586 = vrot.slane %v2585, 4
        %v2588 = vshll.u32 %v2426, 16
        %v2590 = vrot.slane %v2588, 5
        %v2591 = vsel %vm675, %v2586, %v2590
        %v2592 = vshrl.u32 %v2426, 16
        %v2594 = vrot.slane %v2592, 4
        %v2595 = vor.u32 %v2594, %v2590
        %v2596 = vrot.slane %v2595, 4
        %v2598 = vshll.u32 %v2427, 16
        %v2600 = vrot.slane %v2598, 5
        %v2601 = vsel %vm675, %v2596, %v2600
        %v2603 = vshrl.u32 %v2428, 16
        %v2605 = vrot.slane %v2603, 4
        %v2606 = vshll.u32 %v2428, 16
        %v2608 = vrot.slane %v2606, 5
        %v2609 = vor.u32 %v2605, %v2608
        %v2610 = vrot.slane %v2609, 4
        %v2612 = vshll.u32 %v2429, 16
        %v2614 = vrot.slane %v2612, 5
        %v2615 = vsel %vm675, %v2610, %v2614
        %v2616 = vshrl.u32 %v2429, 16
        %v2618 = vrot.slane %v2616, 4
        %v2619 = vor.u32 %v2618, %v2614
        %v2620 = vrot.slane %v2619, 4
        %v2622 = vshll.u32 %v2430, 16
        %v2624 = vrot.slane %v2622, 5
        %v2625 = vsel %vm675, %v2620, %v2624
        %v2627 = vshrl.u32 %v2431, 16
        %v2629 = vrot.slane %v2627, 4
        %v2630 = vshll.u32 %v2431, 16
        %v2632 = vrot.slane %v2630, 5
        %v2633 = vor.u32 %v2629, %v2632
        %v2634 = vrot.slane %v2633, 4
        %v2636 = vshll.u32 %v2432, 16
        %v2638 = vrot.slane %v2636, 5
        %v2639 = vsel %vm675, %v2634, %v2638
        %v2640 = vshrl.u32 %v2432, 16
        %v2642 = vrot.slane %v2640, 4
        %v2643 = vor.u32 %v2642, %v2638
        %v2644 = vrot.slane %v2643, 4
        %v2646 = vshll.u32 %v2433, 16
        %v2648 = vrot.slane %v2646, 5
        %v2649 = vsel %vm675, %v2644, %v2648
        %v2651 = vshrl.u32 %v2434, 16
        %v2653 = vrot.slane %v2651, 4
        %v2654 = vshll.u32 %v2434, 16
        %v2656 = vrot.slane %v2654, 5
        %v2657 = vor.u32 %v2653, %v2656
        %v2658 = vrot.slane %v2657, 4
        %v2660 = vshll.u32 %v2435, 16
        %v2662 = vrot.slane %v2660, 5
        %v2663 = vsel %vm675, %v2658, %v2662
        %v2664 = vshrl.u32 %v2435, 16
        %v2666 = vrot.slane %v2664, 4
        %v2667 = vor.u32 %v2666, %v2662
        %v2668 = vrot.slane %v2667, 4
        %v2670 = vshll.u32 %v2436, 16
        %v2672 = vrot.slane %v2670, 5
        %v2673 = vsel %vm675, %v2668, %v2672
        %v2675 = vshrl.u32 %v2437, 16
        %v2677 = vrot.slane %v2675, 4
        %v2678 = vshll.u32 %v2437, 16
        %v2680 = vrot.slane %v2678, 5
        %v2681 = vor.u32 %v2677, %v2680
        %v2682 = vrot.slane %v2681, 4
        %v2684 = vshll.u32 %v2438, 16
        %v2686 = vrot.slane %v2684, 5
        %v2687 = vsel %vm675, %v2682, %v2686
        %v2688 = vshrl.u32 %v2438, 16
        %v2690 = vrot.slane %v2688, 4
        %v2691 = vor.u32 %v2690, %v2686
        %v2692 = vrot.slane %v2691, 4
        %v2694 = vshll.u32 %v2439, 16
        %v2696 = vrot.slane %v2694, 5
        %v2697 = vsel %vm675, %v2692, %v2696
        %v2699 = vshrl.u32 %v2440, 16
        %v2701 = vrot.slane %v2699, 4
        %v2702 = vshll.u32 %v2440, 16
        %v2704 = vrot.slane %v2702, 5
        %v2705 = vor.u32 %v2701, %v2704
        %v2706 = vrot.slane %v2705, 4
        %v2708 = vshll.u32 %v2441, 16
        %v2710 = vrot.slane %v2708, 5
        %v2711 = vsel %vm675, %v2706, %v2710
        %v2712 = vshrl.u32 %v2441, 16
        %v2714 = vrot.slane %v2712, 4
        %v2715 = vor.u32 %v2714, %v2710
        %v2716 = vrot.slane %v2715, 4
        %v2718 = vshll.u32 %v2442, 16
        %v2720 = vrot.slane %v2718, 5
        %v2721 = vsel %vm675, %v2716, %v2720
        %v2723 = vshrl.u32 %v2443, 16
        %v2725 = vrot.slane %v2723, 4
        %v2726 = vshll.u32 %v2443, 16
        %v2728 = vrot.slane %v2726, 5
        %v2729 = vor.u32 %v2725, %v2728
        %v2730 = vrot.slane %v2729, 4
        %v2732 = vshll.u32 %v2444, 16
        %v2734 = vrot.slane %v2732, 5
        %v2735 = vsel %vm675, %v2730, %v2734
        %v2736 = vshrl.u32 %v2444, 16
        %v2738 = vrot.slane %v2736, 4
        %v2739 = vor.u32 %v2738, %v2734
        %v2740 = vrot.slane %v2739, 4
        %v2742 = vshll.u32 %v2445, 16
        %v2744 = vrot.slane %v2742, 5
        %v2745 = vsel %vm675, %v2740, %v2744
        %v2747 = vshrl.u32 %v2446, 16
        %v2749 = vrot.slane %v2747, 4
        %v2750 = vshll.u32 %v2446, 16
        %v2752 = vrot.slane %v2750, 5
        %v2753 = vor.u32 %v2749, %v2752
        %v2754 = vrot.slane %v2753, 4
        %v2756 = vshll.u32 %v2447, 16
        %v2758 = vrot.slane %v2756, 5
        %v2759 = vsel %vm675, %v2754, %v2758
        %v2760 = vshrl.u32 %v2447, 16
        %v2762 = vrot.slane %v2760, 4
        %v2763 = vor.u32 %v2762, %v2758
        %v2764 = vrot.slane %v2763, 4
        %v2766 = vshll.u32 %v2448, 16
        %v2768 = vrot.slane %v2766, 5
        %v2769 = vsel %vm675, %v2764, %v2768
        %v2771 = vshrl.u32 %v2449, 16
        %v2773 = vrot.slane %v2771, 4
        %v2774 = vshll.u32 %v2449, 16
        %v2776 = vrot.slane %v2774, 5
        %v2777 = vor.u32 %v2773, %v2776
        %v2778 = vrot.slane %v2777, 4
        %v2780 = vshll.u32 %v2450, 16
        %v2782 = vrot.slane %v2780, 5
        %v2783 = vsel %vm675, %v2778, %v2782
        %v2784 = vshrl.u32 %v2450, 16
        %v2786 = vrot.slane %v2784, 4
        %v2787 = vor.u32 %v2786, %v2782
        %v2788 = vrot.slane %v2787, 4
        %v2790 = vshll.u32 %v2451, 16
        %v2792 = vrot.slane %v2790, 5
        %v2793 = vsel %vm675, %v2788, %v2792
        %v2795 = vshrl.u32 %v2452, 16
        %v2797 = vrot.slane %v2795, 4
        %v2798 = vshll.u32 %v2452, 16
        %v2800 = vrot.slane %v2798, 5
        %v2801 = vor.u32 %v2797, %v2800
        %v2802 = vrot.slane %v2801, 4
        %v2804 = vshll.u32 %v2453, 16
        %v2806 = vrot.slane %v2804, 5
        %v2807 = vsel %vm675, %v2802, %v2806
        %v2808 = vshrl.u32 %v2453, 16
        %v2810 = vrot.slane %v2808, 4
        %v2811 = vor.u32 %v2810, %v2806
        %v2812 = vrot.slane %v2811, 4
        %v2814 = vshll.u32 %v2454, 16
        %v2816 = vrot.slane %v2814, 5
        %v2817 = vsel %vm675, %v2812, %v2816
        %v2819 = vshrl.u32 %v2455, 16
        %v2821 = vrot.slane %v2819, 4
        %v2822 = vshll.u32 %v2455, 16
        %v2824 = vrot.slane %v2822, 5
        %v2825 = vor.u32 %v2821, %v2824
        %v2826 = vrot.slane %v2825, 4
        %v2828 = vshll.u32 %v2456, 16
        %v2830 = vrot.slane %v2828, 5
        %v2831 = vsel %vm675, %v2826, %v2830
        %v2832 = vshrl.u32 %v2456, 16
        %v2834 = vrot.slane %v2832, 4
        %v2835 = vor.u32 %v2834, %v2830
        %v2836 = vrot.slane %v2835, 4
        %v2838 = vshll.u32 %v2457, 16
        %v2840 = vrot.slane %v2838, 5
        %v2841 = vsel %vm675, %v2836, %v2840
        %s2842 = scalar_lea.vmem %s1, 8
        %v2843 = vld [vmem:[%s2842] sm:$0x3]
        %v2844 = vld [vmem:[#allocation2] sm:$0xff]
        %v2845 = vld [vmem:[#allocation2 + $0x8] sm:$0xff]
        %v2846 = vld [vmem:[#allocation2 + $0x10] sm:$0xff]
        %v2847 = vld [vmem:[#allocation2 + $0x18] sm:$0xff]
        %v2848 = vld [vmem:[#allocation2 + $0x20] sm:$0xff]
        %v2849 = vld [vmem:[#allocation2 + $0x28] sm:$0xff]
        %v2850 = vld [vmem:[#allocation2 + $0x30] sm:$0xff]
        %v2851 = vld [vmem:[#allocation2 + $0x38] sm:$0xff]
        %v2852 = vld [vmem:[#allocation2 + $0x40] sm:$0xff]
        %v2853 = vld [vmem:[#allocation2 + $0x48] sm:$0xff]
        %v2854 = vld [vmem:[#allocation2 + $0x50] sm:$0xff]
        %v2855 = vld [vmem:[#allocation2 + $0x58] sm:$0xff]
        %v2856 = vld [vmem:[#allocation2 + $0x60] sm:$0xff]
        %v2857 = vld [vmem:[#allocation2 + $0x68] sm:$0xff]
        %v2858 = vld [vmem:[#allocation2 + $0x70] sm:$0xff]
        %v2859 = vld [vmem:[#allocation2 + $0x78] sm:$0xff]
        %v2860 = vld [vmem:[#allocation2 + $0x80] sm:$0xff]
        %v2861 = vld [vmem:[#allocation2 + $0x88] sm:$0xff]
        %v2862 = vld [vmem:[#allocation2 + $0x90] sm:$0xff]
        %v2863 = vld [vmem:[#allocation2 + $0x98] sm:$0xff]
        %v2864 = vld [vmem:[#allocation2 + $0xa0] sm:$0xff]
        %v2865 = vld [vmem:[#allocation2 + $0xa8] sm:$0xff]
        %v2866 = vld [vmem:[#allocation2 + $0xb0] sm:$0xff]
        %v2867 = vld [vmem:[#allocation2 + $0xb8] sm:$0xff]
        %v2868 = vld [vmem:[#allocation2 + $0xc0] sm:$0xff]
        %v2869 = vld [vmem:[#allocation2 + $0xc8] sm:$0xff]
        %v2870 = vld [vmem:[#allocation2 + $0xd0] sm:$0xff]
        %v2871 = vld [vmem:[#allocation2 + $0xd8] sm:$0xff]
        %v2872 = vld [vmem:[#allocation2 + $0xe0] sm:$0xff]
        %v2873 = vld [vmem:[#allocation2 + $0xe8] sm:$0xff]
        %v2874 = vld [vmem:[#allocation2 + $0xf0] sm:$0xff]
        %v2875 = vld [vmem:[#allocation2 + $0xf8] sm:$0xff]
        %v2876 = vunpack.c.l.b16 %v2471
        %v2877 = vunpack.c.l.b16 %v2481
        %v2878 = vunpack.c.l.b16 %v2495
        %v2879 = vunpack.c.l.b16 %v2505
        %v2880 = vunpack.c.l.b16 %v2519
        %v2881 = vunpack.c.l.b16 %v2529
        %v2882 = vunpack.c.l.b16 %v2543
        %v2883 = vunpack.c.l.b16 %v2553
        %v2884 = vunpack.c.l.b16 %v2567
        %v2885 = vunpack.c.l.b16 %v2577
        %v2886 = vunpack.c.l.b16 %v2591
        %v2887 = vunpack.c.l.b16 %v2601
        %v2888 = vunpack.c.l.b16 %v2615
        %v2889 = vunpack.c.l.b16 %v2625
        %v2890 = vunpack.c.l.b16 %v2639
        %v2891 = vunpack.c.l.b16 %v2649
        %v2892 = vunpack.c.l.b16 %v2663
        %v2893 = vunpack.c.l.b16 %v2673
        %v2894 = vunpack.c.l.b16 %v2687
        %v2895 = vunpack.c.l.b16 %v2697
        %v2896 = vunpack.c.l.b16 %v2711
        %v2897 = vunpack.c.l.b16 %v2721
        %v2898 = vunpack.c.l.b16 %v2735
        %v2899 = vunpack.c.l.b16 %v2745
        %v2900 = vunpack.c.l.b16 %v2759
        %v2901 = vunpack.c.l.b16 %v2769
        %v2902 = vunpack.c.l.b16 %v2783
        %v2903 = vunpack.c.l.b16 %v2793
        %v2904 = vunpack.c.l.b16 %v2807
        %v2905 = vunpack.c.l.b16 %v2817
        %v2906 = vunpack.c.l.b16 %v2831
        %v2907 = vunpack.c.l.b16 %v2841
        %v2908 = vpack.c.b16 %v2877, %v2876
        %v2909 = vpack.c.b16 %v2879, %v2878
        %v2910 = vpack.c.b16 %v2881, %v2880
        %v2911 = vpack.c.b16 %v2883, %v2882
        %v2912 = vpack.c.b16 %v2885, %v2884
        %v2913 = vpack.c.b16 %v2887, %v2886
        %v2914 = vpack.c.b16 %v2889, %v2888
        %v2915 = vpack.c.b16 %v2891, %v2890
        %v2916 = vpack.c.b16 %v2893, %v2892
        %v2917 = vpack.c.b16 %v2895, %v2894
        %v2918 = vpack.c.b16 %v2897, %v2896
        %v2919 = vpack.c.b16 %v2899, %v2898
        %v2920 = vpack.c.b16 %v2901, %v2900
        %v2921 = vpack.c.b16 %v2903, %v2902
        %v2922 = vpack.c.b16 %v2905, %v2904
        %v2923 = vpack.c.b16 %v2907, %v2906
        %v2925 = vsel %vm347, %v2908, 0
        %v2928 = vsel %vm347, %v2909, 0
        %v2931 = vsel %vm347, %v2910, 0
        %v2934 = vsel %vm347, %v2911, 0
        %v2937 = vsel %vm347, %v2912, 0
        %v2940 = vsel %vm347, %v2913, 0
        %v2943 = vsel %vm347, %v2914, 0
        %v2946 = vsel %vm347, %v2915, 0
        %v2949 = vsel %vm347, %v2916, 0
        %v2952 = vsel %vm347, %v2917, 0
        %v2955 = vsel %vm347, %v2918, 0
        %v2958 = vsel %vm347, %v2919, 0
        %v2961 = vsel %vm347, %v2920, 0
        %v2964 = vsel %vm347, %v2921, 0
        %v2967 = vsel %vm347, %v2922, 0
        %v2970 = vsel %vm347, %v2923, 0
        %v2973 = vsel %vm396, %v2843, 0
        %2975 = vmatprep.subr.bf16.mxu0 0
        %2976 = vmatpush1.bf16.msra.mxu0 0
        %2977 = vmatprep.subr.bf16.mxu0 0
        %2978 = vmatpush1.bf16.msra.mxu0 0
        %2979 = vmatprep.subr.bf16.mxu0 0
        %2980 = vmatpush1.bf16.msra.mxu0 0
        %2981 = vmatprep.subr.bf16.mxu0 0
        %2982 = vmatpush1.bf16.msra.mxu0 0
        %2983 = vmatprep.subr.bf16.mxu0 0
        %2984 = vmatpush1.bf16.msra.mxu0 0
        %2985 = vmatprep.subr.bf16.mxu0 0
        %2986 = vmatpush1.bf16.msra.mxu0 0
        %2987 = vmatprep.subr.bf16.mxu0 0
        %2988 = vmatpush1.bf16.msra.mxu0 0
        %2989 = vmatprep.subr.bf16.mxu0 0
        %2990 = vmatpush1.bf16.msra.mxu0 %v2973
        %2991 = vmatprep.subr.bf16.mxu0 0
        %2992 = vmatpush2.bf16.msra.mxu0 0
        %2993 = vmatprep.subr.bf16.mxu0 0
        %2994 = vmatpush2.bf16.msra.mxu0 0
        %2995 = vmatprep.subr.bf16.mxu0 0
        %2996 = vmatpush2.bf16.msra.mxu0 0
        %2997 = vmatprep.subr.bf16.mxu0 0
        %2998 = vmatpush2.bf16.msra.mxu0 0
        %2999 = vmatprep.subr.bf16.mxu0 0
        %3000 = vmatpush2.bf16.msra.mxu0 0
        %3001 = vmatprep.subr.bf16.mxu0 0
        %3002 = vmatpush2.bf16.msra.mxu0 0
        %3003 = vmatprep.subr.bf16.mxu0 0
        %3004 = vmatpush2.bf16.msra.mxu0 0
        %3005 = vmatprep.subr.bf16.mxu0 0
        %3006 = vmatpush2.bf16.msra.mxu0 0
        %3007 = vmatprep.mubr.bf16.mxu0 0
        %3008 = vmatmul.mubr.bf16.gmra.mxu0 %v2925
        %v3009 = vpop.f32.mrf.mxu0
        %v3010 = vadd.f32 0.0, %v3009
        %v3011 = vpop.f32.mrf.mxu0
        %v3012 = vpop.f32.mrf.mxu0
        %v3013 = vadd.f32 0.0, %v3012
        %v3014 = vpop.f32.mrf.mxu0
        %3015 = vmatprep.mubr.bf16.mxu0 0
        %3016 = vmatmul.mubr.bf16.gmra.mxu0 %v2928
        %v3017 = vpop.f32.mrf.mxu0
        %v3018 = vadd.f32 0.0, %v3017
        %v3019 = vpop.f32.mrf.mxu0
        %v3020 = vpop.f32.mrf.mxu0
        %v3021 = vadd.f32 0.0, %v3020
        %v3022 = vpop.f32.mrf.mxu0
        %3023 = vmatprep.mubr.bf16.mxu0 0
        %3024 = vmatmul.mubr.bf16.gmra.mxu0 %v2931
        %v3025 = vpop.f32.mrf.mxu0
        %v3026 = vadd.f32 0.0, %v3025
        %v3027 = vpop.f32.mrf.mxu0
        %v3028 = vpop.f32.mrf.mxu0
        %v3029 = vadd.f32 0.0, %v3028
        %v3030 = vpop.f32.mrf.mxu0
        %3031 = vmatprep.mubr.bf16.mxu0 0
        %3032 = vmatmul.mubr.bf16.gmra.mxu0 %v2934
        %v3033 = vpop.f32.mrf.mxu0
        %v3034 = vadd.f32 0.0, %v3033
        %v3035 = vpop.f32.mrf.mxu0
        %v3036 = vpop.f32.mrf.mxu0
        %v3037 = vadd.f32 0.0, %v3036
        %v3038 = vpop.f32.mrf.mxu0
        %3039 = vmatprep.mubr.bf16.mxu0 0
        %3040 = vmatmul.mubr.bf16.gmra.mxu0 %v2937
        %v3041 = vpop.f32.mrf.mxu0
        %v3042 = vadd.f32 0.0, %v3041
        %v3043 = vpop.f32.mrf.mxu0
        %v3044 = vpop.f32.mrf.mxu0
        %v3045 = vadd.f32 0.0, %v3044
        %v3046 = vpop.f32.mrf.mxu0
        %3047 = vmatprep.mubr.bf16.mxu0 0
        %3048 = vmatmul.mubr.bf16.gmra.mxu0 %v2940
        %v3049 = vpop.f32.mrf.mxu0
        %v3050 = vadd.f32 0.0, %v3049
        %v3051 = vpop.f32.mrf.mxu0
        %v3052 = vpop.f32.mrf.mxu0
        %v3053 = vadd.f32 0.0, %v3052
        %v3054 = vpop.f32.mrf.mxu0
        %3055 = vmatprep.mubr.bf16.mxu0 0
        %3056 = vmatmul.mubr.bf16.gmra.mxu0 %v2943
        %v3057 = vpop.f32.mrf.mxu0
        %v3058 = vadd.f32 0.0, %v3057
        %v3059 = vpop.f32.mrf.mxu0
        %v3060 = vpop.f32.mrf.mxu0
        %v3061 = vadd.f32 0.0, %v3060
        %v3062 = vpop.f32.mrf.mxu0
        %3063 = vmatprep.mubr.bf16.mxu0 0
        %3064 = vmatmul.mubr.bf16.gmra.mxu0 %v2946
        %v3065 = vpop.f32.mrf.mxu0
        %v3066 = vadd.f32 0.0, %v3065
        %v3067 = vpop.f32.mrf.mxu0
        %v3068 = vpop.f32.mrf.mxu0
        %v3069 = vadd.f32 0.0, %v3068
        %v3070 = vpop.f32.mrf.mxu0
        %3071 = vmatprep.mubr.bf16.mxu0 0
        %3072 = vmatmul.mubr.bf16.gmra.mxu0 %v2949
        %v3073 = vpop.f32.mrf.mxu0
        %v3074 = vadd.f32 0.0, %v3073
        %v3075 = vpop.f32.mrf.mxu0
        %v3076 = vpop.f32.mrf.mxu0
        %v3077 = vadd.f32 0.0, %v3076
        %v3078 = vpop.f32.mrf.mxu0
        %3079 = vmatprep.mubr.bf16.mxu0 0
        %3080 = vmatmul.mubr.bf16.gmra.mxu0 %v2952
        %v3081 = vpop.f32.mrf.mxu0
        %v3082 = vadd.f32 0.0, %v3081
        %v3083 = vpop.f32.mrf.mxu0
        %v3084 = vpop.f32.mrf.mxu0
        %v3085 = vadd.f32 0.0, %v3084
        %v3086 = vpop.f32.mrf.mxu0
        %3087 = vmatprep.mubr.bf16.mxu0 0
        %3088 = vmatmul.mubr.bf16.gmra.mxu0 %v2955
        %v3089 = vpop.f32.mrf.mxu0
        %v3090 = vadd.f32 0.0, %v3089
        %v3091 = vpop.f32.mrf.mxu0
        %v3092 = vpop.f32.mrf.mxu0
        %v3093 = vadd.f32 0.0, %v3092
        %v3094 = vpop.f32.mrf.mxu0
        %3095 = vmatprep.mubr.bf16.mxu0 0
        %3096 = vmatmul.mubr.bf16.gmra.mxu0 %v2958
        %v3097 = vpop.f32.mrf.mxu0
        %v3098 = vadd.f32 0.0, %v3097
        %v3099 = vpop.f32.mrf.mxu0
        %v3100 = vpop.f32.mrf.mxu0
        %v3101 = vadd.f32 0.0, %v3100
        %v3102 = vpop.f32.mrf.mxu0
        %3103 = vmatprep.mubr.bf16.mxu0 0
        %3104 = vmatmul.mubr.bf16.gmra.mxu0 %v2961
        %v3105 = vpop.f32.mrf.mxu0
        %v3106 = vadd.f32 0.0, %v3105
        %v3107 = vpop.f32.mrf.mxu0
        %v3108 = vpop.f32.mrf.mxu0
        %v3109 = vadd.f32 0.0, %v3108
        %v3110 = vpop.f32.mrf.mxu0
        %3111 = vmatprep.mubr.bf16.mxu0 0
        %3112 = vmatmul.mubr.bf16.gmra.mxu0 %v2964
        %v3113 = vpop.f32.mrf.mxu0
        %v3114 = vadd.f32 0.0, %v3113
        %v3115 = vpop.f32.mrf.mxu0
        %v3116 = vpop.f32.mrf.mxu0
        %v3117 = vadd.f32 0.0, %v3116
        %v3118 = vpop.f32.mrf.mxu0
        %3119 = vmatprep.mubr.bf16.mxu0 0
        %3120 = vmatmul.mubr.bf16.gmra.mxu0 %v2967
        %v3121 = vpop.f32.mrf.mxu0
        %v3122 = vadd.f32 0.0, %v3121
        %v3123 = vpop.f32.mrf.mxu0
        %v3124 = vpop.f32.mrf.mxu0
        %v3125 = vadd.f32 0.0, %v3124
        %v3126 = vpop.f32.mrf.mxu0
        %3127 = vmatprep.mubr.bf16.mxu0 0
        %3128 = vmatmul.mubr.bf16.gmra.mxu0 %v2970
        %v3129 = vpop.f32.mrf.mxu0
        %v3130 = vadd.f32 0.0, %v3129
        %v3131 = vpop.f32.mrf.mxu0
        %v3132 = vpop.f32.mrf.mxu0
        %v3133 = vadd.f32 0.0, %v3132
        %v3134 = vpop.f32.mrf.mxu0
        %3135 = vdwg.mxu0
        %v3136 = vadd.f32 %v2844, %v3010
        %v3137 = vadd.f32 %v2845, %v3013
        %v3138 = vadd.f32 %v2846, %v3018
        %v3139 = vadd.f32 %v2847, %v3021
        %v3140 = vadd.f32 %v2848, %v3026
        %v3141 = vadd.f32 %v2849, %v3029
        %v3142 = vadd.f32 %v2850, %v3034
        %v3143 = vadd.f32 %v2851, %v3037
        %v3144 = vadd.f32 %v2852, %v3042
        %v3145 = vadd.f32 %v2853, %v3045
        %v3146 = vadd.f32 %v2854, %v3050
        %v3147 = vadd.f32 %v2855, %v3053
        %v3148 = vadd.f32 %v2856, %v3058
        %v3149 = vadd.f32 %v2857, %v3061
        %v3150 = vadd.f32 %v2858, %v3066
        %v3151 = vadd.f32 %v2859, %v3069
        %v3152 = vadd.f32 %v2860, %v3074
        %v3153 = vadd.f32 %v2861, %v3077
        %v3154 = vadd.f32 %v2862, %v3082
        %v3155 = vadd.f32 %v2863, %v3085
        %v3156 = vadd.f32 %v2864, %v3090
        %v3157 = vadd.f32 %v2865, %v3093
        %v3158 = vadd.f32 %v2866, %v3098
        %v3159 = vadd.f32 %v2867, %v3101
        %v3160 = vadd.f32 %v2868, %v3106
        %v3161 = vadd.f32 %v2869, %v3109
        %v3162 = vadd.f32 %v2870, %v3114
        %v3163 = vadd.f32 %v2871, %v3117
        %v3164 = vadd.f32 %v2872, %v3122
        %v3165 = vadd.f32 %v2873, %v3125
        %v3166 = vadd.f32 %v2874, %v3130
        %v3167 = vadd.f32 %v2875, %v3133
        %3168 = vst [vmem:[#allocation2] sm:$0xff] %v3136
        %3169 = vst [vmem:[#allocation2 + $0x8] sm:$0xff] %v3137
        %3170 = vst [vmem:[#allocation2 + $0x10] sm:$0xff] %v3138
        %3171 = vst [vmem:[#allocation2 + $0x18] sm:$0xff] %v3139
        %3172 = vst [vmem:[#allocation2 + $0x20] sm:$0xff] %v3140
        %3173 = vst [vmem:[#allocation2 + $0x28] sm:$0xff] %v3141
        %3174 = vst [vmem:[#allocation2 + $0x30] sm:$0xff] %v3142
        %3175 = vst [vmem:[#allocation2 + $0x38] sm:$0xff] %v3143
        %3176 = vst [vmem:[#allocation2 + $0x40] sm:$0xff] %v3144
        %3177 = vst [vmem:[#allocation2 + $0x48] sm:$0xff] %v3145
        %3178 = vst [vmem:[#allocation2 + $0x50] sm:$0xff] %v3146
        %3179 = vst [vmem:[#allocation2 + $0x58] sm:$0xff] %v3147
        %3180 = vst [vmem:[#allocation2 + $0x60] sm:$0xff] %v3148
        %3181 = vst [vmem:[#allocation2 + $0x68] sm:$0xff] %v3149
        %3182 = vst [vmem:[#allocation2 + $0x70] sm:$0xff] %v3150
        %3183 = vst [vmem:[#allocation2 + $0x78] sm:$0xff] %v3151
        %3184 = vst [vmem:[#allocation2 + $0x80] sm:$0xff] %v3152
        %3185 = vst [vmem:[#allocation2 + $0x88] sm:$0xff] %v3153
        %3186 = vst [vmem:[#allocation2 + $0x90] sm:$0xff] %v3154
        %3187 = vst [vmem:[#allocation2 + $0x98] sm:$0xff] %v3155
        %3188 = vst [vmem:[#allocation2 + $0xa0] sm:$0xff] %v3156
        %3189 = vst [vmem:[#allocation2 + $0xa8] sm:$0xff] %v3157
        %3190 = vst [vmem:[#allocation2 + $0xb0] sm:$0xff] %v3158
        %3191 = vst [vmem:[#allocation2 + $0xb8] sm:$0xff] %v3159
        %3192 = vst [vmem:[#allocation2 + $0xc0] sm:$0xff] %v3160
        %3193 = vst [vmem:[#allocation2 + $0xc8] sm:$0xff] %v3161
        %3194 = vst [vmem:[#allocation2 + $0xd0] sm:$0xff] %v3162
        %3195 = vst [vmem:[#allocation2 + $0xd8] sm:$0xff] %v3163
        %3196 = vst [vmem:[#allocation2 + $0xe0] sm:$0xff] %v3164
        %3197 = vst [vmem:[#allocation2 + $0xe8] sm:$0xff] %v3165
        %3198 = vst [vmem:[#allocation2 + $0xf0] sm:$0xff] %v3166
        %3199 = vst [vmem:[#allocation2 + $0xf8] sm:$0xff] %v3167
        %v3200 = vld [vmem:[%s1987] sm:$0xe]
        %v3201 = vld [vmem:[%s1987 + $0x4] sm:$0xf]
        %v3202 = vld [vmem:[%s1987 + $0x8] sm:$0x1]
        %v3203 = vld [vmem:[%s1987 + $0xc] sm:$0xe]
        %v3204 = vld [vmem:[%s1987 + $0x10] sm:$0xf]
        %v3205 = vld [vmem:[%s1987 + $0x14] sm:$0x1]
        %v3206 = vld [vmem:[%s1987 + $0x18] sm:$0xe]
        %v3207 = vld [vmem:[%s1987 + $0x1c] sm:$0xf]
        %v3208 = vld [vmem:[%s1987 + $0x20] sm:$0x1]
        %v3209 = vld [vmem:[%s1987 + $0x24] sm:$0xe]
        %v3210 = vld [vmem:[%s1987 + $0x28] sm:$0xf]
        %v3211 = vld [vmem:[%s1987 + $0x2c] sm:$0x1]
        %v3212 = vld [vmem:[%s1987 + $0x30] sm:$0xe]
        %v3213 = vld [vmem:[%s1987 + $0x34] sm:$0xf]
        %v3214 = vld [vmem:[%s1987 + $0x38] sm:$0x1]
        %v3215 = vld [vmem:[%s1987 + $0x3c] sm:$0xe]
        %v3216 = vld [vmem:[%s1987 + $0x40] sm:$0xf]
        %v3217 = vld [vmem:[%s1987 + $0x44] sm:$0x1]
        %v3218 = vld [vmem:[%s1987 + $0x48] sm:$0xe]
        %v3219 = vld [vmem:[%s1987 + $0x4c] sm:$0xf]
        %v3220 = vld [vmem:[%s1987 + $0x50] sm:$0x1]
        %v3221 = vld [vmem:[%s1987 + $0x54] sm:$0xe]
        %v3222 = vld [vmem:[%s1987 + $0x58] sm:$0xf]
        %v3223 = vld [vmem:[%s1987 + $0x5c] sm:$0x1]
        %v3224 = vld [vmem:[%s1987 + $0x60] sm:$0xe]
        %v3225 = vld [vmem:[%s1987 + $0x64] sm:$0xf]
        %v3226 = vld [vmem:[%s1987 + $0x68] sm:$0x1]
        %v3227 = vld [vmem:[%s1987 + $0x6c] sm:$0xe]
        %v3228 = vld [vmem:[%s1987 + $0x70] sm:$0xf]
        %v3229 = vld [vmem:[%s1987 + $0x74] sm:$0x1]
        %v3230 = vld [vmem:[%s1987 + $0x78] sm:$0xe]
        %v3231 = vld [vmem:[%s1987 + $0x7c] sm:$0xf]
        %v3232 = vld [vmem:[%s1987 + $0x80] sm:$0x1]
        %v3233 = vld [vmem:[%s1987 + $0x84] sm:$0xe]
        %v3234 = vld [vmem:[%s1987 + $0x88] sm:$0xf]
        %v3235 = vld [vmem:[%s1987 + $0x8c] sm:$0x1]
        %v3236 = vld [vmem:[%s1987 + $0x90] sm:$0xe]
        %v3237 = vld [vmem:[%s1987 + $0x94] sm:$0xf]
        %v3238 = vld [vmem:[%s1987 + $0x98] sm:$0x1]
        %v3239 = vld [vmem:[%s1987 + $0x9c] sm:$0xe]
        %v3240 = vld [vmem:[%s1987 + $0xa0] sm:$0xf]
        %v3241 = vld [vmem:[%s1987 + $0xa4] sm:$0x1]
        %v3242 = vld [vmem:[%s1987 + $0xa8] sm:$0xe]
        %v3243 = vld [vmem:[%s1987 + $0xac] sm:$0xf]
        %v3244 = vld [vmem:[%s1987 + $0xb0] sm:$0x1]
        %v3245 = vld [vmem:[%s1987 + $0xb4] sm:$0xe]
        %v3246 = vld [vmem:[%s1987 + $0xb8] sm:$0xf]
        %v3247 = vld [vmem:[%s1987 + $0xbc] sm:$0x1]
        %v3296 = vrot.slane %v3200, 5
        %v3297 = vrot.slane %v3296, 4
        %v3298 = vrot.slane %v3201, 5
        %v3299 = vsel %vm1516, %v3297, %v3298
        %v3300 = vrot.slane %v3298, 4
        %v3301 = vrot.slane %v3202, 5
        %v3302 = vsel %vm1516, %v3300, %v3301
        %v3303 = vrot.slane %v3203, 5
        %v3304 = vrot.slane %v3303, 4
        %v3305 = vrot.slane %v3204, 5
        %v3306 = vsel %vm1516, %v3304, %v3305
        %v3307 = vrot.slane %v3305, 4
        %v3308 = vrot.slane %v3205, 5
        %v3309 = vsel %vm1516, %v3307, %v3308
        %v3310 = vrot.slane %v3206, 5
        %v3311 = vrot.slane %v3310, 4
        %v3312 = vrot.slane %v3207, 5
        %v3313 = vsel %vm1516, %v3311, %v3312
        %v3314 = vrot.slane %v3312, 4
        %v3315 = vrot.slane %v3208, 5
        %v3316 = vsel %vm1516, %v3314, %v3315
        %v3317 = vrot.slane %v3209, 5
        %v3318 = vrot.slane %v3317, 4
        %v3319 = vrot.slane %v3210, 5
        %v3320 = vsel %vm1516, %v3318, %v3319
        %v3321 = vrot.slane %v3319, 4
        %v3322 = vrot.slane %v3211, 5
        %v3323 = vsel %vm1516, %v3321, %v3322
        %v3324 = vrot.slane %v3212, 5
        %v3325 = vrot.slane %v3324, 4
        %v3326 = vrot.slane %v3213, 5
        %v3327 = vsel %vm1516, %v3325, %v3326
        %v3328 = vrot.slane %v3326, 4
        %v3329 = vrot.slane %v3214, 5
        %v3330 = vsel %vm1516, %v3328, %v3329
        %v3331 = vrot.slane %v3215, 5
        %v3332 = vrot.slane %v3331, 4
        %v3333 = vrot.slane %v3216, 5
        %v3334 = vsel %vm1516, %v3332, %v3333
        %v3335 = vrot.slane %v3333, 4
        %v3336 = vrot.slane %v3217, 5
        %v3337 = vsel %vm1516, %v3335, %v3336
        %v3338 = vrot.slane %v3218, 5
        %v3339 = vrot.slane %v3338, 4
        %v3340 = vrot.slane %v3219, 5
        %v3341 = vsel %vm1516, %v3339, %v3340
        %v3342 = vrot.slane %v3340, 4
        %v3343 = vrot.slane %v3220, 5
        %v3344 = vsel %vm1516, %v3342, %v3343
        %v3345 = vrot.slane %v3221, 5
        %v3346 = vrot.slane %v3345, 4
        %v3347 = vrot.slane %v3222, 5
        %v3348 = vsel %vm1516, %v3346, %v3347
        %v3349 = vrot.slane %v3347, 4
        %v3350 = vrot.slane %v3223, 5
        %v3351 = vsel %vm1516, %v3349, %v3350
        %v3352 = vrot.slane %v3224, 5
        %v3353 = vrot.slane %v3352, 4
        %v3354 = vrot.slane %v3225, 5
        %v3355 = vsel %vm1516, %v3353, %v3354
        %v3356 = vrot.slane %v3354, 4
        %v3357 = vrot.slane %v3226, 5
        %v3358 = vsel %vm1516, %v3356, %v3357
        %v3359 = vrot.slane %v3227, 5
        %v3360 = vrot.slane %v3359, 4
        %v3361 = vrot.slane %v3228, 5
        %v3362 = vsel %vm1516, %v3360, %v3361
        %v3363 = vrot.slane %v3361, 4
        %v3364 = vrot.slane %v3229, 5
        %v3365 = vsel %vm1516, %v3363, %v3364
        %v3366 = vrot.slane %v3230, 5
        %v3367 = vrot.slane %v3366, 4
        %v3368 = vrot.slane %v3231, 5
        %v3369 = vsel %vm1516, %v3367, %v3368
        %v3370 = vrot.slane %v3368, 4
        %v3371 = vrot.slane %v3232, 5
        %v3372 = vsel %vm1516, %v3370, %v3371
        %v3373 = vrot.slane %v3233, 5
        %v3374 = vrot.slane %v3373, 4
        %v3375 = vrot.slane %v3234, 5
        %v3376 = vsel %vm1516, %v3374, %v3375
        %v3377 = vrot.slane %v3375, 4
        %v3378 = vrot.slane %v3235, 5
        %v3379 = vsel %vm1516, %v3377, %v3378
        %v3380 = vrot.slane %v3236, 5
        %v3381 = vrot.slane %v3380, 4
        %v3382 = vrot.slane %v3237, 5
        %v3383 = vsel %vm1516, %v3381, %v3382
        %v3384 = vrot.slane %v3382, 4
        %v3385 = vrot.slane %v3238, 5
        %v3386 = vsel %vm1516, %v3384, %v3385
        %v3387 = vrot.slane %v3239, 5
        %v3388 = vrot.slane %v3387, 4
        %v3389 = vrot.slane %v3240, 5
        %v3390 = vsel %vm1516, %v3388, %v3389
        %v3391 = vrot.slane %v3389, 4
        %v3392 = vrot.slane %v3241, 5
        %v3393 = vsel %vm1516, %v3391, %v3392
        %v3394 = vrot.slane %v3242, 5
        %v3395 = vrot.slane %v3394, 4
        %v3396 = vrot.slane %v3243, 5
        %v3397 = vsel %vm1516, %v3395, %v3396
        %v3398 = vrot.slane %v3396, 4
        %v3399 = vrot.slane %v3244, 5
        %v3400 = vsel %vm1516, %v3398, %v3399
        %v3401 = vrot.slane %v3245, 5
        %v3402 = vrot.slane %v3401, 4
        %v3403 = vrot.slane %v3246, 5
        %v3404 = vsel %vm1516, %v3402, %v3403
        %v3405 = vrot.slane %v3403, 4
        %v3406 = vrot.slane %v3247, 5
        %v3407 = vsel %vm1516, %v3405, %v3406
        %s3408 = scalar_lea.vmem %s1, 10
        %v3409 = vld [vmem:[%s3408] sm:$0x3]
        %v3410 = vld [vmem:[#allocation2] sm:$0xff]
        %v3411 = vld [vmem:[#allocation2 + $0x8] sm:$0xff]
        %v3412 = vld [vmem:[#allocation2 + $0x10] sm:$0xff]
        %v3413 = vld [vmem:[#allocation2 + $0x18] sm:$0xff]
        %v3414 = vld [vmem:[#allocation2 + $0x20] sm:$0xff]
        %v3415 = vld [vmem:[#allocation2 + $0x28] sm:$0xff]
        %v3416 = vld [vmem:[#allocation2 + $0x30] sm:$0xff]
        %v3417 = vld [vmem:[#allocation2 + $0x38] sm:$0xff]
        %v3418 = vld [vmem:[#allocation2 + $0x40] sm:$0xff]
        %v3419 = vld [vmem:[#allocation2 + $0x48] sm:$0xff]
        %v3420 = vld [vmem:[#allocation2 + $0x50] sm:$0xff]
        %v3421 = vld [vmem:[#allocation2 + $0x58] sm:$0xff]
        %v3422 = vld [vmem:[#allocation2 + $0x60] sm:$0xff]
        %v3423 = vld [vmem:[#allocation2 + $0x68] sm:$0xff]
        %v3424 = vld [vmem:[#allocation2 + $0x70] sm:$0xff]
        %v3425 = vld [vmem:[#allocation2 + $0x78] sm:$0xff]
        %v3426 = vld [vmem:[#allocation2 + $0x80] sm:$0xff]
        %v3427 = vld [vmem:[#allocation2 + $0x88] sm:$0xff]
        %v3428 = vld [vmem:[#allocation2 + $0x90] sm:$0xff]
        %v3429 = vld [vmem:[#allocation2 + $0x98] sm:$0xff]
        %v3430 = vld [vmem:[#allocation2 + $0xa0] sm:$0xff]
        %v3431 = vld [vmem:[#allocation2 + $0xa8] sm:$0xff]
        %v3432 = vld [vmem:[#allocation2 + $0xb0] sm:$0xff]
        %v3433 = vld [vmem:[#allocation2 + $0xb8] sm:$0xff]
        %v3434 = vld [vmem:[#allocation2 + $0xc0] sm:$0xff]
        %v3435 = vld [vmem:[#allocation2 + $0xc8] sm:$0xff]
        %v3436 = vld [vmem:[#allocation2 + $0xd0] sm:$0xff]
        %v3437 = vld [vmem:[#allocation2 + $0xd8] sm:$0xff]
        %v3438 = vld [vmem:[#allocation2 + $0xe0] sm:$0xff]
        %v3439 = vld [vmem:[#allocation2 + $0xe8] sm:$0xff]
        %v3440 = vld [vmem:[#allocation2 + $0xf0] sm:$0xff]
        %v3441 = vld [vmem:[#allocation2 + $0xf8] sm:$0xff]
        %v3442 = vunpack.c.l.b16 %v3299
        %v3443 = vunpack.c.l.b16 %v3302
        %v3444 = vunpack.c.l.b16 %v3306
        %v3445 = vunpack.c.l.b16 %v3309
        %v3446 = vunpack.c.l.b16 %v3313
        %v3447 = vunpack.c.l.b16 %v3316
        %v3448 = vunpack.c.l.b16 %v3320
        %v3449 = vunpack.c.l.b16 %v3323
        %v3450 = vunpack.c.l.b16 %v3327
        %v3451 = vunpack.c.l.b16 %v3330
        %v3452 = vunpack.c.l.b16 %v3334
        %v3453 = vunpack.c.l.b16 %v3337
        %v3454 = vunpack.c.l.b16 %v3341
        %v3455 = vunpack.c.l.b16 %v3344
        %v3456 = vunpack.c.l.b16 %v3348
        %v3457 = vunpack.c.l.b16 %v3351
        %v3458 = vunpack.c.l.b16 %v3355
        %v3459 = vunpack.c.l.b16 %v3358
        %v3460 = vunpack.c.l.b16 %v3362
        %v3461 = vunpack.c.l.b16 %v3365
        %v3462 = vunpack.c.l.b16 %v3369
        %v3463 = vunpack.c.l.b16 %v3372
        %v3464 = vunpack.c.l.b16 %v3376
        %v3465 = vunpack.c.l.b16 %v3379
        %v3466 = vunpack.c.l.b16 %v3383
        %v3467 = vunpack.c.l.b16 %v3386
        %v3468 = vunpack.c.l.b16 %v3390
        %v3469 = vunpack.c.l.b16 %v3393
        %v3470 = vunpack.c.l.b16 %v3397
        %v3471 = vunpack.c.l.b16 %v3400
        %v3472 = vunpack.c.l.b16 %v3404
        %v3473 = vunpack.c.l.b16 %v3407
        %v3474 = vpack.c.b16 %v3443, %v3442
        %v3475 = vpack.c.b16 %v3445, %v3444
        %v3476 = vpack.c.b16 %v3447, %v3446
        %v3477 = vpack.c.b16 %v3449, %v3448
        %v3478 = vpack.c.b16 %v3451, %v3450
        %v3479 = vpack.c.b16 %v3453, %v3452
        %v3480 = vpack.c.b16 %v3455, %v3454
        %v3481 = vpack.c.b16 %v3457, %v3456
        %v3482 = vpack.c.b16 %v3459, %v3458
        %v3483 = vpack.c.b16 %v3461, %v3460
        %v3484 = vpack.c.b16 %v3463, %v3462
        %v3485 = vpack.c.b16 %v3465, %v3464
        %v3486 = vpack.c.b16 %v3467, %v3466
        %v3487 = vpack.c.b16 %v3469, %v3468
        %v3488 = vpack.c.b16 %v3471, %v3470
        %v3489 = vpack.c.b16 %v3473, %v3472
        %v3491 = vsel %vm347, %v3474, 0
        %v3494 = vsel %vm347, %v3475, 0
        %v3497 = vsel %vm347, %v3476, 0
        %v3500 = vsel %vm347, %v3477, 0
        %v3503 = vsel %vm347, %v3478, 0
        %v3506 = vsel %vm347, %v3479, 0
        %v3509 = vsel %vm347, %v3480, 0
        %v3512 = vsel %vm347, %v3481, 0
        %v3515 = vsel %vm347, %v3482, 0
        %v3518 = vsel %vm347, %v3483, 0
        %v3521 = vsel %vm347, %v3484, 0
        %v3524 = vsel %vm347, %v3485, 0
        %v3527 = vsel %vm347, %v3486, 0
        %v3530 = vsel %vm347, %v3487, 0
        %v3533 = vsel %vm347, %v3488, 0
        %v3536 = vsel %vm347, %v3489, 0
        %v3539 = vsel %vm396, %v3409, 0
        %3541 = vmatprep.subr.bf16.mxu0 0
        %3542 = vmatpush1.bf16.msra.mxu0 0
        %3543 = vmatprep.subr.bf16.mxu0 0
        %3544 = vmatpush1.bf16.msra.mxu0 0
        %3545 = vmatprep.subr.bf16.mxu0 0
        %3546 = vmatpush1.bf16.msra.mxu0 0
        %3547 = vmatprep.subr.bf16.mxu0 0
        %3548 = vmatpush1.bf16.msra.mxu0 0
        %3549 = vmatprep.subr.bf16.mxu0 0
        %3550 = vmatpush1.bf16.msra.mxu0 0
        %3551 = vmatprep.subr.bf16.mxu0 0
        %3552 = vmatpush1.bf16.msra.mxu0 0
        %3553 = vmatprep.subr.bf16.mxu0 0
        %3554 = vmatpush1.bf16.msra.mxu0 0
        %3555 = vmatprep.subr.bf16.mxu0 0
        %3556 = vmatpush1.bf16.msra.mxu0 %v3539
        %3557 = vmatprep.subr.bf16.mxu0 0
        %3558 = vmatpush2.bf16.msra.mxu0 0
        %3559 = vmatprep.subr.bf16.mxu0 0
        %3560 = vmatpush2.bf16.msra.mxu0 0
        %3561 = vmatprep.subr.bf16.mxu0 0
        %3562 = vmatpush2.bf16.msra.mxu0 0
        %3563 = vmatprep.subr.bf16.mxu0 0
        %3564 = vmatpush2.bf16.msra.mxu0 0
        %3565 = vmatprep.subr.bf16.mxu0 0
        %3566 = vmatpush2.bf16.msra.mxu0 0
        %3567 = vmatprep.subr.bf16.mxu0 0
        %3568 = vmatpush2.bf16.msra.mxu0 0
        %3569 = vmatprep.subr.bf16.mxu0 0
        %3570 = vmatpush2.bf16.msra.mxu0 0
        %3571 = vmatprep.subr.bf16.mxu0 0
        %3572 = vmatpush2.bf16.msra.mxu0 0
        %3573 = vmatprep.mubr.bf16.mxu0 0
        %3574 = vmatmul.mubr.bf16.gmra.mxu0 %v3491
        %v3575 = vpop.f32.mrf.mxu0
        %v3576 = vadd.f32 0.0, %v3575
        %v3577 = vpop.f32.mrf.mxu0
        %v3578 = vpop.f32.mrf.mxu0
        %v3579 = vadd.f32 0.0, %v3578
        %v3580 = vpop.f32.mrf.mxu0
        %3581 = vmatprep.mubr.bf16.mxu0 0
        %3582 = vmatmul.mubr.bf16.gmra.mxu0 %v3494
        %v3583 = vpop.f32.mrf.mxu0
        %v3584 = vadd.f32 0.0, %v3583
        %v3585 = vpop.f32.mrf.mxu0
        %v3586 = vpop.f32.mrf.mxu0
        %v3587 = vadd.f32 0.0, %v3586
        %v3588 = vpop.f32.mrf.mxu0
        %3589 = vmatprep.mubr.bf16.mxu0 0
        %3590 = vmatmul.mubr.bf16.gmra.mxu0 %v3497
        %v3591 = vpop.f32.mrf.mxu0
        %v3592 = vadd.f32 0.0, %v3591
        %v3593 = vpop.f32.mrf.mxu0
        %v3594 = vpop.f32.mrf.mxu0
        %v3595 = vadd.f32 0.0, %v3594
        %v3596 = vpop.f32.mrf.mxu0
        %3597 = vmatprep.mubr.bf16.mxu0 0
        %3598 = vmatmul.mubr.bf16.gmra.mxu0 %v3500
        %v3599 = vpop.f32.mrf.mxu0
        %v3600 = vadd.f32 0.0, %v3599
        %v3601 = vpop.f32.mrf.mxu0
        %v3602 = vpop.f32.mrf.mxu0
        %v3603 = vadd.f32 0.0, %v3602
        %v3604 = vpop.f32.mrf.mxu0
        %3605 = vmatprep.mubr.bf16.mxu0 0
        %3606 = vmatmul.mubr.bf16.gmra.mxu0 %v3503
        %v3607 = vpop.f32.mrf.mxu0
        %v3608 = vadd.f32 0.0, %v3607
        %v3609 = vpop.f32.mrf.mxu0
        %v3610 = vpop.f32.mrf.mxu0
        %v3611 = vadd.f32 0.0, %v3610
        %v3612 = vpop.f32.mrf.mxu0
        %3613 = vmatprep.mubr.bf16.mxu0 0
        %3614 = vmatmul.mubr.bf16.gmra.mxu0 %v3506
        %v3615 = vpop.f32.mrf.mxu0
        %v3616 = vadd.f32 0.0, %v3615
        %v3617 = vpop.f32.mrf.mxu0
        %v3618 = vpop.f32.mrf.mxu0
        %v3619 = vadd.f32 0.0, %v3618
        %v3620 = vpop.f32.mrf.mxu0
        %3621 = vmatprep.mubr.bf16.mxu0 0
        %3622 = vmatmul.mubr.bf16.gmra.mxu0 %v3509
        %v3623 = vpop.f32.mrf.mxu0
        %v3624 = vadd.f32 0.0, %v3623
        %v3625 = vpop.f32.mrf.mxu0
        %v3626 = vpop.f32.mrf.mxu0
        %v3627 = vadd.f32 0.0, %v3626
        %v3628 = vpop.f32.mrf.mxu0
        %3629 = vmatprep.mubr.bf16.mxu0 0
        %3630 = vmatmul.mubr.bf16.gmra.mxu0 %v3512
        %v3631 = vpop.f32.mrf.mxu0
        %v3632 = vadd.f32 0.0, %v3631
        %v3633 = vpop.f32.mrf.mxu0
        %v3634 = vpop.f32.mrf.mxu0
        %v3635 = vadd.f32 0.0, %v3634
        %v3636 = vpop.f32.mrf.mxu0
        %3637 = vmatprep.mubr.bf16.mxu0 0
        %3638 = vmatmul.mubr.bf16.gmra.mxu0 %v3515
        %v3639 = vpop.f32.mrf.mxu0
        %v3640 = vadd.f32 0.0, %v3639
        %v3641 = vpop.f32.mrf.mxu0
        %v3642 = vpop.f32.mrf.mxu0
        %v3643 = vadd.f32 0.0, %v3642
        %v3644 = vpop.f32.mrf.mxu0
        %3645 = vmatprep.mubr.bf16.mxu0 0
        %3646 = vmatmul.mubr.bf16.gmra.mxu0 %v3518
        %v3647 = vpop.f32.mrf.mxu0
        %v3648 = vadd.f32 0.0, %v3647
        %v3649 = vpop.f32.mrf.mxu0
        %v3650 = vpop.f32.mrf.mxu0
        %v3651 = vadd.f32 0.0, %v3650
        %v3652 = vpop.f32.mrf.mxu0
        %3653 = vmatprep.mubr.bf16.mxu0 0
        %3654 = vmatmul.mubr.bf16.gmra.mxu0 %v3521
        %v3655 = vpop.f32.mrf.mxu0
        %v3656 = vadd.f32 0.0, %v3655
        %v3657 = vpop.f32.mrf.mxu0
        %v3658 = vpop.f32.mrf.mxu0
        %v3659 = vadd.f32 0.0, %v3658
        %v3660 = vpop.f32.mrf.mxu0
        %3661 = vmatprep.mubr.bf16.mxu0 0
        %3662 = vmatmul.mubr.bf16.gmra.mxu0 %v3524
        %v3663 = vpop.f32.mrf.mxu0
        %v3664 = vadd.f32 0.0, %v3663
        %v3665 = vpop.f32.mrf.mxu0
        %v3666 = vpop.f32.mrf.mxu0
        %v3667 = vadd.f32 0.0, %v3666
        %v3668 = vpop.f32.mrf.mxu0
        %3669 = vmatprep.mubr.bf16.mxu0 0
        %3670 = vmatmul.mubr.bf16.gmra.mxu0 %v3527
        %v3671 = vpop.f32.mrf.mxu0
        %v3672 = vadd.f32 0.0, %v3671
        %v3673 = vpop.f32.mrf.mxu0
        %v3674 = vpop.f32.mrf.mxu0
        %v3675 = vadd.f32 0.0, %v3674
        %v3676 = vpop.f32.mrf.mxu0
        %3677 = vmatprep.mubr.bf16.mxu0 0
        %3678 = vmatmul.mubr.bf16.gmra.mxu0 %v3530
        %v3679 = vpop.f32.mrf.mxu0
        %v3680 = vadd.f32 0.0, %v3679
        %v3681 = vpop.f32.mrf.mxu0
        %v3682 = vpop.f32.mrf.mxu0
        %v3683 = vadd.f32 0.0, %v3682
        %v3684 = vpop.f32.mrf.mxu0
        %3685 = vmatprep.mubr.bf16.mxu0 0
        %3686 = vmatmul.mubr.bf16.gmra.mxu0 %v3533
        %v3687 = vpop.f32.mrf.mxu0
        %v3688 = vadd.f32 0.0, %v3687
        %v3689 = vpop.f32.mrf.mxu0
        %v3690 = vpop.f32.mrf.mxu0
        %v3691 = vadd.f32 0.0, %v3690
        %v3692 = vpop.f32.mrf.mxu0
        %3693 = vmatprep.mubr.bf16.mxu0 0
        %3694 = vmatmul.mubr.bf16.gmra.mxu0 %v3536
        %v3695 = vpop.f32.mrf.mxu0
        %v3696 = vadd.f32 0.0, %v3695
        %v3697 = vpop.f32.mrf.mxu0
        %v3698 = vpop.f32.mrf.mxu0
        %v3699 = vadd.f32 0.0, %v3698
        %v3700 = vpop.f32.mrf.mxu0
        %3701 = vdwg.mxu0
        %v3702 = vadd.f32 %v3410, %v3576
        %v3703 = vadd.f32 %v3411, %v3579
        %v3704 = vadd.f32 %v3412, %v3584
        %v3705 = vadd.f32 %v3413, %v3587
        %v3706 = vadd.f32 %v3414, %v3592
        %v3707 = vadd.f32 %v3415, %v3595
        %v3708 = vadd.f32 %v3416, %v3600
        %v3709 = vadd.f32 %v3417, %v3603
        %v3710 = vadd.f32 %v3418, %v3608
        %v3711 = vadd.f32 %v3419, %v3611
        %v3712 = vadd.f32 %v3420, %v3616
        %v3713 = vadd.f32 %v3421, %v3619
        %v3714 = vadd.f32 %v3422, %v3624
        %v3715 = vadd.f32 %v3423, %v3627
        %v3716 = vadd.f32 %v3424, %v3632
        %v3717 = vadd.f32 %v3425, %v3635
        %v3718 = vadd.f32 %v3426, %v3640
        %v3719 = vadd.f32 %v3427, %v3643
        %v3720 = vadd.f32 %v3428, %v3648
        %v3721 = vadd.f32 %v3429, %v3651
        %v3722 = vadd.f32 %v3430, %v3656
        %v3723 = vadd.f32 %v3431, %v3659
        %v3724 = vadd.f32 %v3432, %v3664
        %v3725 = vadd.f32 %v3433, %v3667
        %v3726 = vadd.f32 %v3434, %v3672
        %v3727 = vadd.f32 %v3435, %v3675
        %v3728 = vadd.f32 %v3436, %v3680
        %v3729 = vadd.f32 %v3437, %v3683
        %v3730 = vadd.f32 %v3438, %v3688
        %v3731 = vadd.f32 %v3439, %v3691
        %v3732 = vadd.f32 %v3440, %v3696
        %v3733 = vadd.f32 %v3441, %v3699
        %3734 = vst [vmem:[#allocation2] sm:$0xff] %v3702
        %3735 = vst [vmem:[#allocation2 + $0x8] sm:$0xff] %v3703
        %3736 = vst [vmem:[#allocation2 + $0x10] sm:$0xff] %v3704
        %3737 = vst [vmem:[#allocation2 + $0x18] sm:$0xff] %v3705
        %3738 = vst [vmem:[#allocation2 + $0x20] sm:$0xff] %v3706
        %3739 = vst [vmem:[#allocation2 + $0x28] sm:$0xff] %v3707
        %3740 = vst [vmem:[#allocation2 + $0x30] sm:$0xff] %v3708
        %3741 = vst [vmem:[#allocation2 + $0x38] sm:$0xff] %v3709
        %3742 = vst [vmem:[#allocation2 + $0x40] sm:$0xff] %v3710
        %3743 = vst [vmem:[#allocation2 + $0x48] sm:$0xff] %v3711
        %3744 = vst [vmem:[#allocation2 + $0x50] sm:$0xff] %v3712
        %3745 = vst [vmem:[#allocation2 + $0x58] sm:$0xff] %v3713
        %3746 = vst [vmem:[#allocation2 + $0x60] sm:$0xff] %v3714
        %3747 = vst [vmem:[#allocation2 + $0x68] sm:$0xff] %v3715
        %3748 = vst [vmem:[#allocation2 + $0x70] sm:$0xff] %v3716
        %3749 = vst [vmem:[#allocation2 + $0x78] sm:$0xff] %v3717
        %3750 = vst [vmem:[#allocation2 + $0x80] sm:$0xff] %v3718
        %3751 = vst [vmem:[#allocation2 + $0x88] sm:$0xff] %v3719
        %3752 = vst [vmem:[#allocation2 + $0x90] sm:$0xff] %v3720
        %3753 = vst [vmem:[#allocation2 + $0x98] sm:$0xff] %v3721
        %3754 = vst [vmem:[#allocation2 + $0xa0] sm:$0xff] %v3722
        %3755 = vst [vmem:[#allocation2 + $0xa8] sm:$0xff] %v3723
        %3756 = vst [vmem:[#allocation2 + $0xb0] sm:$0xff] %v3724
        %3757 = vst [vmem:[#allocation2 + $0xb8] sm:$0xff] %v3725
        %3758 = vst [vmem:[#allocation2 + $0xc0] sm:$0xff] %v3726
        %3759 = vst [vmem:[#allocation2 + $0xc8] sm:$0xff] %v3727
        %3760 = vst [vmem:[#allocation2 + $0xd0] sm:$0xff] %v3728
        %3761 = vst [vmem:[#allocation2 + $0xd8] sm:$0xff] %v3729
        %3762 = vst [vmem:[#allocation2 + $0xe0] sm:$0xff] %v3730
        %3763 = vst [vmem:[#allocation2 + $0xe8] sm:$0xff] %v3731
        %3764 = vst [vmem:[#allocation2 + $0xf0] sm:$0xff] %v3732
        %3765 = vst [vmem:[#allocation2 + $0xf8] sm:$0xff] %v3733
        %s3766 = scalar_lea.vmem %s168, 24
        %v3767 = vld [vmem:[%s3766] sm:$0xf]
        %v3768 = vld [vmem:[%s3766 + $0x4] sm:$0xf]
        %v3769 = vld [vmem:[%s3766 + $0xc] sm:$0xf]
        %v3770 = vld [vmem:[%s3766 + $0x10] sm:$0xf]
        %v3771 = vld [vmem:[%s3766 + $0x18] sm:$0xf]
        %v3772 = vld [vmem:[%s3766 + $0x1c] sm:$0xf]
        %v3773 = vld [vmem:[%s3766 + $0x24] sm:$0xf]
        %v3774 = vld [vmem:[%s3766 + $0x28] sm:$0xf]
        %v3775 = vld [vmem:[%s3766 + $0x30] sm:$0xf]
        %v3776 = vld [vmem:[%s3766 + $0x34] sm:$0xf]
        %v3777 = vld [vmem:[%s3766 + $0x3c] sm:$0xf]
        %v3778 = vld [vmem:[%s3766 + $0x40] sm:$0xf]
        %v3779 = vld [vmem:[%s3766 + $0x48] sm:$0xf]
        %v3780 = vld [vmem:[%s3766 + $0x4c] sm:$0xf]
        %v3781 = vld [vmem:[%s3766 + $0x54] sm:$0xf]
        %v3782 = vld [vmem:[%s3766 + $0x58] sm:$0xf]
        %v3783 = vld [vmem:[%s3766 + $0x60] sm:$0xf]
        %v3784 = vld [vmem:[%s3766 + $0x64] sm:$0xf]
        %v3785 = vld [vmem:[%s3766 + $0x6c] sm:$0xf]
        %v3786 = vld [vmem:[%s3766 + $0x70] sm:$0xf]
        %v3787 = vld [vmem:[%s3766 + $0x78] sm:$0xf]
        %v3788 = vld [vmem:[%s3766 + $0x7c] sm:$0xf]
        %v3789 = vld [vmem:[%s3766 + $0x84] sm:$0xf]
        %v3790 = vld [vmem:[%s3766 + $0x88] sm:$0xf]
        %v3791 = vld [vmem:[%s3766 + $0x90] sm:$0xf]
        %v3792 = vld [vmem:[%s3766 + $0x94] sm:$0xf]
        %v3793 = vld [vmem:[%s3766 + $0x9c] sm:$0xf]
        %v3794 = vld [vmem:[%s3766 + $0xa0] sm:$0xf]
        %v3795 = vld [vmem:[%s3766 + $0xa8] sm:$0xf]
        %v3796 = vld [vmem:[%s3766 + $0xac] sm:$0xf]
        %v3797 = vld [vmem:[%s3766 + $0xb4] sm:$0xf]
        %v3798 = vld [vmem:[%s3766 + $0xb8] sm:$0xf]
        %s3799 = scalar_lea.vmem %s1, 12
        %v3800 = vld [vmem:[%s3799] sm:$0x3]
        %v3801 = vld [vmem:[#allocation2] sm:$0xff]
        %v3802 = vld [vmem:[#allocation2 + $0x8] sm:$0xff]
        %v3803 = vld [vmem:[#allocation2 + $0x10] sm:$0xff]
        %v3804 = vld [vmem:[#allocation2 + $0x18] sm:$0xff]
        %v3805 = vld [vmem:[#allocation2 + $0x20] sm:$0xff]
        %v3806 = vld [vmem:[#allocation2 + $0x28] sm:$0xff]
        %v3807 = vld [vmem:[#allocation2 + $0x30] sm:$0xff]
        %v3808 = vld [vmem:[#allocation2 + $0x38] sm:$0xff]
        %v3809 = vld [vmem:[#allocation2 + $0x40] sm:$0xff]
        %v3810 = vld [vmem:[#allocation2 + $0x48] sm:$0xff]
        %v3811 = vld [vmem:[#allocation2 + $0x50] sm:$0xff]
        %v3812 = vld [vmem:[#allocation2 + $0x58] sm:$0xff]
        %v3813 = vld [vmem:[#allocation2 + $0x60] sm:$0xff]
        %v3814 = vld [vmem:[#allocation2 + $0x68] sm:$0xff]
        %v3815 = vld [vmem:[#allocation2 + $0x70] sm:$0xff]
        %v3816 = vld [vmem:[#allocation2 + $0x78] sm:$0xff]
        %v3817 = vld [vmem:[#allocation2 + $0x80] sm:$0xff]
        %v3818 = vld [vmem:[#allocation2 + $0x88] sm:$0xff]
        %v3819 = vld [vmem:[#allocation2 + $0x90] sm:$0xff]
        %v3820 = vld [vmem:[#allocation2 + $0x98] sm:$0xff]
        %v3821 = vld [vmem:[#allocation2 + $0xa0] sm:$0xff]
        %v3822 = vld [vmem:[#allocation2 + $0xa8] sm:$0xff]
        %v3823 = vld [vmem:[#allocation2 + $0xb0] sm:$0xff]
        %v3824 = vld [vmem:[#allocation2 + $0xb8] sm:$0xff]
        %v3825 = vld [vmem:[#allocation2 + $0xc0] sm:$0xff]
        %v3826 = vld [vmem:[#allocation2 + $0xc8] sm:$0xff]
        %v3827 = vld [vmem:[#allocation2 + $0xd0] sm:$0xff]
        %v3828 = vld [vmem:[#allocation2 + $0xd8] sm:$0xff]
        %v3829 = vld [vmem:[#allocation2 + $0xe0] sm:$0xff]
        %v3830 = vld [vmem:[#allocation2 + $0xe8] sm:$0xff]
        %v3831 = vld [vmem:[#allocation2 + $0xf0] sm:$0xff]
        %v3832 = vld [vmem:[#allocation2 + $0xf8] sm:$0xff]
        %v3865 = vunpack.c.l.b16 %v3767
        %v3866 = vunpack.c.l.b16 %v3768
        %v3867 = vunpack.c.l.b16 %v3769
        %v3868 = vunpack.c.l.b16 %v3770
        %v3869 = vunpack.c.l.b16 %v3771
        %v3870 = vunpack.c.l.b16 %v3772
        %v3871 = vunpack.c.l.b16 %v3773
        %v3872 = vunpack.c.l.b16 %v3774
        %v3873 = vunpack.c.l.b16 %v3775
        %v3874 = vunpack.c.l.b16 %v3776
        %v3875 = vunpack.c.l.b16 %v3777
        %v3876 = vunpack.c.l.b16 %v3778
        %v3877 = vunpack.c.l.b16 %v3779
        %v3878 = vunpack.c.l.b16 %v3780
        %v3879 = vunpack.c.l.b16 %v3781
        %v3880 = vunpack.c.l.b16 %v3782
        %v3881 = vunpack.c.l.b16 %v3783
        %v3882 = vunpack.c.l.b16 %v3784
        %v3883 = vunpack.c.l.b16 %v3785
        %v3884 = vunpack.c.l.b16 %v3786
        %v3885 = vunpack.c.l.b16 %v3787
        %v3886 = vunpack.c.l.b16 %v3788
        %v3887 = vunpack.c.l.b16 %v3789
        %v3888 = vunpack.c.l.b16 %v3790
        %v3889 = vunpack.c.l.b16 %v3791
        %v3890 = vunpack.c.l.b16 %v3792
        %v3891 = vunpack.c.l.b16 %v3793
        %v3892 = vunpack.c.l.b16 %v3794
        %v3893 = vunpack.c.l.b16 %v3795
        %v3894 = vunpack.c.l.b16 %v3796
        %v3895 = vunpack.c.l.b16 %v3797
        %v3896 = vunpack.c.l.b16 %v3798
        %v3897 = vpack.c.b16 %v3866, %v3865
        %v3898 = vpack.c.b16 %v3868, %v3867
        %v3899 = vpack.c.b16 %v3870, %v3869
        %v3900 = vpack.c.b16 %v3872, %v3871
        %v3901 = vpack.c.b16 %v3874, %v3873
        %v3902 = vpack.c.b16 %v3876, %v3875
        %v3903 = vpack.c.b16 %v3878, %v3877
        %v3904 = vpack.c.b16 %v3880, %v3879
        %v3905 = vpack.c.b16 %v3882, %v3881
        %v3906 = vpack.c.b16 %v3884, %v3883
        %v3907 = vpack.c.b16 %v3886, %v3885
        %v3908 = vpack.c.b16 %v3888, %v3887
        %v3909 = vpack.c.b16 %v3890, %v3889
        %v3910 = vpack.c.b16 %v3892, %v3891
        %v3911 = vpack.c.b16 %v3894, %v3893
        %v3912 = vpack.c.b16 %v3896, %v3895
        %v3914 = vsel %vm347, %v3897, 0
        %v3917 = vsel %vm347, %v3898, 0
        %v3920 = vsel %vm347, %v3899, 0
        %v3923 = vsel %vm347, %v3900, 0
        %v3926 = vsel %vm347, %v3901, 0
        %v3929 = vsel %vm347, %v3902, 0
        %v3932 = vsel %vm347, %v3903, 0
        %v3935 = vsel %vm347, %v3904, 0
        %v3938 = vsel %vm347, %v3905, 0
        %v3941 = vsel %vm347, %v3906, 0
        %v3944 = vsel %vm347, %v3907, 0
        %v3947 = vsel %vm347, %v3908, 0
        %v3950 = vsel %vm347, %v3909, 0
        %v3953 = vsel %vm347, %v3910, 0
        %v3956 = vsel %vm347, %v3911, 0
        %v3959 = vsel %vm347, %v3912, 0
        %v3962 = vsel %vm396, %v3800, 0
        %3964 = vmatprep.subr.bf16.mxu0 0
        %3965 = vmatpush1.bf16.msra.mxu0 0
        %3966 = vmatprep.subr.bf16.mxu0 0
        %3967 = vmatpush1.bf16.msra.mxu0 0
        %3968 = vmatprep.subr.bf16.mxu0 0
        %3969 = vmatpush1.bf16.msra.mxu0 0
        %3970 = vmatprep.subr.bf16.mxu0 0
        %3971 = vmatpush1.bf16.msra.mxu0 0
        %3972 = vmatprep.subr.bf16.mxu0 0
        %3973 = vmatpush1.bf16.msra.mxu0 0
        %3974 = vmatprep.subr.bf16.mxu0 0
        %3975 = vmatpush1.bf16.msra.mxu0 0
        %3976 = vmatprep.subr.bf16.mxu0 0
        %3977 = vmatpush1.bf16.msra.mxu0 0
        %3978 = vmatprep.subr.bf16.mxu0 0
        %3979 = vmatpush1.bf16.msra.mxu0 %v3962
        %3980 = vmatprep.subr.bf16.mxu0 0
        %3981 = vmatpush2.bf16.msra.mxu0 0
        %3982 = vmatprep.subr.bf16.mxu0 0
        %3983 = vmatpush2.bf16.msra.mxu0 0
        %3984 = vmatprep.subr.bf16.mxu0 0
        %3985 = vmatpush2.bf16.msra.mxu0 0
        %3986 = vmatprep.subr.bf16.mxu0 0
        %3987 = vmatpush2.bf16.msra.mxu0 0
        %3988 = vmatprep.subr.bf16.mxu0 0
        %3989 = vmatpush2.bf16.msra.mxu0 0
        %3990 = vmatprep.subr.bf16.mxu0 0
        %3991 = vmatpush2.bf16.msra.mxu0 0
        %3992 = vmatprep.subr.bf16.mxu0 0
        %3993 = vmatpush2.bf16.msra.mxu0 0
        %3994 = vmatprep.subr.bf16.mxu0 0
        %3995 = vmatpush2.bf16.msra.mxu0 0
        %3996 = vmatprep.mubr.bf16.mxu0 0
        %3997 = vmatmul.mubr.bf16.gmra.mxu0 %v3914
        %v3998 = vpop.f32.mrf.mxu0
        %v3999 = vadd.f32 0.0, %v3998
        %v4000 = vpop.f32.mrf.mxu0
        %v4001 = vpop.f32.mrf.mxu0
        %v4002 = vadd.f32 0.0, %v4001
        %v4003 = vpop.f32.mrf.mxu0
        %4004 = vmatprep.mubr.bf16.mxu0 0
        %4005 = vmatmul.mubr.bf16.gmra.mxu0 %v3917
        %v4006 = vpop.f32.mrf.mxu0
        %v4007 = vadd.f32 0.0, %v4006
        %v4008 = vpop.f32.mrf.mxu0
        %v4009 = vpop.f32.mrf.mxu0
        %v4010 = vadd.f32 0.0, %v4009
        %v4011 = vpop.f32.mrf.mxu0
        %4012 = vmatprep.mubr.bf16.mxu0 0
        %4013 = vmatmul.mubr.bf16.gmra.mxu0 %v3920
        %v4014 = vpop.f32.mrf.mxu0
        %v4015 = vadd.f32 0.0, %v4014
        %v4016 = vpop.f32.mrf.mxu0
        %v4017 = vpop.f32.mrf.mxu0
        %v4018 = vadd.f32 0.0, %v4017
        %v4019 = vpop.f32.mrf.mxu0
        %4020 = vmatprep.mubr.bf16.mxu0 0
        %4021 = vmatmul.mubr.bf16.gmra.mxu0 %v3923
        %v4022 = vpop.f32.mrf.mxu0
        %v4023 = vadd.f32 0.0, %v4022
        %v4024 = vpop.f32.mrf.mxu0
        %v4025 = vpop.f32.mrf.mxu0
        %v4026 = vadd.f32 0.0, %v4025
        %v4027 = vpop.f32.mrf.mxu0
        %4028 = vmatprep.mubr.bf16.mxu0 0
        %4029 = vmatmul.mubr.bf16.gmra.mxu0 %v3926
        %v4030 = vpop.f32.mrf.mxu0
        %v4031 = vadd.f32 0.0, %v4030
        %v4032 = vpop.f32.mrf.mxu0
        %v4033 = vpop.f32.mrf.mxu0
        %v4034 = vadd.f32 0.0, %v4033
        %v4035 = vpop.f32.mrf.mxu0
        %4036 = vmatprep.mubr.bf16.mxu0 0
        %4037 = vmatmul.mubr.bf16.gmra.mxu0 %v3929
        %v4038 = vpop.f32.mrf.mxu0
        %v4039 = vadd.f32 0.0, %v4038
        %v4040 = vpop.f32.mrf.mxu0
        %v4041 = vpop.f32.mrf.mxu0
        %v4042 = vadd.f32 0.0, %v4041
        %v4043 = vpop.f32.mrf.mxu0
        %4044 = vmatprep.mubr.bf16.mxu0 0
        %4045 = vmatmul.mubr.bf16.gmra.mxu0 %v3932
        %v4046 = vpop.f32.mrf.mxu0
        %v4047 = vadd.f32 0.0, %v4046
        %v4048 = vpop.f32.mrf.mxu0
        %v4049 = vpop.f32.mrf.mxu0
        %v4050 = vadd.f32 0.0, %v4049
        %v4051 = vpop.f32.mrf.mxu0
        %4052 = vmatprep.mubr.bf16.mxu0 0
        %4053 = vmatmul.mubr.bf16.gmra.mxu0 %v3935
        %v4054 = vpop.f32.mrf.mxu0
        %v4055 = vadd.f32 0.0, %v4054
        %v4056 = vpop.f32.mrf.mxu0
        %v4057 = vpop.f32.mrf.mxu0
        %v4058 = vadd.f32 0.0, %v4057
        %v4059 = vpop.f32.mrf.mxu0
        %4060 = vmatprep.mubr.bf16.mxu0 0
        %4061 = vmatmul.mubr.bf16.gmra.mxu0 %v3938
        %v4062 = vpop.f32.mrf.mxu0
        %v4063 = vadd.f32 0.0, %v4062
        %v4064 = vpop.f32.mrf.mxu0
        %v4065 = vpop.f32.mrf.mxu0
        %v4066 = vadd.f32 0.0, %v4065
        %v4067 = vpop.f32.mrf.mxu0
        %4068 = vmatprep.mubr.bf16.mxu0 0
        %4069 = vmatmul.mubr.bf16.gmra.mxu0 %v3941
        %v4070 = vpop.f32.mrf.mxu0
        %v4071 = vadd.f32 0.0, %v4070
        %v4072 = vpop.f32.mrf.mxu0
        %v4073 = vpop.f32.mrf.mxu0
        %v4074 = vadd.f32 0.0, %v4073
        %v4075 = vpop.f32.mrf.mxu0
        %4076 = vmatprep.mubr.bf16.mxu0 0
        %4077 = vmatmul.mubr.bf16.gmra.mxu0 %v3944
        %v4078 = vpop.f32.mrf.mxu0
        %v4079 = vadd.f32 0.0, %v4078
        %v4080 = vpop.f32.mrf.mxu0
        %v4081 = vpop.f32.mrf.mxu0
        %v4082 = vadd.f32 0.0, %v4081
        %v4083 = vpop.f32.mrf.mxu0
        %4084 = vmatprep.mubr.bf16.mxu0 0
        %4085 = vmatmul.mubr.bf16.gmra.mxu0 %v3947
        %v4086 = vpop.f32.mrf.mxu0
        %v4087 = vadd.f32 0.0, %v4086
        %v4088 = vpop.f32.mrf.mxu0
        %v4089 = vpop.f32.mrf.mxu0
        %v4090 = vadd.f32 0.0, %v4089
        %v4091 = vpop.f32.mrf.mxu0
        %4092 = vmatprep.mubr.bf16.mxu0 0
        %4093 = vmatmul.mubr.bf16.gmra.mxu0 %v3950
        %v4094 = vpop.f32.mrf.mxu0
        %v4095 = vadd.f32 0.0, %v4094
        %v4096 = vpop.f32.mrf.mxu0
        %v4097 = vpop.f32.mrf.mxu0
        %v4098 = vadd.f32 0.0, %v4097
        %v4099 = vpop.f32.mrf.mxu0
        %4100 = vmatprep.mubr.bf16.mxu0 0
        %4101 = vmatmul.mubr.bf16.gmra.mxu0 %v3953
        %v4102 = vpop.f32.mrf.mxu0
        %v4103 = vadd.f32 0.0, %v4102
        %v4104 = vpop.f32.mrf.mxu0
        %v4105 = vpop.f32.mrf.mxu0
        %v4106 = vadd.f32 0.0, %v4105
        %v4107 = vpop.f32.mrf.mxu0
        %4108 = vmatprep.mubr.bf16.mxu0 0
        %4109 = vmatmul.mubr.bf16.gmra.mxu0 %v3956
        %v4110 = vpop.f32.mrf.mxu0
        %v4111 = vadd.f32 0.0, %v4110
        %v4112 = vpop.f32.mrf.mxu0
        %v4113 = vpop.f32.mrf.mxu0
        %v4114 = vadd.f32 0.0, %v4113
        %v4115 = vpop.f32.mrf.mxu0
        %4116 = vmatprep.mubr.bf16.mxu0 0
        %4117 = vmatmul.mubr.bf16.gmra.mxu0 %v3959
        %v4118 = vpop.f32.mrf.mxu0
        %v4119 = vadd.f32 0.0, %v4118
        %v4120 = vpop.f32.mrf.mxu0
        %v4121 = vpop.f32.mrf.mxu0
        %v4122 = vadd.f32 0.0, %v4121
        %v4123 = vpop.f32.mrf.mxu0
        %4124 = vdwg.mxu0
        %v4125 = vadd.f32 %v3801, %v3999
        %v4126 = vadd.f32 %v3802, %v4002
        %v4127 = vadd.f32 %v3803, %v4007
        %v4128 = vadd.f32 %v3804, %v4010
        %v4129 = vadd.f32 %v3805, %v4015
        %v4130 = vadd.f32 %v3806, %v4018
        %v4131 = vadd.f32 %v3807, %v4023
        %v4132 = vadd.f32 %v3808, %v4026
        %v4133 = vadd.f32 %v3809, %v4031
        %v4134 = vadd.f32 %v3810, %v4034
        %v4135 = vadd.f32 %v3811, %v4039
        %v4136 = vadd.f32 %v3812, %v4042
        %v4137 = vadd.f32 %v3813, %v4047
        %v4138 = vadd.f32 %v3814, %v4050
        %v4139 = vadd.f32 %v3815, %v4055
        %v4140 = vadd.f32 %v3816, %v4058
        %v4141 = vadd.f32 %v3817, %v4063
        %v4142 = vadd.f32 %v3818, %v4066
        %v4143 = vadd.f32 %v3819, %v4071
        %v4144 = vadd.f32 %v3820, %v4074
        %v4145 = vadd.f32 %v3821, %v4079
        %v4146 = vadd.f32 %v3822, %v4082
        %v4147 = vadd.f32 %v3823, %v4087
        %v4148 = vadd.f32 %v3824, %v4090
        %v4149 = vadd.f32 %v3825, %v4095
        %v4150 = vadd.f32 %v3826, %v4098
        %v4151 = vadd.f32 %v3827, %v4103
        %v4152 = vadd.f32 %v3828, %v4106
        %v4153 = vadd.f32 %v3829, %v4111
        %v4154 = vadd.f32 %v3830, %v4114
        %v4155 = vadd.f32 %v3831, %v4119
        %v4156 = vadd.f32 %v3832, %v4122
        %4157 = vst [vmem:[#allocation2] sm:$0xff] %v4125
        %4158 = vst [vmem:[#allocation2 + $0x8] sm:$0xff] %v4126
        %4159 = vst [vmem:[#allocation2 + $0x10] sm:$0xff] %v4127
        %4160 = vst [vmem:[#allocation2 + $0x18] sm:$0xff] %v4128
        %4161 = vst [vmem:[#allocation2 + $0x20] sm:$0xff] %v4129
        %4162 = vst [vmem:[#allocation2 + $0x28] sm:$0xff] %v4130
        %4163 = vst [vmem:[#allocation2 + $0x30] sm:$0xff] %v4131
        %4164 = vst [vmem:[#allocation2 + $0x38] sm:$0xff] %v4132
        %4165 = vst [vmem:[#allocation2 + $0x40] sm:$0xff] %v4133
        %4166 = vst [vmem:[#allocation2 + $0x48] sm:$0xff] %v4134
        %4167 = vst [vmem:[#allocation2 + $0x50] sm:$0xff] %v4135
        %4168 = vst [vmem:[#allocation2 + $0x58] sm:$0xff] %v4136
        %4169 = vst [vmem:[#allocation2 + $0x60] sm:$0xff] %v4137
        %4170 = vst [vmem:[#allocation2 + $0x68] sm:$0xff] %v4138
        %4171 = vst [vmem:[#allocation2 + $0x70] sm:$0xff] %v4139
        %4172 = vst [vmem:[#allocation2 + $0x78] sm:$0xff] %v4140
        %4173 = vst [vmem:[#allocation2 + $0x80] sm:$0xff] %v4141
        %4174 = vst [vmem:[#allocation2 + $0x88] sm:$0xff] %v4142
        %4175 = vst [vmem:[#allocation2 + $0x90] sm:$0xff] %v4143
        %4176 = vst [vmem:[#allocation2 + $0x98] sm:$0xff] %v4144
        %4177 = vst [vmem:[#allocation2 + $0xa0] sm:$0xff] %v4145
        %4178 = vst [vmem:[#allocation2 + $0xa8] sm:$0xff] %v4146
        %4179 = vst [vmem:[#allocation2 + $0xb0] sm:$0xff] %v4147
        %4180 = vst [vmem:[#allocation2 + $0xb8] sm:$0xff] %v4148
        %4181 = vst [vmem:[#allocation2 + $0xc0] sm:$0xff] %v4149
        %4182 = vst [vmem:[#allocation2 + $0xc8] sm:$0xff] %v4150
        %4183 = vst [vmem:[#allocation2 + $0xd0] sm:$0xff] %v4151
        %4184 = vst [vmem:[#allocation2 + $0xd8] sm:$0xff] %v4152
        %4185 = vst [vmem:[#allocation2 + $0xe0] sm:$0xff] %v4153
        %4186 = vst [vmem:[#allocation2 + $0xe8] sm:$0xff] %v4154
        %4187 = vst [vmem:[#allocation2 + $0xf0] sm:$0xff] %v4155
        %4188 = vst [vmem:[#allocation2 + $0xf8] sm:$0xff] %v4156
        %v4189 = vld [vmem:[%s3766] sm:$0xf]
        %v4190 = vld [vmem:[%s3766 + $0x4] sm:$0xf]
        %v4191 = vld [vmem:[%s3766 + $0x8] sm:$0x1]
        %v4192 = vld [vmem:[%s3766 + $0xc] sm:$0xf]
        %v4193 = vld [vmem:[%s3766 + $0x10] sm:$0xf]
        %v4194 = vld [vmem:[%s3766 + $0x14] sm:$0x1]
        %v4195 = vld [vmem:[%s3766 + $0x18] sm:$0xf]
        %v4196 = vld [vmem:[%s3766 + $0x1c] sm:$0xf]
        %v4197 = vld [vmem:[%s3766 + $0x20] sm:$0x1]
        %v4198 = vld [vmem:[%s3766 + $0x24] sm:$0xf]
        %v4199 = vld [vmem:[%s3766 + $0x28] sm:$0xf]
        %v4200 = vld [vmem:[%s3766 + $0x2c] sm:$0x1]
        %v4201 = vld [vmem:[%s3766 + $0x30] sm:$0xf]
        %v4202 = vld [vmem:[%s3766 + $0x34] sm:$0xf]
        %v4203 = vld [vmem:[%s3766 + $0x38] sm:$0x1]
        %v4204 = vld [vmem:[%s3766 + $0x3c] sm:$0xf]
        %v4205 = vld [vmem:[%s3766 + $0x40] sm:$0xf]
        %v4206 = vld [vmem:[%s3766 + $0x44] sm:$0x1]
        %v4207 = vld [vmem:[%s3766 + $0x48] sm:$0xf]
        %v4208 = vld [vmem:[%s3766 + $0x4c] sm:$0xf]
        %v4209 = vld [vmem:[%s3766 + $0x50] sm:$0x1]
        %v4210 = vld [vmem:[%s3766 + $0x54] sm:$0xf]
        %v4211 = vld [vmem:[%s3766 + $0x58] sm:$0xf]
        %v4212 = vld [vmem:[%s3766 + $0x5c] sm:$0x1]
        %v4213 = vld [vmem:[%s3766 + $0x60] sm:$0xf]
        %v4214 = vld [vmem:[%s3766 + $0x64] sm:$0xf]
        %v4215 = vld [vmem:[%s3766 + $0x68] sm:$0x1]
        %v4216 = vld [vmem:[%s3766 + $0x6c] sm:$0xf]
        %v4217 = vld [vmem:[%s3766 + $0x70] sm:$0xf]
        %v4218 = vld [vmem:[%s3766 + $0x74] sm:$0x1]
        %v4219 = vld [vmem:[%s3766 + $0x78] sm:$0xf]
        %v4220 = vld [vmem:[%s3766 + $0x7c] sm:$0xf]
        %v4221 = vld [vmem:[%s3766 + $0x80] sm:$0x1]
        %v4222 = vld [vmem:[%s3766 + $0x84] sm:$0xf]
        %v4223 = vld [vmem:[%s3766 + $0x88] sm:$0xf]
        %v4224 = vld [vmem:[%s3766 + $0x8c] sm:$0x1]
        %v4225 = vld [vmem:[%s3766 + $0x90] sm:$0xf]
        %v4226 = vld [vmem:[%s3766 + $0x94] sm:$0xf]
        %v4227 = vld [vmem:[%s3766 + $0x98] sm:$0x1]
        %v4228 = vld [vmem:[%s3766 + $0x9c] sm:$0xf]
        %v4229 = vld [vmem:[%s3766 + $0xa0] sm:$0xf]
        %v4230 = vld [vmem:[%s3766 + $0xa4] sm:$0x1]
        %v4231 = vld [vmem:[%s3766 + $0xa8] sm:$0xf]
        %v4232 = vld [vmem:[%s3766 + $0xac] sm:$0xf]
        %v4233 = vld [vmem:[%s3766 + $0xb0] sm:$0x1]
        %v4234 = vld [vmem:[%s3766 + $0xb4] sm:$0xf]
        %v4235 = vld [vmem:[%s3766 + $0xb8] sm:$0xf]
        %v4236 = vld [vmem:[%s3766 + $0xbc] sm:$0x1]
        %v4238 = vshrl.u32 %v4189, 16
        %v4240 = vrot.slane %v4238, 4
        %v4241 = vshll.u32 %v4189, 16
        %v4243 = vrot.slane %v4241, 5
        %v4244 = vor.u32 %v4240, %v4243
        %v4245 = vrot.slane %v4244, 4
        %v4247 = vshll.u32 %v4190, 16
        %v4249 = vrot.slane %v4247, 5
        %v4250 = vsel %vm675, %v4245, %v4249
        %v4251 = vshrl.u32 %v4190, 16
        %v4253 = vrot.slane %v4251, 4
        %v4254 = vor.u32 %v4253, %v4249
        %v4255 = vrot.slane %v4254, 4
        %v4257 = vshll.u32 %v4191, 16
        %v4259 = vrot.slane %v4257, 5
        %v4260 = vsel %vm675, %v4255, %v4259
        %v4262 = vshrl.u32 %v4192, 16
        %v4264 = vrot.slane %v4262, 4
        %v4265 = vshll.u32 %v4192, 16
        %v4267 = vrot.slane %v4265, 5
        %v4268 = vor.u32 %v4264, %v4267
        %v4269 = vrot.slane %v4268, 4
        %v4271 = vshll.u32 %v4193, 16
        %v4273 = vrot.slane %v4271, 5
        %v4274 = vsel %vm675, %v4269, %v4273
        %v4275 = vshrl.u32 %v4193, 16
        %v4277 = vrot.slane %v4275, 4
        %v4278 = vor.u32 %v4277, %v4273
        %v4279 = vrot.slane %v4278, 4
        %v4281 = vshll.u32 %v4194, 16
        %v4283 = vrot.slane %v4281, 5
        %v4284 = vsel %vm675, %v4279, %v4283
        %v4286 = vshrl.u32 %v4195, 16
        %v4288 = vrot.slane %v4286, 4
        %v4289 = vshll.u32 %v4195, 16
        %v4291 = vrot.slane %v4289, 5
        %v4292 = vor.u32 %v4288, %v4291
        %v4293 = vrot.slane %v4292, 4
        %v4295 = vshll.u32 %v4196, 16
        %v4297 = vrot.slane %v4295, 5
        %v4298 = vsel %vm675, %v4293, %v4297
        %v4299 = vshrl.u32 %v4196, 16
        %v4301 = vrot.slane %v4299, 4
        %v4302 = vor.u32 %v4301, %v4297
        %v4303 = vrot.slane %v4302, 4
        %v4305 = vshll.u32 %v4197, 16
        %v4307 = vrot.slane %v4305, 5
        %v4308 = vsel %vm675, %v4303, %v4307
        %v4310 = vshrl.u32 %v4198, 16
        %v4312 = vrot.slane %v4310, 4
        %v4313 = vshll.u32 %v4198, 16
        %v4315 = vrot.slane %v4313, 5
        %v4316 = vor.u32 %v4312, %v4315
        %v4317 = vrot.slane %v4316, 4
        %v4319 = vshll.u32 %v4199, 16
        %v4321 = vrot.slane %v4319, 5
        %v4322 = vsel %vm675, %v4317, %v4321
        %v4323 = vshrl.u32 %v4199, 16
        %v4325 = vrot.slane %v4323, 4
        %v4326 = vor.u32 %v4325, %v4321
        %v4327 = vrot.slane %v4326, 4
        %v4329 = vshll.u32 %v4200, 16
        %v4331 = vrot.slane %v4329, 5
        %v4332 = vsel %vm675, %v4327, %v4331
        %v4334 = vshrl.u32 %v4201, 16
        %v4336 = vrot.slane %v4334, 4
        %v4337 = vshll.u32 %v4201, 16
        %v4339 = vrot.slane %v4337, 5
        %v4340 = vor.u32 %v4336, %v4339
        %v4341 = vrot.slane %v4340, 4
        %v4343 = vshll.u32 %v4202, 16
        %v4345 = vrot.slane %v4343, 5
        %v4346 = vsel %vm675, %v4341, %v4345
        %v4347 = vshrl.u32 %v4202, 16
        %v4349 = vrot.slane %v4347, 4
        %v4350 = vor.u32 %v4349, %v4345
        %v4351 = vrot.slane %v4350, 4
        %v4353 = vshll.u32 %v4203, 16
        %v4355 = vrot.slane %v4353, 5
        %v4356 = vsel %vm675, %v4351, %v4355
        %v4358 = vshrl.u32 %v4204, 16
        %v4360 = vrot.slane %v4358, 4
        %v4361 = vshll.u32 %v4204, 16
        %v4363 = vrot.slane %v4361, 5
        %v4364 = vor.u32 %v4360, %v4363
        %v4365 = vrot.slane %v4364, 4
        %v4367 = vshll.u32 %v4205, 16
        %v4369 = vrot.slane %v4367, 5
        %v4370 = vsel %vm675, %v4365, %v4369
        %v4371 = vshrl.u32 %v4205, 16
        %v4373 = vrot.slane %v4371, 4
        %v4374 = vor.u32 %v4373, %v4369
        %v4375 = vrot.slane %v4374, 4
        %v4377 = vshll.u32 %v4206, 16
        %v4379 = vrot.slane %v4377, 5
        %v4380 = vsel %vm675, %v4375, %v4379
        %v4382 = vshrl.u32 %v4207, 16
        %v4384 = vrot.slane %v4382, 4
        %v4385 = vshll.u32 %v4207, 16
        %v4387 = vrot.slane %v4385, 5
        %v4388 = vor.u32 %v4384, %v4387
        %v4389 = vrot.slane %v4388, 4
        %v4391 = vshll.u32 %v4208, 16
        %v4393 = vrot.slane %v4391, 5
        %v4394 = vsel %vm675, %v4389, %v4393
        %v4395 = vshrl.u32 %v4208, 16
        %v4397 = vrot.slane %v4395, 4
        %v4398 = vor.u32 %v4397, %v4393
        %v4399 = vrot.slane %v4398, 4
        %v4401 = vshll.u32 %v4209, 16
        %v4403 = vrot.slane %v4401, 5
        %v4404 = vsel %vm675, %v4399, %v4403
        %v4406 = vshrl.u32 %v4210, 16
        %v4408 = vrot.slane %v4406, 4
        %v4409 = vshll.u32 %v4210, 16
        %v4411 = vrot.slane %v4409, 5
        %v4412 = vor.u32 %v4408, %v4411
        %v4413 = vrot.slane %v4412, 4
        %v4415 = vshll.u32 %v4211, 16
        %v4417 = vrot.slane %v4415, 5
        %v4418 = vsel %vm675, %v4413, %v4417
        %v4419 = vshrl.u32 %v4211, 16
        %v4421 = vrot.slane %v4419, 4
        %v4422 = vor.u32 %v4421, %v4417
        %v4423 = vrot.slane %v4422, 4
        %v4425 = vshll.u32 %v4212, 16
        %v4427 = vrot.slane %v4425, 5
        %v4428 = vsel %vm675, %v4423, %v4427
        %v4430 = vshrl.u32 %v4213, 16
        %v4432 = vrot.slane %v4430, 4
        %v4433 = vshll.u32 %v4213, 16
        %v4435 = vrot.slane %v4433, 5
        %v4436 = vor.u32 %v4432, %v4435
        %v4437 = vrot.slane %v4436, 4
        %v4439 = vshll.u32 %v4214, 16
        %v4441 = vrot.slane %v4439, 5
        %v4442 = vsel %vm675, %v4437, %v4441
        %v4443 = vshrl.u32 %v4214, 16
        %v4445 = vrot.slane %v4443, 4
        %v4446 = vor.u32 %v4445, %v4441
        %v4447 = vrot.slane %v4446, 4
        %v4449 = vshll.u32 %v4215, 16
        %v4451 = vrot.slane %v4449, 5
        %v4452 = vsel %vm675, %v4447, %v4451
        %v4454 = vshrl.u32 %v4216, 16
        %v4456 = vrot.slane %v4454, 4
        %v4457 = vshll.u32 %v4216, 16
        %v4459 = vrot.slane %v4457, 5
        %v4460 = vor.u32 %v4456, %v4459
        %v4461 = vrot.slane %v4460, 4
        %v4463 = vshll.u32 %v4217, 16
        %v4465 = vrot.slane %v4463, 5
        %v4466 = vsel %vm675, %v4461, %v4465
        %v4467 = vshrl.u32 %v4217, 16
        %v4469 = vrot.slane %v4467, 4
        %v4470 = vor.u32 %v4469, %v4465
        %v4471 = vrot.slane %v4470, 4
        %v4473 = vshll.u32 %v4218, 16
        %v4475 = vrot.slane %v4473, 5
        %v4476 = vsel %vm675, %v4471, %v4475
        %v4478 = vshrl.u32 %v4219, 16
        %v4480 = vrot.slane %v4478, 4
        %v4481 = vshll.u32 %v4219, 16
        %v4483 = vrot.slane %v4481, 5
        %v4484 = vor.u32 %v4480, %v4483
        %v4485 = vrot.slane %v4484, 4
        %v4487 = vshll.u32 %v4220, 16
        %v4489 = vrot.slane %v4487, 5
        %v4490 = vsel %vm675, %v4485, %v4489
        %v4491 = vshrl.u32 %v4220, 16
        %v4493 = vrot.slane %v4491, 4
        %v4494 = vor.u32 %v4493, %v4489
        %v4495 = vrot.slane %v4494, 4
        %v4497 = vshll.u32 %v4221, 16
        %v4499 = vrot.slane %v4497, 5
        %v4500 = vsel %vm675, %v4495, %v4499
        %v4502 = vshrl.u32 %v4222, 16
        %v4504 = vrot.slane %v4502, 4
        %v4505 = vshll.u32 %v4222, 16
        %v4507 = vrot.slane %v4505, 5
        %v4508 = vor.u32 %v4504, %v4507
        %v4509 = vrot.slane %v4508, 4
        %v4511 = vshll.u32 %v4223, 16
        %v4513 = vrot.slane %v4511, 5
        %v4514 = vsel %vm675, %v4509, %v4513
        %v4515 = vshrl.u32 %v4223, 16
        %v4517 = vrot.slane %v4515, 4
        %v4518 = vor.u32 %v4517, %v4513
        %v4519 = vrot.slane %v4518, 4
        %v4521 = vshll.u32 %v4224, 16
        %v4523 = vrot.slane %v4521, 5
        %v4524 = vsel %vm675, %v4519, %v4523
        %v4526 = vshrl.u32 %v4225, 16
        %v4528 = vrot.slane %v4526, 4
        %v4529 = vshll.u32 %v4225, 16
        %v4531 = vrot.slane %v4529, 5
        %v4532 = vor.u32 %v4528, %v4531
        %v4533 = vrot.slane %v4532, 4
        %v4535 = vshll.u32 %v4226, 16
        %v4537 = vrot.slane %v4535, 5
        %v4538 = vsel %vm675, %v4533, %v4537
        %v4539 = vshrl.u32 %v4226, 16
        %v4541 = vrot.slane %v4539, 4
        %v4542 = vor.u32 %v4541, %v4537
        %v4543 = vrot.slane %v4542, 4
        %v4545 = vshll.u32 %v4227, 16
        %v4547 = vrot.slane %v4545, 5
        %v4548 = vsel %vm675, %v4543, %v4547
        %v4550 = vshrl.u32 %v4228, 16
        %v4552 = vrot.slane %v4550, 4
        %v4553 = vshll.u32 %v4228, 16
        %v4555 = vrot.slane %v4553, 5
        %v4556 = vor.u32 %v4552, %v4555
        %v4557 = vrot.slane %v4556, 4
        %v4559 = vshll.u32 %v4229, 16
        %v4561 = vrot.slane %v4559, 5
        %v4562 = vsel %vm675, %v4557, %v4561
        %v4563 = vshrl.u32 %v4229, 16
        %v4565 = vrot.slane %v4563, 4
        %v4566 = vor.u32 %v4565, %v4561
        %v4567 = vrot.slane %v4566, 4
        %v4569 = vshll.u32 %v4230, 16
        %v4571 = vrot.slane %v4569, 5
        %v4572 = vsel %vm675, %v4567, %v4571
        %v4574 = vshrl.u32 %v4231, 16
        %v4576 = vrot.slane %v4574, 4
        %v4577 = vshll.u32 %v4231, 16
        %v4579 = vrot.slane %v4577, 5
        %v4580 = vor.u32 %v4576, %v4579
        %v4581 = vrot.slane %v4580, 4
        %v4583 = vshll.u32 %v4232, 16
        %v4585 = vrot.slane %v4583, 5
        %v4586 = vsel %vm675, %v4581, %v4585
        %v4587 = vshrl.u32 %v4232, 16
        %v4589 = vrot.slane %v4587, 4
        %v4590 = vor.u32 %v4589, %v4585
        %v4591 = vrot.slane %v4590, 4
        %v4593 = vshll.u32 %v4233, 16
        %v4595 = vrot.slane %v4593, 5
        %v4596 = vsel %vm675, %v4591, %v4595
        %v4598 = vshrl.u32 %v4234, 16
        %v4600 = vrot.slane %v4598, 4
        %v4601 = vshll.u32 %v4234, 16
        %v4603 = vrot.slane %v4601, 5
        %v4604 = vor.u32 %v4600, %v4603
        %v4605 = vrot.slane %v4604, 4
        %v4607 = vshll.u32 %v4235, 16
        %v4609 = vrot.slane %v4607, 5
        %v4610 = vsel %vm675, %v4605, %v4609
        %v4611 = vshrl.u32 %v4235, 16
        %v4613 = vrot.slane %v4611, 4
        %v4614 = vor.u32 %v4613, %v4609
        %v4615 = vrot.slane %v4614, 4
        %v4617 = vshll.u32 %v4236, 16
        %v4619 = vrot.slane %v4617, 5
        %v4620 = vsel %vm675, %v4615, %v4619
        %s4621 = scalar_lea.vmem %s1, 14
        %v4622 = vld [vmem:[%s4621] sm:$0x3]
        %v4623 = vld [vmem:[#allocation2] sm:$0xff]
        %v4624 = vld [vmem:[#allocation2 + $0x8] sm:$0xff]
        %v4625 = vld [vmem:[#allocation2 + $0x10] sm:$0xff]
        %v4626 = vld [vmem:[#allocation2 + $0x18] sm:$0xff]
        %v4627 = vld [vmem:[#allocation2 + $0x20] sm:$0xff]
        %v4628 = vld [vmem:[#allocation2 + $0x28] sm:$0xff]
        %v4629 = vld [vmem:[#allocation2 + $0x30] sm:$0xff]
        %v4630 = vld [vmem:[#allocation2 + $0x38] sm:$0xff]
        %v4631 = vld [vmem:[#allocation2 + $0x40] sm:$0xff]
        %v4632 = vld [vmem:[#allocation2 + $0x48] sm:$0xff]
        %v4633 = vld [vmem:[#allocation2 + $0x50] sm:$0xff]
        %v4634 = vld [vmem:[#allocation2 + $0x58] sm:$0xff]
        %v4635 = vld [vmem:[#allocation2 + $0x60] sm:$0xff]
        %v4636 = vld [vmem:[#allocation2 + $0x68] sm:$0xff]
        %v4637 = vld [vmem:[#allocation2 + $0x70] sm:$0xff]
        %v4638 = vld [vmem:[#allocation2 + $0x78] sm:$0xff]
        %v4639 = vld [vmem:[#allocation2 + $0x80] sm:$0xff]
        %v4640 = vld [vmem:[#allocation2 + $0x88] sm:$0xff]
        %v4641 = vld [vmem:[#allocation2 + $0x90] sm:$0xff]
        %v4642 = vld [vmem:[#allocation2 + $0x98] sm:$0xff]
        %v4643 = vld [vmem:[#allocation2 + $0xa0] sm:$0xff]
        %v4644 = vld [vmem:[#allocation2 + $0xa8] sm:$0xff]
        %v4645 = vld [vmem:[#allocation2 + $0xb0] sm:$0xff]
        %v4646 = vld [vmem:[#allocation2 + $0xb8] sm:$0xff]
        %v4647 = vld [vmem:[#allocation2 + $0xc0] sm:$0xff]
        %v4648 = vld [vmem:[#allocation2 + $0xc8] sm:$0xff]
        %v4649 = vld [vmem:[#allocation2 + $0xd0] sm:$0xff]
        %v4650 = vld [vmem:[#allocation2 + $0xd8] sm:$0xff]
        %v4651 = vld [vmem:[#allocation2 + $0xe0] sm:$0xff]
        %v4652 = vld [vmem:[#allocation2 + $0xe8] sm:$0xff]
        %v4653 = vld [vmem:[#allocation2 + $0xf0] sm:$0xff]
        %v4654 = vld [vmem:[#allocation2 + $0xf8] sm:$0xff]
        %v4655 = vunpack.c.l.b16 %v4250
        %v4656 = vunpack.c.l.b16 %v4260
        %v4657 = vunpack.c.l.b16 %v4274
        %v4658 = vunpack.c.l.b16 %v4284
        %v4659 = vunpack.c.l.b16 %v4298
        %v4660 = vunpack.c.l.b16 %v4308
        %v4661 = vunpack.c.l.b16 %v4322
        %v4662 = vunpack.c.l.b16 %v4332
        %v4663 = vunpack.c.l.b16 %v4346
        %v4664 = vunpack.c.l.b16 %v4356
        %v4665 = vunpack.c.l.b16 %v4370
        %v4666 = vunpack.c.l.b16 %v4380
        %v4667 = vunpack.c.l.b16 %v4394
        %v4668 = vunpack.c.l.b16 %v4404
        %v4669 = vunpack.c.l.b16 %v4418
        %v4670 = vunpack.c.l.b16 %v4428
        %v4671 = vunpack.c.l.b16 %v4442
        %v4672 = vunpack.c.l.b16 %v4452
        %v4673 = vunpack.c.l.b16 %v4466
        %v4674 = vunpack.c.l.b16 %v4476
        %v4675 = vunpack.c.l.b16 %v4490
        %v4676 = vunpack.c.l.b16 %v4500
        %v4677 = vunpack.c.l.b16 %v4514
        %v4678 = vunpack.c.l.b16 %v4524
        %v4679 = vunpack.c.l.b16 %v4538
        %v4680 = vunpack.c.l.b16 %v4548
        %v4681 = vunpack.c.l.b16 %v4562
        %v4682 = vunpack.c.l.b16 %v4572
        %v4683 = vunpack.c.l.b16 %v4586
        %v4684 = vunpack.c.l.b16 %v4596
        %v4685 = vunpack.c.l.b16 %v4610
        %v4686 = vunpack.c.l.b16 %v4620
        %v4687 = vpack.c.b16 %v4656, %v4655
        %v4688 = vpack.c.b16 %v4658, %v4657
        %v4689 = vpack.c.b16 %v4660, %v4659
        %v4690 = vpack.c.b16 %v4662, %v4661
        %v4691 = vpack.c.b16 %v4664, %v4663
        %v4692 = vpack.c.b16 %v4666, %v4665
        %v4693 = vpack.c.b16 %v4668, %v4667
        %v4694 = vpack.c.b16 %v4670, %v4669
        %v4695 = vpack.c.b16 %v4672, %v4671
        %v4696 = vpack.c.b16 %v4674, %v4673
        %v4697 = vpack.c.b16 %v4676, %v4675
        %v4698 = vpack.c.b16 %v4678, %v4677
        %v4699 = vpack.c.b16 %v4680, %v4679
        %v4700 = vpack.c.b16 %v4682, %v4681
        %v4701 = vpack.c.b16 %v4684, %v4683
        %v4702 = vpack.c.b16 %v4686, %v4685
        %v4704 = vsel %vm347, %v4687, 0
        %v4707 = vsel %vm347, %v4688, 0
        %v4710 = vsel %vm347, %v4689, 0
        %v4713 = vsel %vm347, %v4690, 0
        %v4716 = vsel %vm347, %v4691, 0
        %v4719 = vsel %vm347, %v4692, 0
        %v4722 = vsel %vm347, %v4693, 0
        %v4725 = vsel %vm347, %v4694, 0
        %v4728 = vsel %vm347, %v4695, 0
        %v4731 = vsel %vm347, %v4696, 0
        %v4734 = vsel %vm347, %v4697, 0
        %v4737 = vsel %vm347, %v4698, 0
        %v4740 = vsel %vm347, %v4699, 0
        %v4743 = vsel %vm347, %v4700, 0
        %v4746 = vsel %vm347, %v4701, 0
        %v4749 = vsel %vm347, %v4702, 0
        %v4752 = vsel %vm396, %v4622, 0
        %4754 = vmatprep.subr.bf16.mxu0 0
        %4755 = vmatpush1.bf16.msra.mxu0 0
        %4756 = vmatprep.subr.bf16.mxu0 0
        %4757 = vmatpush1.bf16.msra.mxu0 0
        %4758 = vmatprep.subr.bf16.mxu0 0
        %4759 = vmatpush1.bf16.msra.mxu0 0
        %4760 = vmatprep.subr.bf16.mxu0 0
        %4761 = vmatpush1.bf16.msra.mxu0 0
        %4762 = vmatprep.subr.bf16.mxu0 0
        %4763 = vmatpush1.bf16.msra.mxu0 0
        %4764 = vmatprep.subr.bf16.mxu0 0
        %4765 = vmatpush1.bf16.msra.mxu0 0
        %4766 = vmatprep.subr.bf16.mxu0 0
        %4767 = vmatpush1.bf16.msra.mxu0 0
        %4768 = vmatprep.subr.bf16.mxu0 0
        %4769 = vmatpush1.bf16.msra.mxu0 %v4752
        %4770 = vmatprep.subr.bf16.mxu0 0
        %4771 = vmatpush2.bf16.msra.mxu0 0
        %4772 = vmatprep.subr.bf16.mxu0 0
        %4773 = vmatpush2.bf16.msra.mxu0 0
        %4774 = vmatprep.subr.bf16.mxu0 0
        %4775 = vmatpush2.bf16.msra.mxu0 0
        %4776 = vmatprep.subr.bf16.mxu0 0
        %4777 = vmatpush2.bf16.msra.mxu0 0
        %4778 = vmatprep.subr.bf16.mxu0 0
        %4779 = vmatpush2.bf16.msra.mxu0 0
        %4780 = vmatprep.subr.bf16.mxu0 0
        %4781 = vmatpush2.bf16.msra.mxu0 0
        %4782 = vmatprep.subr.bf16.mxu0 0
        %4783 = vmatpush2.bf16.msra.mxu0 0
        %4784 = vmatprep.subr.bf16.mxu0 0
        %4785 = vmatpush2.bf16.msra.mxu0 0
        %4786 = vmatprep.mubr.bf16.mxu0 0
        %4787 = vmatmul.mubr.bf16.gmra.mxu0 %v4704
        %v4788 = vpop.f32.mrf.mxu0
        %v4789 = vadd.f32 0.0, %v4788
        %v4790 = vpop.f32.mrf.mxu0
        %v4791 = vpop.f32.mrf.mxu0
        %v4792 = vadd.f32 0.0, %v4791
        %v4793 = vpop.f32.mrf.mxu0
        %4794 = vmatprep.mubr.bf16.mxu0 0
        %4795 = vmatmul.mubr.bf16.gmra.mxu0 %v4707
        %v4796 = vpop.f32.mrf.mxu0
        %v4797 = vadd.f32 0.0, %v4796
        %v4798 = vpop.f32.mrf.mxu0
        %v4799 = vpop.f32.mrf.mxu0
        %v4800 = vadd.f32 0.0, %v4799
        %v4801 = vpop.f32.mrf.mxu0
        %4802 = vmatprep.mubr.bf16.mxu0 0
        %4803 = vmatmul.mubr.bf16.gmra.mxu0 %v4710
        %v4804 = vpop.f32.mrf.mxu0
        %v4805 = vadd.f32 0.0, %v4804
        %v4806 = vpop.f32.mrf.mxu0
        %v4807 = vpop.f32.mrf.mxu0
        %v4808 = vadd.f32 0.0, %v4807
        %v4809 = vpop.f32.mrf.mxu0
        %4810 = vmatprep.mubr.bf16.mxu0 0
        %4811 = vmatmul.mubr.bf16.gmra.mxu0 %v4713
        %v4812 = vpop.f32.mrf.mxu0
        %v4813 = vadd.f32 0.0, %v4812
        %v4814 = vpop.f32.mrf.mxu0
        %v4815 = vpop.f32.mrf.mxu0
        %v4816 = vadd.f32 0.0, %v4815
        %v4817 = vpop.f32.mrf.mxu0
        %4818 = vmatprep.mubr.bf16.mxu0 0
        %4819 = vmatmul.mubr.bf16.gmra.mxu0 %v4716
        %v4820 = vpop.f32.mrf.mxu0
        %v4821 = vadd.f32 0.0, %v4820
        %v4822 = vpop.f32.mrf.mxu0
        %v4823 = vpop.f32.mrf.mxu0
        %v4824 = vadd.f32 0.0, %v4823
        %v4825 = vpop.f32.mrf.mxu0
        %4826 = vmatprep.mubr.bf16.mxu0 0
        %4827 = vmatmul.mubr.bf16.gmra.mxu0 %v4719
        %v4828 = vpop.f32.mrf.mxu0
        %v4829 = vadd.f32 0.0, %v4828
        %v4830 = vpop.f32.mrf.mxu0
        %v4831 = vpop.f32.mrf.mxu0
        %v4832 = vadd.f32 0.0, %v4831
        %v4833 = vpop.f32.mrf.mxu0
        %4834 = vmatprep.mubr.bf16.mxu0 0
        %4835 = vmatmul.mubr.bf16.gmra.mxu0 %v4722
        %v4836 = vpop.f32.mrf.mxu0
        %v4837 = vadd.f32 0.0, %v4836
        %v4838 = vpop.f32.mrf.mxu0
        %v4839 = vpop.f32.mrf.mxu0
        %v4840 = vadd.f32 0.0, %v4839
        %v4841 = vpop.f32.mrf.mxu0
        %4842 = vmatprep.mubr.bf16.mxu0 0
        %4843 = vmatmul.mubr.bf16.gmra.mxu0 %v4725
        %v4844 = vpop.f32.mrf.mxu0
        %v4845 = vadd.f32 0.0, %v4844
        %v4846 = vpop.f32.mrf.mxu0
        %v4847 = vpop.f32.mrf.mxu0
        %v4848 = vadd.f32 0.0, %v4847
        %v4849 = vpop.f32.mrf.mxu0
        %4850 = vmatprep.mubr.bf16.mxu0 0
        %4851 = vmatmul.mubr.bf16.gmra.mxu0 %v4728
        %v4852 = vpop.f32.mrf.mxu0
        %v4853 = vadd.f32 0.0, %v4852
        %v4854 = vpop.f32.mrf.mxu0
        %v4855 = vpop.f32.mrf.mxu0
        %v4856 = vadd.f32 0.0, %v4855
        %v4857 = vpop.f32.mrf.mxu0
        %4858 = vmatprep.mubr.bf16.mxu0 0
        %4859 = vmatmul.mubr.bf16.gmra.mxu0 %v4731
        %v4860 = vpop.f32.mrf.mxu0
        %v4861 = vadd.f32 0.0, %v4860
        %v4862 = vpop.f32.mrf.mxu0
        %v4863 = vpop.f32.mrf.mxu0
        %v4864 = vadd.f32 0.0, %v4863
        %v4865 = vpop.f32.mrf.mxu0
        %4866 = vmatprep.mubr.bf16.mxu0 0
        %4867 = vmatmul.mubr.bf16.gmra.mxu0 %v4734
        %v4868 = vpop.f32.mrf.mxu0
        %v4869 = vadd.f32 0.0, %v4868
        %v4870 = vpop.f32.mrf.mxu0
        %v4871 = vpop.f32.mrf.mxu0
        %v4872 = vadd.f32 0.0, %v4871
        %v4873 = vpop.f32.mrf.mxu0
        %4874 = vmatprep.mubr.bf16.mxu0 0
        %4875 = vmatmul.mubr.bf16.gmra.mxu0 %v4737
        %v4876 = vpop.f32.mrf.mxu0
        %v4877 = vadd.f32 0.0, %v4876
        %v4878 = vpop.f32.mrf.mxu0
        %v4879 = vpop.f32.mrf.mxu0
        %v4880 = vadd.f32 0.0, %v4879
        %v4881 = vpop.f32.mrf.mxu0
        %4882 = vmatprep.mubr.bf16.mxu0 0
        %4883 = vmatmul.mubr.bf16.gmra.mxu0 %v4740
        %v4884 = vpop.f32.mrf.mxu0
        %v4885 = vadd.f32 0.0, %v4884
        %v4886 = vpop.f32.mrf.mxu0
        %v4887 = vpop.f32.mrf.mxu0
        %v4888 = vadd.f32 0.0, %v4887
        %v4889 = vpop.f32.mrf.mxu0
        %4890 = vmatprep.mubr.bf16.mxu0 0
        %4891 = vmatmul.mubr.bf16.gmra.mxu0 %v4743
        %v4892 = vpop.f32.mrf.mxu0
        %v4893 = vadd.f32 0.0, %v4892
        %v4894 = vpop.f32.mrf.mxu0
        %v4895 = vpop.f32.mrf.mxu0
        %v4896 = vadd.f32 0.0, %v4895
        %v4897 = vpop.f32.mrf.mxu0
        %4898 = vmatprep.mubr.bf16.mxu0 0
        %4899 = vmatmul.mubr.bf16.gmra.mxu0 %v4746
        %v4900 = vpop.f32.mrf.mxu0
        %v4901 = vadd.f32 0.0, %v4900
        %v4902 = vpop.f32.mrf.mxu0
        %v4903 = vpop.f32.mrf.mxu0
        %v4904 = vadd.f32 0.0, %v4903
        %v4905 = vpop.f32.mrf.mxu0
        %4906 = vmatprep.mubr.bf16.mxu0 0
        %4907 = vmatmul.mubr.bf16.gmra.mxu0 %v4749
        %v4908 = vpop.f32.mrf.mxu0
        %v4909 = vadd.f32 0.0, %v4908
        %v4910 = vpop.f32.mrf.mxu0
        %v4911 = vpop.f32.mrf.mxu0
        %v4912 = vadd.f32 0.0, %v4911
        %v4913 = vpop.f32.mrf.mxu0
        %4914 = vdwg.mxu0
        %v4915 = vadd.f32 %v4623, %v4789
        %v4916 = vadd.f32 %v4624, %v4792
        %v4917 = vadd.f32 %v4625, %v4797
        %v4918 = vadd.f32 %v4626, %v4800
        %v4919 = vadd.f32 %v4627, %v4805
        %v4920 = vadd.f32 %v4628, %v4808
        %v4921 = vadd.f32 %v4629, %v4813
        %v4922 = vadd.f32 %v4630, %v4816
        %v4923 = vadd.f32 %v4631, %v4821
        %v4924 = vadd.f32 %v4632, %v4824
        %v4925 = vadd.f32 %v4633, %v4829
        %v4926 = vadd.f32 %v4634, %v4832
        %v4927 = vadd.f32 %v4635, %v4837
        %v4928 = vadd.f32 %v4636, %v4840
        %v4929 = vadd.f32 %v4637, %v4845
        %v4930 = vadd.f32 %v4638, %v4848
        %v4931 = vadd.f32 %v4639, %v4853
        %v4932 = vadd.f32 %v4640, %v4856
        %v4933 = vadd.f32 %v4641, %v4861
        %v4934 = vadd.f32 %v4642, %v4864
        %v4935 = vadd.f32 %v4643, %v4869
        %v4936 = vadd.f32 %v4644, %v4872
        %v4937 = vadd.f32 %v4645, %v4877
        %v4938 = vadd.f32 %v4646, %v4880
        %v4939 = vadd.f32 %v4647, %v4885
        %v4940 = vadd.f32 %v4648, %v4888
        %v4941 = vadd.f32 %v4649, %v4893
        %v4942 = vadd.f32 %v4650, %v4896
        %v4943 = vadd.f32 %v4651, %v4901
        %v4944 = vadd.f32 %v4652, %v4904
        %v4945 = vadd.f32 %v4653, %v4909
        %v4946 = vadd.f32 %v4654, %v4912
        %4947 = vst [vmem:[#allocation2] sm:$0xff] %v4915
        %4948 = vst [vmem:[#allocation2 + $0x8] sm:$0xff] %v4916
        %4949 = vst [vmem:[#allocation2 + $0x10] sm:$0xff] %v4917
        %4950 = vst [vmem:[#allocation2 + $0x18] sm:$0xff] %v4918
        %4951 = vst [vmem:[#allocation2 + $0x20] sm:$0xff] %v4919
        %4952 = vst [vmem:[#allocation2 + $0x28] sm:$0xff] %v4920
        %4953 = vst [vmem:[#allocation2 + $0x30] sm:$0xff] %v4921
        %4954 = vst [vmem:[#allocation2 + $0x38] sm:$0xff] %v4922
        %4955 = vst [vmem:[#allocation2 + $0x40] sm:$0xff] %v4923
        %4956 = vst [vmem:[#allocation2 + $0x48] sm:$0xff] %v4924
        %4957 = vst [vmem:[#allocation2 + $0x50] sm:$0xff] %v4925
        %4958 = vst [vmem:[#allocation2 + $0x58] sm:$0xff] %v4926
        %4959 = vst [vmem:[#allocation2 + $0x60] sm:$0xff] %v4927
        %4960 = vst [vmem:[#allocation2 + $0x68] sm:$0xff] %v4928
        %4961 = vst [vmem:[#allocation2 + $0x70] sm:$0xff] %v4929
        %4962 = vst [vmem:[#allocation2 + $0x78] sm:$0xff] %v4930
        %4963 = vst [vmem:[#allocation2 + $0x80] sm:$0xff] %v4931
        %4964 = vst [vmem:[#allocation2 + $0x88] sm:$0xff] %v4932
        %4965 = vst [vmem:[#allocation2 + $0x90] sm:$0xff] %v4933
        %4966 = vst [vmem:[#allocation2 + $0x98] sm:$0xff] %v4934
        %4967 = vst [vmem:[#allocation2 + $0xa0] sm:$0xff] %v4935
        %4968 = vst [vmem:[#allocation2 + $0xa8] sm:$0xff] %v4936
        %4969 = vst [vmem:[#allocation2 + $0xb0] sm:$0xff] %v4937
        %4970 = vst [vmem:[#allocation2 + $0xb8] sm:$0xff] %v4938
        %4971 = vst [vmem:[#allocation2 + $0xc0] sm:$0xff] %v4939
        %4972 = vst [vmem:[#allocation2 + $0xc8] sm:$0xff] %v4940
        %4973 = vst [vmem:[#allocation2 + $0xd0] sm:$0xff] %v4941
        %4974 = vst [vmem:[#allocation2 + $0xd8] sm:$0xff] %v4942
        %4975 = vst [vmem:[#allocation2 + $0xe0] sm:$0xff] %v4943
        %4976 = vst [vmem:[#allocation2 + $0xe8] sm:$0xff] %v4944
        %4977 = vst [vmem:[#allocation2 + $0xf0] sm:$0xff] %v4945
        %4978 = vst [vmem:[#allocation2 + $0xf8] sm:$0xff] %v4946
        %v4979 = vld [vmem:[%s3766] sm:$0xe]
        %v4980 = vld [vmem:[%s3766 + $0x4] sm:$0xf]
        %v4981 = vld [vmem:[%s3766 + $0x8] sm:$0x1]
        %v4982 = vld [vmem:[%s3766 + $0xc] sm:$0xe]
        %v4983 = vld [vmem:[%s3766 + $0x10] sm:$0xf]
        %v4984 = vld [vmem:[%s3766 + $0x14] sm:$0x1]
        %v4985 = vld [vmem:[%s3766 + $0x18] sm:$0xe]
        %v4986 = vld [vmem:[%s3766 + $0x1c] sm:$0xf]
        %v4987 = vld [vmem:[%s3766 + $0x20] sm:$0x1]
        %v4988 = vld [vmem:[%s3766 + $0x24] sm:$0xe]
        %v4989 = vld [vmem:[%s3766 + $0x28] sm:$0xf]
        %v4990 = vld [vmem:[%s3766 + $0x2c] sm:$0x1]
        %v4991 = vld [vmem:[%s3766 + $0x30] sm:$0xe]
        %v4992 = vld [vmem:[%s3766 + $0x34] sm:$0xf]
        %v4993 = vld [vmem:[%s3766 + $0x38] sm:$0x1]
        %v4994 = vld [vmem:[%s3766 + $0x3c] sm:$0xe]
        %v4995 = vld [vmem:[%s3766 + $0x40] sm:$0xf]
        %v4996 = vld [vmem:[%s3766 + $0x44] sm:$0x1]
        %v4997 = vld [vmem:[%s3766 + $0x48] sm:$0xe]
        %v4998 = vld [vmem:[%s3766 + $0x4c] sm:$0xf]
        %v4999 = vld [vmem:[%s3766 + $0x50] sm:$0x1]
        %v5000 = vld [vmem:[%s3766 + $0x54] sm:$0xe]
        %v5001 = vld [vmem:[%s3766 + $0x58] sm:$0xf]
        %v5002 = vld [vmem:[%s3766 + $0x5c] sm:$0x1]
        %v5003 = vld [vmem:[%s3766 + $0x60] sm:$0xe]
        %v5004 = vld [vmem:[%s3766 + $0x64] sm:$0xf]
        %v5005 = vld [vmem:[%s3766 + $0x68] sm:$0x1]
        %v5006 = vld [vmem:[%s3766 + $0x6c] sm:$0xe]
        %v5007 = vld [vmem:[%s3766 + $0x70] sm:$0xf]
        %v5008 = vld [vmem:[%s3766 + $0x74] sm:$0x1]
        %v5009 = vld [vmem:[%s3766 + $0x78] sm:$0xe]
        %v5010 = vld [vmem:[%s3766 + $0x7c] sm:$0xf]
        %v5011 = vld [vmem:[%s3766 + $0x80] sm:$0x1]
        %v5012 = vld [vmem:[%s3766 + $0x84] sm:$0xe]
        %v5013 = vld [vmem:[%s3766 + $0x88] sm:$0xf]
        %v5014 = vld [vmem:[%s3766 + $0x8c] sm:$0x1]
        %v5015 = vld [vmem:[%s3766 + $0x90] sm:$0xe]
        %v5016 = vld [vmem:[%s3766 + $0x94] sm:$0xf]
        %v5017 = vld [vmem:[%s3766 + $0x98] sm:$0x1]
        %v5018 = vld [vmem:[%s3766 + $0x9c] sm:$0xe]
        %v5019 = vld [vmem:[%s3766 + $0xa0] sm:$0xf]
        %v5020 = vld [vmem:[%s3766 + $0xa4] sm:$0x1]
        %v5021 = vld [vmem:[%s3766 + $0xa8] sm:$0xe]
        %v5022 = vld [vmem:[%s3766 + $0xac] sm:$0xf]
        %v5023 = vld [vmem:[%s3766 + $0xb0] sm:$0x1]
        %v5024 = vld [vmem:[%s3766 + $0xb4] sm:$0xe]
        %v5025 = vld [vmem:[%s3766 + $0xb8] sm:$0xf]
        %v5026 = vld [vmem:[%s3766 + $0xbc] sm:$0x1]
        %v5075 = vrot.slane %v4979, 5
        %v5076 = vrot.slane %v5075, 4
        %v5077 = vrot.slane %v4980, 5
        %v5078 = vsel %vm1516, %v5076, %v5077
        %v5079 = vrot.slane %v5077, 4
        %v5080 = vrot.slane %v4981, 5
        %v5081 = vsel %vm1516, %v5079, %v5080
        %v5082 = vrot.slane %v4982, 5
        %v5083 = vrot.slane %v5082, 4
        %v5084 = vrot.slane %v4983, 5
        %v5085 = vsel %vm1516, %v5083, %v5084
        %v5086 = vrot.slane %v5084, 4
        %v5087 = vrot.slane %v4984, 5
        %v5088 = vsel %vm1516, %v5086, %v5087
        %v5089 = vrot.slane %v4985, 5
        %v5090 = vrot.slane %v5089, 4
        %v5091 = vrot.slane %v4986, 5
        %v5092 = vsel %vm1516, %v5090, %v5091
        %v5093 = vrot.slane %v5091, 4
        %v5094 = vrot.slane %v4987, 5
        %v5095 = vsel %vm1516, %v5093, %v5094
        %v5096 = vrot.slane %v4988, 5
        %v5097 = vrot.slane %v5096, 4
        %v5098 = vrot.slane %v4989, 5
        %v5099 = vsel %vm1516, %v5097, %v5098
        %v5100 = vrot.slane %v5098, 4
        %v5101 = vrot.slane %v4990, 5
        %v5102 = vsel %vm1516, %v5100, %v5101
        %v5103 = vrot.slane %v4991, 5
        %v5104 = vrot.slane %v5103, 4
        %v5105 = vrot.slane %v4992, 5
        %v5106 = vsel %vm1516, %v5104, %v5105
        %v5107 = vrot.slane %v5105, 4
        %v5108 = vrot.slane %v4993, 5
        %v5109 = vsel %vm1516, %v5107, %v5108
        %v5110 = vrot.slane %v4994, 5
        %v5111 = vrot.slane %v5110, 4
        %v5112 = vrot.slane %v4995, 5
        %v5113 = vsel %vm1516, %v5111, %v5112
        %v5114 = vrot.slane %v5112, 4
        %v5115 = vrot.slane %v4996, 5
        %v5116 = vsel %vm1516, %v5114, %v5115
        %v5117 = vrot.slane %v4997, 5
        %v5118 = vrot.slane %v5117, 4
        %v5119 = vrot.slane %v4998, 5
        %v5120 = vsel %vm1516, %v5118, %v5119
        %v5121 = vrot.slane %v5119, 4
        %v5122 = vrot.slane %v4999, 5
        %v5123 = vsel %vm1516, %v5121, %v5122
        %v5124 = vrot.slane %v5000, 5
        %v5125 = vrot.slane %v5124, 4
        %v5126 = vrot.slane %v5001, 5
        %v5127 = vsel %vm1516, %v5125, %v5126
        %v5128 = vrot.slane %v5126, 4
        %v5129 = vrot.slane %v5002, 5
        %v5130 = vsel %vm1516, %v5128, %v5129
        %v5131 = vrot.slane %v5003, 5
        %v5132 = vrot.slane %v5131, 4
        %v5133 = vrot.slane %v5004, 5
        %v5134 = vsel %vm1516, %v5132, %v5133
        %v5135 = vrot.slane %v5133, 4
        %v5136 = vrot.slane %v5005, 5
        %v5137 = vsel %vm1516, %v5135, %v5136
        %v5138 = vrot.slane %v5006, 5
        %v5139 = vrot.slane %v5138, 4
        %v5140 = vrot.slane %v5007, 5
        %v5141 = vsel %vm1516, %v5139, %v5140
        %v5142 = vrot.slane %v5140, 4
        %v5143 = vrot.slane %v5008, 5
        %v5144 = vsel %vm1516, %v5142, %v5143
        %v5145 = vrot.slane %v5009, 5
        %v5146 = vrot.slane %v5145, 4
        %v5147 = vrot.slane %v5010, 5
        %v5148 = vsel %vm1516, %v5146, %v5147
        %v5149 = vrot.slane %v5147, 4
        %v5150 = vrot.slane %v5011, 5
        %v5151 = vsel %vm1516, %v5149, %v5150
        %v5152 = vrot.slane %v5012, 5
        %v5153 = vrot.slane %v5152, 4
        %v5154 = vrot.slane %v5013, 5
        %v5155 = vsel %vm1516, %v5153, %v5154
        %v5156 = vrot.slane %v5154, 4
        %v5157 = vrot.slane %v5014, 5
        %v5158 = vsel %vm1516, %v5156, %v5157
        %v5159 = vrot.slane %v5015, 5
        %v5160 = vrot.slane %v5159, 4
        %v5161 = vrot.slane %v5016, 5
        %v5162 = vsel %vm1516, %v5160, %v5161
        %v5163 = vrot.slane %v5161, 4
        %v5164 = vrot.slane %v5017, 5
        %v5165 = vsel %vm1516, %v5163, %v5164
        %v5166 = vrot.slane %v5018, 5
        %v5167 = vrot.slane %v5166, 4
        %v5168 = vrot.slane %v5019, 5
        %v5169 = vsel %vm1516, %v5167, %v5168
        %v5170 = vrot.slane %v5168, 4
        %v5171 = vrot.slane %v5020, 5
        %v5172 = vsel %vm1516, %v5170, %v5171
        %v5173 = vrot.slane %v5021, 5
        %v5174 = vrot.slane %v5173, 4
        %v5175 = vrot.slane %v5022, 5
        %v5176 = vsel %vm1516, %v5174, %v5175
        %v5177 = vrot.slane %v5175, 4
        %v5178 = vrot.slane %v5023, 5
        %v5179 = vsel %vm1516, %v5177, %v5178
        %v5180 = vrot.slane %v5024, 5
        %v5181 = vrot.slane %v5180, 4
        %v5182 = vrot.slane %v5025, 5
        %v5183 = vsel %vm1516, %v5181, %v5182
        %v5184 = vrot.slane %v5182, 4
        %v5185 = vrot.slane %v5026, 5
        %v5186 = vsel %vm1516, %v5184, %v5185
        %s5187 = scalar_lea.vmem %s1, 16
        %v5188 = vld [vmem:[%s5187] sm:$0x3]
        %v5189 = vld [vmem:[#allocation2] sm:$0xff]
        %v5190 = vld [vmem:[#allocation2 + $0x8] sm:$0xff]
        %v5191 = vld [vmem:[#allocation2 + $0x10] sm:$0xff]
        %v5192 = vld [vmem:[#allocation2 + $0x18] sm:$0xff]
        %v5193 = vld [vmem:[#allocation2 + $0x20] sm:$0xff]
        %v5194 = vld [vmem:[#allocation2 + $0x28] sm:$0xff]
        %v5195 = vld [vmem:[#allocation2 + $0x30] sm:$0xff]
        %v5196 = vld [vmem:[#allocation2 + $0x38] sm:$0xff]
        %v5197 = vld [vmem:[#allocation2 + $0x40] sm:$0xff]
        %v5198 = vld [vmem:[#allocation2 + $0x48] sm:$0xff]
        %v5199 = vld [vmem:[#allocation2 + $0x50] sm:$0xff]
        %v5200 = vld [vmem:[#allocation2 + $0x58] sm:$0xff]
        %v5201 = vld [vmem:[#allocation2 + $0x60] sm:$0xff]
        %v5202 = vld [vmem:[#allocation2 + $0x68] sm:$0xff]
        %v5203 = vld [vmem:[#allocation2 + $0x70] sm:$0xff]
        %v5204 = vld [vmem:[#allocation2 + $0x78] sm:$0xff]
        %v5205 = vld [vmem:[#allocation2 + $0x80] sm:$0xff]
        %v5206 = vld [vmem:[#allocation2 + $0x88] sm:$0xff]
        %v5207 = vld [vmem:[#allocation2 + $0x90] sm:$0xff]
        %v5208 = vld [vmem:[#allocation2 + $0x98] sm:$0xff]
        %v5209 = vld [vmem:[#allocation2 + $0xa0] sm:$0xff]
        %v5210 = vld [vmem:[#allocation2 + $0xa8] sm:$0xff]
        %v5211 = vld [vmem:[#allocation2 + $0xb0] sm:$0xff]
        %v5212 = vld [vmem:[#allocation2 + $0xb8] sm:$0xff]
        %v5213 = vld [vmem:[#allocation2 + $0xc0] sm:$0xff]
        %v5214 = vld [vmem:[#allocation2 + $0xc8] sm:$0xff]
        %v5215 = vld [vmem:[#allocation2 + $0xd0] sm:$0xff]
        %v5216 = vld [vmem:[#allocation2 + $0xd8] sm:$0xff]
        %v5217 = vld [vmem:[#allocation2 + $0xe0] sm:$0xff]
        %v5218 = vld [vmem:[#allocation2 + $0xe8] sm:$0xff]
        %v5219 = vld [vmem:[#allocation2 + $0xf0] sm:$0xff]
        %v5220 = vld [vmem:[#allocation2 + $0xf8] sm:$0xff]
        %v5221 = vunpack.c.l.b16 %v5078
        %v5222 = vunpack.c.l.b16 %v5081
        %v5223 = vunpack.c.l.b16 %v5085
        %v5224 = vunpack.c.l.b16 %v5088
        %v5225 = vunpack.c.l.b16 %v5092
        %v5226 = vunpack.c.l.b16 %v5095
        %v5227 = vunpack.c.l.b16 %v5099
        %v5228 = vunpack.c.l.b16 %v5102
        %v5229 = vunpack.c.l.b16 %v5106
        %v5230 = vunpack.c.l.b16 %v5109
        %v5231 = vunpack.c.l.b16 %v5113
        %v5232 = vunpack.c.l.b16 %v5116
        %v5233 = vunpack.c.l.b16 %v5120
        %v5234 = vunpack.c.l.b16 %v5123
        %v5235 = vunpack.c.l.b16 %v5127
        %v5236 = vunpack.c.l.b16 %v5130
        %v5237 = vunpack.c.l.b16 %v5134
        %v5238 = vunpack.c.l.b16 %v5137
        %v5239 = vunpack.c.l.b16 %v5141
        %v5240 = vunpack.c.l.b16 %v5144
        %v5241 = vunpack.c.l.b16 %v5148
        %v5242 = vunpack.c.l.b16 %v5151
        %v5243 = vunpack.c.l.b16 %v5155
        %v5244 = vunpack.c.l.b16 %v5158
        %v5245 = vunpack.c.l.b16 %v5162
        %v5246 = vunpack.c.l.b16 %v5165
        %v5247 = vunpack.c.l.b16 %v5169
        %v5248 = vunpack.c.l.b16 %v5172
        %v5249 = vunpack.c.l.b16 %v5176
        %v5250 = vunpack.c.l.b16 %v5179
        %v5251 = vunpack.c.l.b16 %v5183
        %v5252 = vunpack.c.l.b16 %v5186
        %v5253 = vpack.c.b16 %v5222, %v5221
        %v5254 = vpack.c.b16 %v5224, %v5223
        %v5255 = vpack.c.b16 %v5226, %v5225
        %v5256 = vpack.c.b16 %v5228, %v5227
        %v5257 = vpack.c.b16 %v5230, %v5229
        %v5258 = vpack.c.b16 %v5232, %v5231
        %v5259 = vpack.c.b16 %v5234, %v5233
        %v5260 = vpack.c.b16 %v5236, %v5235
        %v5261 = vpack.c.b16 %v5238, %v5237
        %v5262 = vpack.c.b16 %v5240, %v5239
        %v5263 = vpack.c.b16 %v5242, %v5241
        %v5264 = vpack.c.b16 %v5244, %v5243
        %v5265 = vpack.c.b16 %v5246, %v5245
        %v5266 = vpack.c.b16 %v5248, %v5247
        %v5267 = vpack.c.b16 %v5250, %v5249
        %v5268 = vpack.c.b16 %v5252, %v5251
        %v5270 = vsel %vm347, %v5253, 0
        %v5273 = vsel %vm347, %v5254, 0
        %v5276 = vsel %vm347, %v5255, 0
        %v5279 = vsel %vm347, %v5256, 0
        %v5282 = vsel %vm347, %v5257, 0
        %v5285 = vsel %vm347, %v5258, 0
        %v5288 = vsel %vm347, %v5259, 0
        %v5291 = vsel %vm347, %v5260, 0
        %v5294 = vsel %vm347, %v5261, 0
        %v5297 = vsel %vm347, %v5262, 0
        %v5300 = vsel %vm347, %v5263, 0
        %v5303 = vsel %vm347, %v5264, 0
        %v5306 = vsel %vm347, %v5265, 0
        %v5309 = vsel %vm347, %v5266, 0
        %v5312 = vsel %vm347, %v5267, 0
        %v5315 = vsel %vm347, %v5268, 0
        %v5318 = vsel %vm396, %v5188, 0
        %5320 = vmatprep.subr.bf16.mxu0 0
        %5321 = vmatpush1.bf16.msra.mxu0 0
        %5322 = vmatprep.subr.bf16.mxu0 0
        %5323 = vmatpush1.bf16.msra.mxu0 0
        %5324 = vmatprep.subr.bf16.mxu0 0
        %5325 = vmatpush1.bf16.msra.mxu0 0
        %5326 = vmatprep.subr.bf16.mxu0 0
        %5327 = vmatpush1.bf16.msra.mxu0 0
        %5328 = vmatprep.subr.bf16.mxu0 0
        %5329 = vmatpush1.bf16.msra.mxu0 0
        %5330 = vmatprep.subr.bf16.mxu0 0
        %5331 = vmatpush1.bf16.msra.mxu0 0
        %5332 = vmatprep.subr.bf16.mxu0 0
        %5333 = vmatpush1.bf16.msra.mxu0 0
        %5334 = vmatprep.subr.bf16.mxu0 0
        %5335 = vmatpush1.bf16.msra.mxu0 %v5318
        %5336 = vmatprep.subr.bf16.mxu0 0
        %5337 = vmatpush2.bf16.msra.mxu0 0
        %5338 = vmatprep.subr.bf16.mxu0 0
        %5339 = vmatpush2.bf16.msra.mxu0 0
        %5340 = vmatprep.subr.bf16.mxu0 0
        %5341 = vmatpush2.bf16.msra.mxu0 0
        %5342 = vmatprep.subr.bf16.mxu0 0
        %5343 = vmatpush2.bf16.msra.mxu0 0
        %5344 = vmatprep.subr.bf16.mxu0 0
        %5345 = vmatpush2.bf16.msra.mxu0 0
        %5346 = vmatprep.subr.bf16.mxu0 0
        %5347 = vmatpush2.bf16.msra.mxu0 0
        %5348 = vmatprep.subr.bf16.mxu0 0
        %5349 = vmatpush2.bf16.msra.mxu0 0
        %5350 = vmatprep.subr.bf16.mxu0 0
        %5351 = vmatpush2.bf16.msra.mxu0 0
        %5352 = vmatprep.mubr.bf16.mxu0 0
        %5353 = vmatmul.mubr.bf16.gmra.mxu0 %v5270
        %v5354 = vpop.f32.mrf.mxu0
        %v5355 = vadd.f32 0.0, %v5354
        %v5356 = vpop.f32.mrf.mxu0
        %v5357 = vpop.f32.mrf.mxu0
        %v5358 = vadd.f32 0.0, %v5357
        %v5359 = vpop.f32.mrf.mxu0
        %5360 = vmatprep.mubr.bf16.mxu0 0
        %5361 = vmatmul.mubr.bf16.gmra.mxu0 %v5273
        %v5362 = vpop.f32.mrf.mxu0
        %v5363 = vadd.f32 0.0, %v5362
        %v5364 = vpop.f32.mrf.mxu0
        %v5365 = vpop.f32.mrf.mxu0
        %v5366 = vadd.f32 0.0, %v5365
        %v5367 = vpop.f32.mrf.mxu0
        %5368 = vmatprep.mubr.bf16.mxu0 0
        %5369 = vmatmul.mubr.bf16.gmra.mxu0 %v5276
        %v5370 = vpop.f32.mrf.mxu0
        %v5371 = vadd.f32 0.0, %v5370
        %v5372 = vpop.f32.mrf.mxu0
        %v5373 = vpop.f32.mrf.mxu0
        %v5374 = vadd.f32 0.0, %v5373
        %v5375 = vpop.f32.mrf.mxu0
        %5376 = vmatprep.mubr.bf16.mxu0 0
        %5377 = vmatmul.mubr.bf16.gmra.mxu0 %v5279
        %v5378 = vpop.f32.mrf.mxu0
        %v5379 = vadd.f32 0.0, %v5378
        %v5380 = vpop.f32.mrf.mxu0
        %v5381 = vpop.f32.mrf.mxu0
        %v5382 = vadd.f32 0.0, %v5381
        %v5383 = vpop.f32.mrf.mxu0
        %5384 = vmatprep.mubr.bf16.mxu0 0
        %5385 = vmatmul.mubr.bf16.gmra.mxu0 %v5282
        %v5386 = vpop.f32.mrf.mxu0
        %v5387 = vadd.f32 0.0, %v5386
        %v5388 = vpop.f32.mrf.mxu0
        %v5389 = vpop.f32.mrf.mxu0
        %v5390 = vadd.f32 0.0, %v5389
        %v5391 = vpop.f32.mrf.mxu0
        %5392 = vmatprep.mubr.bf16.mxu0 0
        %5393 = vmatmul.mubr.bf16.gmra.mxu0 %v5285
        %v5394 = vpop.f32.mrf.mxu0
        %v5395 = vadd.f32 0.0, %v5394
        %v5396 = vpop.f32.mrf.mxu0
        %v5397 = vpop.f32.mrf.mxu0
        %v5398 = vadd.f32 0.0, %v5397
        %v5399 = vpop.f32.mrf.mxu0
        %5400 = vmatprep.mubr.bf16.mxu0 0
        %5401 = vmatmul.mubr.bf16.gmra.mxu0 %v5288
        %v5402 = vpop.f32.mrf.mxu0
        %v5403 = vadd.f32 0.0, %v5402
        %v5404 = vpop.f32.mrf.mxu0
        %v5405 = vpop.f32.mrf.mxu0
        %v5406 = vadd.f32 0.0, %v5405
        %v5407 = vpop.f32.mrf.mxu0
        %5408 = vmatprep.mubr.bf16.mxu0 0
        %5409 = vmatmul.mubr.bf16.gmra.mxu0 %v5291
        %v5410 = vpop.f32.mrf.mxu0
        %v5411 = vadd.f32 0.0, %v5410
        %v5412 = vpop.f32.mrf.mxu0
        %v5413 = vpop.f32.mrf.mxu0
        %v5414 = vadd.f32 0.0, %v5413
        %v5415 = vpop.f32.mrf.mxu0
        %5416 = vmatprep.mubr.bf16.mxu0 0
        %5417 = vmatmul.mubr.bf16.gmra.mxu0 %v5294
        %v5418 = vpop.f32.mrf.mxu0
        %v5419 = vadd.f32 0.0, %v5418
        %v5420 = vpop.f32.mrf.mxu0
        %v5421 = vpop.f32.mrf.mxu0
        %v5422 = vadd.f32 0.0, %v5421
        %v5423 = vpop.f32.mrf.mxu0
        %5424 = vmatprep.mubr.bf16.mxu0 0
        %5425 = vmatmul.mubr.bf16.gmra.mxu0 %v5297
        %v5426 = vpop.f32.mrf.mxu0
        %v5427 = vadd.f32 0.0, %v5426
        %v5428 = vpop.f32.mrf.mxu0
        %v5429 = vpop.f32.mrf.mxu0
        %v5430 = vadd.f32 0.0, %v5429
        %v5431 = vpop.f32.mrf.mxu0
        %5432 = vmatprep.mubr.bf16.mxu0 0
        %5433 = vmatmul.mubr.bf16.gmra.mxu0 %v5300
        %v5434 = vpop.f32.mrf.mxu0
        %v5435 = vadd.f32 0.0, %v5434
        %v5436 = vpop.f32.mrf.mxu0
        %v5437 = vpop.f32.mrf.mxu0
        %v5438 = vadd.f32 0.0, %v5437
        %v5439 = vpop.f32.mrf.mxu0
        %5440 = vmatprep.mubr.bf16.mxu0 0
        %5441 = vmatmul.mubr.bf16.gmra.mxu0 %v5303
        %v5442 = vpop.f32.mrf.mxu0
        %v5443 = vadd.f32 0.0, %v5442
        %v5444 = vpop.f32.mrf.mxu0
        %v5445 = vpop.f32.mrf.mxu0
        %v5446 = vadd.f32 0.0, %v5445
        %v5447 = vpop.f32.mrf.mxu0
        %5448 = vmatprep.mubr.bf16.mxu0 0
        %5449 = vmatmul.mubr.bf16.gmra.mxu0 %v5306
        %v5450 = vpop.f32.mrf.mxu0
        %v5451 = vadd.f32 0.0, %v5450
        %v5452 = vpop.f32.mrf.mxu0
        %v5453 = vpop.f32.mrf.mxu0
        %v5454 = vadd.f32 0.0, %v5453
        %v5455 = vpop.f32.mrf.mxu0
        %5456 = vmatprep.mubr.bf16.mxu0 0
        %5457 = vmatmul.mubr.bf16.gmra.mxu0 %v5309
        %v5458 = vpop.f32.mrf.mxu0
        %v5459 = vadd.f32 0.0, %v5458
        %v5460 = vpop.f32.mrf.mxu0
        %v5461 = vpop.f32.mrf.mxu0
        %v5462 = vadd.f32 0.0, %v5461
        %v5463 = vpop.f32.mrf.mxu0
        %5464 = vmatprep.mubr.bf16.mxu0 0
        %5465 = vmatmul.mubr.bf16.gmra.mxu0 %v5312
        %v5466 = vpop.f32.mrf.mxu0
        %v5467 = vadd.f32 0.0, %v5466
        %v5468 = vpop.f32.mrf.mxu0
        %v5469 = vpop.f32.mrf.mxu0
        %v5470 = vadd.f32 0.0, %v5469
        %v5471 = vpop.f32.mrf.mxu0
        %5472 = vmatprep.mubr.bf16.mxu0 0
        %5473 = vmatmul.mubr.bf16.gmra.mxu0 %v5315
        %v5474 = vpop.f32.mrf.mxu0
        %v5475 = vadd.f32 0.0, %v5474
        %v5476 = vpop.f32.mrf.mxu0
        %v5477 = vpop.f32.mrf.mxu0
        %v5478 = vadd.f32 0.0, %v5477
        %v5479 = vpop.f32.mrf.mxu0
        %5480 = vdwg.mxu0
        %v5481 = vadd.f32 %v5189, %v5355
        %v5482 = vadd.f32 %v5190, %v5358
        %v5483 = vadd.f32 %v5191, %v5363
        %v5484 = vadd.f32 %v5192, %v5366
        %v5485 = vadd.f32 %v5193, %v5371
        %v5486 = vadd.f32 %v5194, %v5374
        %v5487 = vadd.f32 %v5195, %v5379
        %v5488 = vadd.f32 %v5196, %v5382
        %v5489 = vadd.f32 %v5197, %v5387
        %v5490 = vadd.f32 %v5198, %v5390
        %v5491 = vadd.f32 %v5199, %v5395
        %v5492 = vadd.f32 %v5200, %v5398
        %v5493 = vadd.f32 %v5201, %v5403
        %v5494 = vadd.f32 %v5202, %v5406
        %v5495 = vadd.f32 %v5203, %v5411
        %v5496 = vadd.f32 %v5204, %v5414
        %v5497 = vadd.f32 %v5205, %v5419
        %v5498 = vadd.f32 %v5206, %v5422
        %v5499 = vadd.f32 %v5207, %v5427
        %v5500 = vadd.f32 %v5208, %v5430
        %v5501 = vadd.f32 %v5209, %v5435
        %v5502 = vadd.f32 %v5210, %v5438
        %v5503 = vadd.f32 %v5211, %v5443
        %v5504 = vadd.f32 %v5212, %v5446
        %v5505 = vadd.f32 %v5213, %v5451
        %v5506 = vadd.f32 %v5214, %v5454
        %v5507 = vadd.f32 %v5215, %v5459
        %v5508 = vadd.f32 %v5216, %v5462
        %v5509 = vadd.f32 %v5217, %v5467
        %v5510 = vadd.f32 %v5218, %v5470
        %v5511 = vadd.f32 %v5219, %v5475
        %v5512 = vadd.f32 %v5220, %v5478
        %5513 = vst [vmem:[#allocation2] sm:$0xff] %v5481
        %5514 = vst [vmem:[#allocation2 + $0x8] sm:$0xff] %v5482
        %5515 = vst [vmem:[#allocation2 + $0x10] sm:$0xff] %v5483
        %5516 = vst [vmem:[#allocation2 + $0x18] sm:$0xff] %v5484
        %5517 = vst [vmem:[#allocation2 + $0x20] sm:$0xff] %v5485
        %5518 = vst [vmem:[#allocation2 + $0x28] sm:$0xff] %v5486
        %5519 = vst [vmem:[#allocation2 + $0x30] sm:$0xff] %v5487
        %5520 = vst [vmem:[#allocation2 + $0x38] sm:$0xff] %v5488
        %5521 = vst [vmem:[#allocation2 + $0x40] sm:$0xff] %v5489
        %5522 = vst [vmem:[#allocation2 + $0x48] sm:$0xff] %v5490
        %5523 = vst [vmem:[#allocation2 + $0x50] sm:$0xff] %v5491
        %5524 = vst [vmem:[#allocation2 + $0x58] sm:$0xff] %v5492
        %5525 = vst [vmem:[#allocation2 + $0x60] sm:$0xff] %v5493
        %5526 = vst [vmem:[#allocation2 + $0x68] sm:$0xff] %v5494
        %5527 = vst [vmem:[#allocation2 + $0x70] sm:$0xff] %v5495
        %5528 = vst [vmem:[#allocation2 + $0x78] sm:$0xff] %v5496
        %5529 = vst [vmem:[#allocation2 + $0x80] sm:$0xff] %v5497
        %5530 = vst [vmem:[#allocation2 + $0x88] sm:$0xff] %v5498
        %5531 = vst [vmem:[#allocation2 + $0x90] sm:$0xff] %v5499
        %5532 = vst [vmem:[#allocation2 + $0x98] sm:$0xff] %v5500
        %5533 = vst [vmem:[#allocation2 + $0xa0] sm:$0xff] %v5501
        %5534 = vst [vmem:[#allocation2 + $0xa8] sm:$0xff] %v5502
        %5535 = vst [vmem:[#allocation2 + $0xb0] sm:$0xff] %v5503
        %5536 = vst [vmem:[#allocation2 + $0xb8] sm:$0xff] %v5504
        %5537 = vst [vmem:[#allocation2 + $0xc0] sm:$0xff] %v5505
        %5538 = vst [vmem:[#allocation2 + $0xc8] sm:$0xff] %v5506
        %5539 = vst [vmem:[#allocation2 + $0xd0] sm:$0xff] %v5507
        %5540 = vst [vmem:[#allocation2 + $0xd8] sm:$0xff] %v5508
        %5541 = vst [vmem:[#allocation2 + $0xe0] sm:$0xff] %v5509
        %5542 = vst [vmem:[#allocation2 + $0xe8] sm:$0xff] %v5510
        %5543 = vst [vmem:[#allocation2 + $0xf0] sm:$0xff] %v5511
        %5544 = vst [vmem:[#allocation2 + $0xf8] sm:$0xff] %v5512
        %v5545 = vld [vmem:[#allocation2] sm:$0xff]
        %v5546 = vld [vmem:[#allocation2 + $0x8] sm:$0xff]
        %v5547 = vld [vmem:[#allocation2 + $0x10] sm:$0xff]
        %v5548 = vld [vmem:[#allocation2 + $0x18] sm:$0xff]
        %v5549 = vld [vmem:[#allocation2 + $0x20] sm:$0xff]
        %v5550 = vld [vmem:[#allocation2 + $0x28] sm:$0xff]
        %v5551 = vld [vmem:[#allocation2 + $0x30] sm:$0xff]
        %v5552 = vld [vmem:[#allocation2 + $0x38] sm:$0xff]
        %v5553 = vld [vmem:[#allocation2 + $0x40] sm:$0xff]
        %v5554 = vld [vmem:[#allocation2 + $0x48] sm:$0xff]
        %v5555 = vld [vmem:[#allocation2 + $0x50] sm:$0xff]
        %v5556 = vld [vmem:[#allocation2 + $0x58] sm:$0xff]
        %v5557 = vld [vmem:[#allocation2 + $0x60] sm:$0xff]
        %v5558 = vld [vmem:[#allocation2 + $0x68] sm:$0xff]
        %v5559 = vld [vmem:[#allocation2 + $0x70] sm:$0xff]
        %v5560 = vld [vmem:[#allocation2 + $0x78] sm:$0xff]
        %v5561 = vld [vmem:[#allocation2 + $0x80] sm:$0xff]
        %v5562 = vld [vmem:[#allocation2 + $0x88] sm:$0xff]
        %v5563 = vld [vmem:[#allocation2 + $0x90] sm:$0xff]
        %v5564 = vld [vmem:[#allocation2 + $0x98] sm:$0xff]
        %v5565 = vld [vmem:[#allocation2 + $0xa0] sm:$0xff]
        %v5566 = vld [vmem:[#allocation2 + $0xa8] sm:$0xff]
        %v5567 = vld [vmem:[#allocation2 + $0xb0] sm:$0xff]
        %v5568 = vld [vmem:[#allocation2 + $0xb8] sm:$0xff]
        %v5569 = vld [vmem:[#allocation2 + $0xc0] sm:$0xff]
        %v5570 = vld [vmem:[#allocation2 + $0xc8] sm:$0xff]
        %v5571 = vld [vmem:[#allocation2 + $0xd0] sm:$0xff]
        %v5572 = vld [vmem:[#allocation2 + $0xd8] sm:$0xff]
        %v5573 = vld [vmem:[#allocation2 + $0xe0] sm:$0xff]
        %v5574 = vld [vmem:[#allocation2 + $0xe8] sm:$0xff]
        %v5575 = vld [vmem:[#allocation2 + $0xf0] sm:$0xff]
        %v5576 = vld [vmem:[#allocation2 + $0xf8] sm:$0xff]
        %v5577 = vld [vmem:[%s2] sm:$0x1]
        %v5579 = vlaneseq
        %v5580 = vshrl.u32 %v5579, 7
        %v5581 = vsub.s32 0, %v5580
        %v5582 = vrot.slane %v5577, %v5581
        %v5584 = vadd.f32 %v5545, %v5582
        %v5585 = vadd.f32 %v5546, %v5582
        %v5586 = vadd.f32 %v5547, %v5582
        %v5587 = vadd.f32 %v5548, %v5582
        %v5588 = vadd.f32 %v5549, %v5582
        %v5589 = vadd.f32 %v5550, %v5582
        %v5590 = vadd.f32 %v5551, %v5582
        %v5591 = vadd.f32 %v5552, %v5582
        %v5592 = vadd.f32 %v5553, %v5582
        %v5593 = vadd.f32 %v5554, %v5582
        %v5594 = vadd.f32 %v5555, %v5582
        %v5595 = vadd.f32 %v5556, %v5582
        %v5596 = vadd.f32 %v5557, %v5582
        %v5597 = vadd.f32 %v5558, %v5582
        %v5598 = vadd.f32 %v5559, %v5582
        %v5599 = vadd.f32 %v5560, %v5582
        %v5600 = vadd.f32 %v5561, %v5582
        %v5601 = vadd.f32 %v5562, %v5582
        %v5602 = vadd.f32 %v5563, %v5582
        %v5603 = vadd.f32 %v5564, %v5582
        %v5604 = vadd.f32 %v5565, %v5582
        %v5605 = vadd.f32 %v5566, %v5582
        %v5606 = vadd.f32 %v5567, %v5582
        %v5607 = vadd.f32 %v5568, %v5582
        %v5608 = vadd.f32 %v5569, %v5582
        %v5609 = vadd.f32 %v5570, %v5582
        %v5610 = vadd.f32 %v5571, %v5582
        %v5611 = vadd.f32 %v5572, %v5582
        %v5612 = vadd.f32 %v5573, %v5582
        %v5613 = vadd.f32 %v5574, %v5582
        %v5614 = vadd.f32 %v5575, %v5582
        %v5615 = vadd.f32 %v5576, %v5582
        %v5616 = vmax.f32 %v5584, 0.0
        %v5617 = vmax.f32 %v5585, 0.0
        %v5618 = vmax.f32 %v5586, 0.0
        %v5619 = vmax.f32 %v5587, 0.0
        %v5620 = vmax.f32 %v5588, 0.0
        %v5621 = vmax.f32 %v5589, 0.0
        %v5622 = vmax.f32 %v5590, 0.0
        %v5623 = vmax.f32 %v5591, 0.0
        %v5624 = vmax.f32 %v5592, 0.0
        %v5625 = vmax.f32 %v5593, 0.0
        %v5626 = vmax.f32 %v5594, 0.0
        %v5627 = vmax.f32 %v5595, 0.0
        %v5628 = vmax.f32 %v5596, 0.0
        %v5629 = vmax.f32 %v5597, 0.0
        %v5630 = vmax.f32 %v5598, 0.0
        %v5631 = vmax.f32 %v5599, 0.0
        %v5632 = vmax.f32 %v5600, 0.0
        %v5633 = vmax.f32 %v5601, 0.0
        %v5634 = vmax.f32 %v5602, 0.0
        %v5635 = vmax.f32 %v5603, 0.0
        %v5636 = vmax.f32 %v5604, 0.0
        %v5637 = vmax.f32 %v5605, 0.0
        %v5638 = vmax.f32 %v5606, 0.0
        %v5639 = vmax.f32 %v5607, 0.0
        %v5640 = vmax.f32 %v5608, 0.0
        %v5641 = vmax.f32 %v5609, 0.0
        %v5642 = vmax.f32 %v5610, 0.0
        %v5643 = vmax.f32 %v5611, 0.0
        %v5644 = vmax.f32 %v5612, 0.0
        %v5645 = vmax.f32 %v5613, 0.0
        %v5646 = vmax.f32 %v5614, 0.0
        %v5647 = vmax.f32 %v5615, 0.0
        %5648 = vst [vmem:[%s163] sm:$0xff] %v5616
        %5649 = vst [vmem:[%s163 + $0x8] sm:$0xff] %v5617
        %5650 = vst [vmem:[%s163 + $0x10] sm:$0xff] %v5618
        %5651 = vst [vmem:[%s163 + $0x18] sm:$0xff] %v5619
        %5652 = vst [vmem:[%s163 + $0x20] sm:$0xff] %v5620
        %5653 = vst [vmem:[%s163 + $0x28] sm:$0xff] %v5621
        %5654 = vst [vmem:[%s163 + $0x30] sm:$0xff] %v5622
        %5655 = vst [vmem:[%s163 + $0x38] sm:$0xff] %v5623
        %5656 = vst [vmem:[%s163 + $0x40] sm:$0xff] %v5624
        %5657 = vst [vmem:[%s163 + $0x48] sm:$0xff] %v5625
        %5658 = vst [vmem:[%s163 + $0x50] sm:$0xff] %v5626
        %5659 = vst [vmem:[%s163 + $0x58] sm:$0xff] %v5627
        %5660 = vst [vmem:[%s163 + $0x60] sm:$0xff] %v5628
        %5661 = vst [vmem:[%s163 + $0x68] sm:$0xff] %v5629
        %5662 = vst [vmem:[%s163 + $0x70] sm:$0xff] %v5630
        %5663 = vst [vmem:[%s163 + $0x78] sm:$0xff] %v5631
        %5664 = vst [vmem:[%s163 + $0x80] sm:$0xff] %v5632
        %5665 = vst [vmem:[%s163 + $0x88] sm:$0xff] %v5633
        %5666 = vst [vmem:[%s163 + $0x90] sm:$0xff] %v5634
        %5667 = vst [vmem:[%s163 + $0x98] sm:$0xff] %v5635
        %5668 = vst [vmem:[%s163 + $0xa0] sm:$0xff] %v5636
        %5669 = vst [vmem:[%s163 + $0xa8] sm:$0xff] %v5637
        %5670 = vst [vmem:[%s163 + $0xb0] sm:$0xff] %v5638
        %5671 = vst [vmem:[%s163 + $0xb8] sm:$0xff] %v5639
        %5672 = vst [vmem:[%s163 + $0xc0] sm:$0xff] %v5640
        %5673 = vst [vmem:[%s163 + $0xc8] sm:$0xff] %v5641
        %5674 = vst [vmem:[%s163 + $0xd0] sm:$0xff] %v5642
        %5675 = vst [vmem:[%s163 + $0xd8] sm:$0xff] %v5643
        %5676 = vst [vmem:[%s163 + $0xe0] sm:$0xff] %v5644
        %5677 = vst [vmem:[%s163 + $0xe8] sm:$0xff] %v5645
        %5678 = vst [vmem:[%s163 + $0xf0] sm:$0xff] %v5646
        %5679 = vst [vmem:[%s163 + $0xf8] sm:$0xff] %v5647
        %s5680 = sand.u32 %s93, 1
        %s5681 = scalar_lea.sflag [#allocation4], %s5680
        %s5682 = sand.u32 %s93, 1
        %s5683 = smul.addr %s5682, 256
        %s5684 = scalar_lea.vmem [#allocation3], %s5683
        // Predicated region
        $region33: #{tpu_custom_call.1} parent=31 // pred_check
          %p5685 = pneg %p103
        $region34: #{tpu_custom_call.1} parent=31 // pred_check_branch
          %5687 = sbr.rel (%p5685) target = $region36
        $region35: #{tpu_custom_call.1} parent=31 // pred_region
          %s5689 = ssub.s32 4096, 4096
          %5690 = vsyncadd %s5681, %s5689
          %s5691 = smul.addr %s17, 32
          %s5692 = smul.addr %s5691, 128
          %s5693 = scalar_lea.hbm %s3, %s5692
          %s5694 = sshll.u32 %s5684, 4
          %s5695 = int_to_ptr.vmem [resolvable:$true] %s5694
          %5700 = dma.vmem_to_hbm [thread:$0]  %s5695, 4096, %s5693, %s5681, 128, 128, 8
        $region36: #{tpu_custom_call.1} parent=31 // pred_fallthru
          _
      $region32: #{tpu_custom_call.1} parent=5 // pred_fallthru
        _
      %p5701 = scmp.le.s32.totalorder 2, %s12
      // Predicated region
      $region37: #{tpu_custom_call.1} parent=5 // pred_check
        %p5702 = pneg %p5701
      $region38: #{tpu_custom_call.1} parent=5 // pred_check_branch
        %5704 = sbr.rel (%p5702) target = $region40
      $region39: #{tpu_custom_call.1} parent=5 // pred_region
        %s5705 = ssub.s32 %s12, 2
        // Predicated region
        $region41: #{tpu_custom_call.1} parent=39 // pred_check
          %p5706 = pneg %p109
        $region42: #{tpu_custom_call.1} parent=39 // pred_check_branch
          %5708 = sbr.rel (%p5706) target = $region44
        $region43: #{tpu_custom_call.1} parent=39 // pred_region
          %s5709 = sand.u32 %s94, 1
          %s5710 = scalar_lea.sflag [#allocation4], %s5709
          %s5711 = sand.u32 %s94, 1
          %s5712 = smul.addr %s5711, 256
          %s5713 = scalar_lea.vmem [#allocation3], %s5712
          %5714 = dma.done %s5710, 4096
        $region44: #{tpu_custom_call.1} parent=39 // pred_fallthru
          _
      $region40: #{tpu_custom_call.1} parent=5 // pred_fallthru
        _
    $region6: #{tpu_custom_call.1} parent=1 // loop_footer
      %s16 = sadd.s32 1, %s12
    $region7: #{tpu_custom_call.1} parent=1 // loop_footer_branch
      %11 = sbr.rel target = $region3
    $region8: #{tpu_custom_call.1} parent=1 // loop_exit
      _
    %5715 = vsyncpa [#allocation4], 1
    %s5716 = scalar_lea.sflag [#allocation4], 1
    %5717 = vsyncpa %s5716, 1

</llo_original>
